<compile_context>
chip_gen: v7x
topology: tpu7x:2x2x1
jax: 0.10.0
libtpu: 0.0.40
codegen_flags: <defaults>
</compile_context>

<pallas_src>
import functools
import math

import jax
import jax.numpy as jnp
from jax import lax
from jax.experimental import pallas as pl
from jax.experimental.pallas import tpu as pltpu

EPS = 1e-12  # the reference module explicitly sets eps=1e-12


# ----------------------------- in-kernel helpers -----------------------------

def _recip(x):
    # EUP approximate reciprocal + one Newton-Raphson step (VPU) -> ~exact 1/x.
    r = pl.reciprocal(x, approx=True)
    return r * (2.0 - x * r)


def _erf(x):
    # Abramowitz & Stegun 7.1.26 polynomial (max abs err ~1.5e-7).
    p = 0.3275911
    a1, a2, a3, a4, a5 = 0.254829592, -0.284496736, 1.421413741, -1.453152027, 1.061405429
    sgn = jnp.where(x >= 0.0, 1.0, -1.0)
    ax = jnp.abs(x)
    t = _recip(1.0 + p * ax)                      # divide -> EUP approx recip + Newton
    poly = ((((a5 * t + a4) * t + a3) * t + a2) * t + a1) * t
    return sgn * (1.0 - poly * jnp.exp(-ax * ax))


def _gelu_exact(x):
    # matches torch.nn.GELU() (erf formulation)
    return 0.5 * x * (1.0 + _erf(x * 0.7071067811865476))


def _layernorm(x, gamma, beta):
    mu = jnp.mean(x, axis=-1, keepdims=True)
    var = jnp.mean((x - mu) ** 2, axis=-1, keepdims=True)
    return (x - mu) * lax.rsqrt(var + EPS) * gamma + beta


# --------------------------------- kernel ------------------------------------

def encoder_kernel(we_ref, pos_ref, eg_ref, eb_ref, mask_ref,
                   wqt_ref, bq_ref, wkt_ref, bk_ref, wvt_ref, bv_ref,
                   biask_ref, biasv_ref, wot_ref, bo_ref,
                   g1_ref, be1_ref, w1t_ref, b1_ref, w2t_ref, b2_ref,
                   g2_ref, be2_ref,
                   o_ref, xc_ref, *, num_heads, batch_tile):
    l = pl.program_id(1)
    BT = batch_tile

    # Layer 0 of each batch block: embedding add + LayerNorm into the resident scratch.
    @pl.when(l == 0)
    def _():
        emb = we_ref[...] + pos_ref[...]                    # (BT, S, H) fp32
        xc_ref[...] = _layernorm(emb.reshape(xc_ref.shape), eg_ref[...], eb_ref[...])

    x = xc_ref[...]                                         # (BT*S, H) fp32, resident across l
    M, H = x.shape
    S = M // BT
    dh = H // num_heads

    # additive key-padding mask, broadcast hoisted out of the head loop
    neg = mask_ref[...]                                     # (BT, 1, S)
    neg_b = jnp.broadcast_to(neg, (BT, S, S))

    # QKV projections on the flattened (BT*S, H) block: bf16 operands, fp32 MXU acc.
    xb = x.astype(jnp.bfloat16)
    q = jnp.dot(xb, wqt_ref[...], preferred_element_type=jnp.float32) + bq_ref[...]
    k = jnp.dot(xb, wkt_ref[...], preferred_element_type=jnp.float32) + bk_ref[...]
    v = jnp.dot(xb, wvt_ref[...], preferred_element_type=jnp.float32) + bv_ref[...]

    q3b = q.reshape(BT, S, H).astype(jnp.bfloat16)
    k3b = k.reshape(BT, S, H).astype(jnp.bfloat16)
    v3b = v.reshape(BT, S, H).astype(jnp.bfloat16)

    bias_k_f = biask_ref[...].astype(jnp.float32)           # (1, H) add_bias_kv key token
    bias_v_f = biasv_ref[...].astype(jnp.float32)           # (1, H) add_bias_kv value token
    wot = wot_ref[...]                                      # (H, H) bf16 output projection

    # Per-head attention; sequences kept separate via the batched einsum.
    # TODO(synk): tile the key dimension (online softmax) for large S instead of the
    # full (BT, S, S) score matrix.
    # TODO(synk): on v6e/v7x the exp could run on bf16 inputs to halve EUP load.
    attn = bo_ref[...]                                      # (1, H) fp32, broadcasts on first add
    for h in range(num_heads):                              # static unrolled loop over heads
        sl = slice(h * dh, (h + 1) * dh)
        qh = q3b[:, :, sl]                                  # (BT, S, dh) bf16 (scale folded in)
        kh = k3b[:, :, sl]
        vh = v3b[:, :, sl]

        s_main = jnp.einsum('bqd,bkd->bqk', qh, kh,
                            preferred_element_type=jnp.float32) + neg_b   # (BT, S, S)
        # bias_k token score: tiny, keep on the VPU in fp32 (never masked)
        s_bias = jnp.sum(qh.astype(jnp.float32) * bias_k_f[:, sl],
                         axis=-1, keepdims=True)                          # (BT, S, 1)

        m = jnp.maximum(jnp.max(s_main, axis=-1, keepdims=True), s_bias)
        p_main = jnp.exp(s_main - m)
        p_bias = jnp.exp(s_bias - m)
        inv_denom = _recip(jnp.sum(p_main, axis=-1, keepdims=True) + p_bias)
        # attention-weight dropout is identity in eval mode
        ctx_h = (jnp.einsum('bqk,bkd->bqd', p_main.astype(jnp.bfloat16), vh,
                            preferred_element_type=jnp.float32)
                 + p_bias * bias_v_f[:, sl]) * inv_denom                  # (BT, S, dh) fp32

        # TODO(synk): for production dh (e.g. 64) group heads so the contraction is
        # >= 128, or concatenate all heads into one lane-dense (M, H) bf16 value and do
        # a single K=H output-projection matmul.
        attn = attn + jnp.dot(ctx_h.reshape(M, dh).astype(jnp.bfloat16), wot[sl, :],
                              preferred_element_type=jnp.float32)

    # ResidualBlock around attention: x + LayerNorm(dropout(attn))
    x1 = x + _layernorm(attn, g1_ref[...], be1_ref[...])

    # Feed-forward block: Linear(H,4H) -> GELU -> Linear(4H,H)
    # TODO(synk): for H >= 1024 on v7x, tile w1_t/w2_t over the 4H axis.
    h1 = jnp.dot(x1.astype(jnp.bfloat16), w1t_ref[...],
                 preferred_element_type=jnp.float32) + b1_ref[...]
    h1 = _gelu_exact(h1)
    mlp = jnp.dot(h1.astype(jnp.bfloat16), w2t_ref[...],
                  preferred_element_type=jnp.float32) + b2_ref[...]
    out = x1 + _layernorm(mlp, g2_ref[...], be2_ref[...])

    xc_ref[...] = out                                       # carry to next layer

    @pl.when(l == pl.num_programs(1) - 1)
    def _():
        o_ref[...] = out.reshape(o_ref.shape)


# ------------------------------- wrappers -------------------------------------

_W_NAMES = ["wq_t", "bq", "wk_t", "bk", "wv_t", "bv",
            "bias_k", "bias_v", "wo_t", "bo",
            "g1", "be1", "w1_t", "b1", "w2_t", "b2", "g2", "be2"]
_BF16 = {"wq_t", "wk_t", "wv_t", "wo_t", "w1_t", "w2_t", "bias_k", "bias_v"}


def stack_layer_params(layers, num_heads):
    """Stack per-layer params with a leading L axis, fold the attention scale into the
    q projection, and cast matmul weights to bf16.
    TODO(synk): optional fp8 weight storage (per-tensor scales) on v7x."""
    H = layers[0]["wq_t"].shape[0]
    dh = H // num_heads
    scale = jnp.float32(1.0 / math.sqrt(dh))
    stacked = {k: jnp.stack([lp[k] for lp in layers], axis=0) for k in _W_NAMES}
    # PyTorch scales q AFTER the in-projection (weight and bias) -> fold into both.
    stacked["wq_t"] = stacked["wq_t"] * scale
    stacked["bq"] = stacked["bq"] * scale
    for k in _BF16:
        stacked[k] = stacked[k].astype(jnp.bfloat16)
    return [stacked[k] for k in _W_NAMES]


def _pick_vmem_limit():
    # Generation-aware budget: ~3/4 of physical VMEM (-> ~96 MiB on v5e/v6e's 128 MiB,
    # ~48 MiB on v7x's 64 MiB), with a conservative fallback if the query fails.
    try:
        cap = int(pltpu.get_tpu_info().vmem_capacity_bytes)
    except Exception:
        cap = 64 * 1024 * 1024
    return min((cap * 3) // 4, 100 * 1024 * 1024)


def _pick_batch_tile(B, requested=None):
    # Largest divisor of B that is <= requested (default 4).  Amortizes the per-layer
    # weight streaming over BT sequences.
    # TODO(synk): on v7x (2 TCs) prefer a BT that keeps B // BT >= 2 so the 'parallel'
    # batch axis fills both TensorCores.
    bt = requested if requested is not None else 4
    bt = max(1, min(bt, B))
    while B % bt:
        bt -= 1
    return bt


def encoder_forward(token_ids, lengths, params, num_heads, batch_tile=None):
    B, S = token_ids.shape
    H = params["word"].shape[1]
    L = len(params["layers"])
    assert H % num_heads == 0
    BT = _pick_batch_tile(B, batch_tile)

    # --- WordEmbedding gather (glue in plain JAX) ---
    # TODO(synk): for large models, move the gather in-kernel (scalar-prefetched token
    # ids + per-row DMA) to skip one HBM round trip of the (B,S,H) activation.
    word_emb = jnp.take(params["word"], token_ids, axis=0)            # (B, S, H) fp32
    pos_emb = params["pos"][:S]                                       # (S, H)

    # --- key padding mask: True (masked) where position >= length ---
    pos_ids = jnp.arange(S)
    pad = pos_ids[None, :] >= lengths[:, None]                        # (B, S) bool
    neg_mask = jnp.where(pad, -1e30, 0.0).astype(jnp.float32)[:, None, :]   # (B, 1, S)

    weights = stack_layer_params(params["layers"], num_heads)

    in_specs = [
        pl.BlockSpec((BT, S, H), lambda bb, l: (bb, 0, 0)),           # word embedding
        pl.BlockSpec((S, H), lambda bb, l: (0, 0)),                   # positional embedding
        pl.BlockSpec((1, H), lambda bb, l: (0, 0)),                   # embedding LN gamma
        pl.BlockSpec((1, H), lambda bb, l: (0, 0)),                   # embedding LN beta
        pl.BlockSpec((BT, 1, S), lambda bb, l: (bb, 0, 0)),           # additive key mask
    ] + [pl.BlockSpec((None,) + w.shape[1:], lambda bb, l: (l, 0, 0)) for w in weights]

    kernel = functools.partial(encoder_kernel, num_heads=num_heads, batch_tile=BT)
    return pl.pallas_call(
        kernel,
        out_shape=jax.ShapeDtypeStruct((B, S, H), jnp.float32),
        grid=(B // BT, L),
        in_specs=in_specs,
        out_specs=pl.BlockSpec((BT, S, H), lambda bb, l: (bb, 0, 0)),
        scratch_shapes=[pltpu.VMEM((BT * S, H), jnp.float32)],        # resident activation
        compiler_params=pltpu.CompilerParams(
            dimension_semantics=("parallel", "arbitrary"),
            vmem_limit_bytes=_pick_vmem_limit()),
    )(word_emb, pos_emb, params["emb_g"], params["emb_b"], neg_mask, *weights)


# --------------------------- deterministic init --------------------------------

def init_params(key, L, H, dict_size, max_seq):
    kw, kp, key = jax.random.split(key, 3)
    params = {
        "word": (jax.random.normal(kw, (dict_size, H)) * 0.02).astype(jnp.float32),
        "pos": (jax.random.normal(kp, (max_seq, H)) * 0.02).astype(jnp.float32),
        "emb_g": jnp.ones((1, H), jnp.float32),
        "emb_b": jnp.zeros((1, H), jnp.float32),
        "layers": [],
    }
    params["word"] = params["word"].at[0].set(0.0)                    # padding_idx=0

    for _ in range(L):
        key, *ks = jax.random.split(key, 9)
        in_w = jax.random.normal(ks[0], (3 * H, H)) * 0.02            # in_proj_weight
        in_b = jax.random.normal(ks[1], (3 * H,)) * 0.02              # in_proj_bias
        lp = {
            "wq_t": in_w[:H].T, "bq": in_b[:H][None, :],
            "wk_t": in_w[H:2 * H].T, "bk": in_b[H:2 * H][None, :],
            "wv_t": in_w[2 * H:].T, "bv": in_b[2 * H:][None, :],
            "bias_k": jax.random.normal(ks[2], (1, H)) * 0.02,
            "bias_v": jax.random.normal(ks[3], (1, H)) * 0.02,
            "wo_t": (jax.random.normal(ks[4], (H, H)) * 0.02).T,
            "bo": jnp.zeros((1, H)),
            "g1": jnp.ones((1, H)), "be1": jnp.zeros((1, H)),
            "w1_t": (jax.random.normal(ks[5], (4 * H, H)) * 0.02).T,
            "b1": jax.random.normal(ks[6], (1, 4 * H)) * 0.02,
            "w2_t": (jax.random.normal(ks[7], (H, 4 * H)) * 0.02).T,
            "b2": jnp.zeros((1, H)),
            "g2": jnp.ones((1, H)), "be2": jnp.zeros((1, H)),
        }
        params["layers"].append({k: jnp.asarray(v, jnp.float32) for k, v in lp.items()})
    return params


# ---------------------------------- main ---------------------------------------

if __name__ == "__main__":
    B, S, H, A, L = 2, 8, 32, 4, 2
    dict_size, max_seq = 50, 64

    key = jax.random.PRNGKey(0)
    k_params, k_tok = jax.random.split(key)
    params = init_params(k_params, L, H, dict_size, max_seq)

    token_ids = jax.random.randint(k_tok, (B, S), 1, dict_size, dtype=jnp.int32)
    lengths = jnp.array([S, 5], dtype=jnp.int32)

    out = encoder_forward(token_ids, lengths, params, num_heads=A)
    out = jax.block_until_ready(out)

    assert out.shape == (B, S, H), out.shape
    assert bool(jnp.isfinite(out).all())
    print("KERNEL_OK")
</pallas_src>

<mosaic_0001>
module attributes {stable_mosaic.version = 11 : i64} {
  func.func @encoder_kernel(%arg0: i32, %arg1: i32, %arg2: memref<2x8x32xf32, #tpu.memory_space<vmem>>, %arg3: memref<8x32xf32, #tpu.memory_space<vmem>>, %arg4: memref<1x32xf32, #tpu.memory_space<vmem>>, %arg5: memref<1x32xf32, #tpu.memory_space<vmem>>, %arg6: memref<2x1x8xf32, #tpu.memory_space<vmem>>, %arg7: memref<1x32x32xbf16, #tpu.memory_space<vmem>>, %arg8: memref<1x1x32xf32, #tpu.memory_space<vmem>>, %arg9: memref<1x32x32xbf16, #tpu.memory_space<vmem>>, %arg10: memref<1x1x32xf32, #tpu.memory_space<vmem>>, %arg11: memref<1x32x32xbf16, #tpu.memory_space<vmem>>, %arg12: memref<1x1x32xf32, #tpu.memory_space<vmem>>, %arg13: memref<1x1x32xbf16, #tpu.memory_space<vmem>>, %arg14: memref<1x1x32xbf16, #tpu.memory_space<vmem>>, %arg15: memref<1x32x32xbf16, #tpu.memory_space<vmem>>, %arg16: memref<1x1x32xf32, #tpu.memory_space<vmem>>, %arg17: memref<1x1x32xf32, #tpu.memory_space<vmem>>, %arg18: memref<1x1x32xf32, #tpu.memory_space<vmem>>, %arg19: memref<1x32x128xbf16, #tpu.memory_space<vmem>>, %arg20: memref<1x1x128xf32, #tpu.memory_space<vmem>>, %arg21: memref<1x128x32xbf16, #tpu.memory_space<vmem>>, %arg22: memref<1x1x32xf32, #tpu.memory_space<vmem>>, %arg23: memref<1x1x32xf32, #tpu.memory_space<vmem>>, %arg24: memref<1x1x32xf32, #tpu.memory_space<vmem>>, %arg25: memref<2x8x32xf32, #tpu.memory_space<vmem>>, %arg26: memref<16x32xf32, #tpu.memory_space<vmem>>) attributes {dimension_semantics = [#tpu.dimension_semantics<parallel>, #tpu.dimension_semantics<arbitrary>], iteration_bounds = array<i64: 1, 2>, scalar_prefetch = 0 : i64, scratch_operands = 1 : i64, tpu.core_type = #tpu.core_type<tc>, window_params = [{transform_indices = @transform_0, window_bounds = array<i64: 2, 8, 32>}, {pipeline_mode = #tpu.pipeline_mode<synchronous>, transform_indices = @transform_1, window_bounds = array<i64: 8, 32>}, {pipeline_mode = #tpu.pipeline_mode<synchronous>, transform_indices = @transform_2, window_bounds = array<i64: 1, 32>}, {pipeline_mode = #tpu.pipeline_mode<synchronous>, transform_indices = @transform_3, window_bounds = array<i64: 1, 32>}, {transform_indices = @transform_4, window_bounds = array<i64: 2, 1, 8>}, {transform_indices = @transform_5, window_bounds = array<i64: 1, 32, 32>}, {transform_indices = @transform_6, window_bounds = array<i64: 1, 1, 32>}, {transform_indices = @transform_7, window_bounds = array<i64: 1, 32, 32>}, {transform_indices = @transform_8, window_bounds = array<i64: 1, 1, 32>}, {transform_indices = @transform_9, window_bounds = array<i64: 1, 32, 32>}, {transform_indices = @transform_10, window_bounds = array<i64: 1, 1, 32>}, {transform_indices = @transform_11, window_bounds = array<i64: 1, 1, 32>}, {transform_indices = @transform_12, window_bounds = array<i64: 1, 1, 32>}, {transform_indices = @transform_13, window_bounds = array<i64: 1, 32, 32>}, {transform_indices = @transform_14, window_bounds = array<i64: 1, 1, 32>}, {transform_indices = @transform_15, window_bounds = array<i64: 1, 1, 32>}, {transform_indices = @transform_16, window_bounds = array<i64: 1, 1, 32>}, {transform_indices = @transform_17, window_bounds = array<i64: 1, 32, 128>}, {transform_indices = @transform_18, window_bounds = array<i64: 1, 1, 128>}, {transform_indices = @transform_19, window_bounds = array<i64: 1, 128, 32>}, {transform_indices = @transform_20, window_bounds = array<i64: 1, 1, 32>}, {transform_indices = @transform_21, window_bounds = array<i64: 1, 1, 32>}, {transform_indices = @transform_22, window_bounds = array<i64: 1, 1, 32>}, {transform_indices = @transform_23, window_bounds = array<i64: 2, 8, 32>}]} {
    %c0_i32 = arith.constant 0 : i32
    %0 = arith.cmpi eq, %arg1, %c0_i32 : i32
    %1 = arith.extui %0 : i1 to i32
    %c0_i32_0 = arith.constant 0 : i32
    %2 = arith.cmpi ne, %1, %c0_i32_0 : i32
    scf.if %2 {
      %c0_120 = arith.constant 0 : index
      %c0_121 = arith.constant 0 : index
      %c0_122 = arith.constant 0 : index
      %336 = vector.load %arg2[%c0_120, %c0_121, %c0_122] : memref<2x8x32xf32, #tpu.memory_space<vmem>>, vector<2x8x32xf32>
      %c0_123 = arith.constant 0 : index
      %c0_124 = arith.constant 0 : index
      %337 = vector.load %arg3[%c0_123, %c0_124] : memref<8x32xf32, #tpu.memory_space<vmem>>, vector<8x32xf32>
      %338 = vector.shape_cast %337 : vector<8x32xf32> to vector<1x8x32xf32>
      %339 = vector.broadcast %338 : vector<1x8x32xf32> to vector<2x8x32xf32>
      %340 = arith.addf %336, %339 : vector<2x8x32xf32>
      %341 = vector.shape_cast %340 : vector<2x8x32xf32> to vector<16x32xf32>
      %c0_125 = arith.constant 0 : index
      %c0_126 = arith.constant 0 : index
      %342 = vector.load %arg4[%c0_125, %c0_126] : memref<1x32xf32, #tpu.memory_space<vmem>>, vector<1x32xf32>
      %c0_127 = arith.constant 0 : index
      %c0_128 = arith.constant 0 : index
      %343 = vector.load %arg5[%c0_127, %c0_128] : memref<1x32xf32, #tpu.memory_space<vmem>>, vector<1x32xf32>
      %cst_129 = arith.constant dense<0.000000e+00> : vector<16xf32>
      %344 = vector.multi_reduction <add>, %341, %cst_129 [1] : vector<16x32xf32> to vector<16xf32>
      %345 = vector.shape_cast %344 : vector<16xf32> to vector<16x1xf32>
      %cst_130 = arith.constant 3.200000e+01 : f32
      %346 = vector.broadcast %cst_130 : f32 to vector<16x1xf32>
      %347 = arith.divf %345, %346 : vector<16x1xf32>
      %348 = vector.broadcast %347 : vector<16x1xf32> to vector<16x32xf32>
      %349 = arith.subf %341, %348 : vector<16x32xf32>
      %350 = arith.mulf %349, %349 : vector<16x32xf32>
      %cst_131 = arith.constant dense<0.000000e+00> : vector<16xf32>
      %351 = vector.multi_reduction <add>, %350, %cst_131 [1] : vector<16x32xf32> to vector<16xf32>
      %352 = vector.shape_cast %351 : vector<16xf32> to vector<16x1xf32>
      %cst_132 = arith.constant 3.200000e+01 : f32
      %353 = vector.broadcast %cst_132 : f32 to vector<16x1xf32>
      %354 = arith.divf %352, %353 : vector<16x1xf32>
      %355 = vector.broadcast %347 : vector<16x1xf32> to vector<16x32xf32>
      %356 = arith.subf %341, %355 : vector<16x32xf32>
      %cst_133 = arith.constant 9.99999996E-13 : f32
      %357 = vector.broadcast %cst_133 : f32 to vector<16x1xf32>
      %358 = arith.addf %354, %357 : vector<16x1xf32>
      %359 = math.rsqrt %358 : vector<16x1xf32>
      %360 = vector.broadcast %359 : vector<16x1xf32> to vector<16x32xf32>
      %361 = arith.mulf %356, %360 : vector<16x32xf32>
      %362 = vector.broadcast %342 : vector<1x32xf32> to vector<16x32xf32>
      %363 = arith.mulf %361, %362 : vector<16x32xf32>
      %364 = vector.broadcast %343 : vector<1x32xf32> to vector<16x32xf32>
      %365 = arith.addf %363, %364 : vector<16x32xf32>
      %c0_134 = arith.constant 0 : index
      %c0_135 = arith.constant 0 : index
      %366 = vector.load %arg26[%c0_134, %c0_135] : memref<16x32xf32, #tpu.memory_space<vmem>>, vector<16x32xf32>
      tpu.vector_store %arg26[%c0_134, %c0_135], %365 {strides = array<i32>} : memref<16x32xf32, #tpu.memory_space<vmem>>, vector<16x32xf32>,
    } else {
    }
    %c0 = arith.constant 0 : index
    %c0_1 = arith.constant 0 : index
    %3 = vector.load %arg26[%c0, %c0_1] : memref<16x32xf32, #tpu.memory_space<vmem>>, vector<16x32xf32>
    %c0_2 = arith.constant 0 : index
    %c0_3 = arith.constant 0 : index
    %c0_4 = arith.constant 0 : index
    %4 = vector.load %arg6[%c0_2, %c0_3, %c0_4] : memref<2x1x8xf32, #tpu.memory_space<vmem>>, vector<2x1x8xf32>
    %5 = vector.shape_cast %4 : vector<2x1x8xf32> to vector<2x1x8xf32>
    %6 = vector.broadcast %5 : vector<2x1x8xf32> to vector<2x8x8xf32>
    %7 = arith.truncf %3 : vector<16x32xf32> to vector<16x32xbf16>
    %c0_5 = arith.constant 0 : index
    %c0_6 = arith.constant 0 : index
    %c0_7 = arith.constant 0 : index
    %8 = vector.load %arg7[%c0_5, %c0_6, %c0_7] : memref<1x32x32xbf16, #tpu.memory_space<vmem>>, vector<1x32x32xbf16>
    %9 = vector.shape_cast %8 : vector<1x32x32xbf16> to vector<32x32xbf16>
    %cst = arith.constant dense<0.000000e+00> : vector<16x32xf32>
    %10 = tpu.matmul %7, %9, %cst {dimension_numbers = #tpu.dot_dimension_numbers<[1], [0], [0], [1], [0, 0, 1, 1], [], []>} : vector<16x32xbf16>, vector<32x32xbf16>, vector<16x32xf32> -> vector<16x32xf32>
    %c0_8 = arith.constant 0 : index
    %c0_9 = arith.constant 0 : index
    %c0_10 = arith.constant 0 : index
    %11 = vector.load %arg8[%c0_8, %c0_9, %c0_10] : memref<1x1x32xf32, #tpu.memory_space<vmem>>, vector<1x1x32xf32>
    %12 = vector.shape_cast %11 : vector<1x1x32xf32> to vector<1x32xf32>
    %13 = vector.broadcast %12 : vector<1x32xf32> to vector<16x32xf32>
    %14 = arith.addf %10, %13 : vector<16x32xf32>
    %c0_11 = arith.constant 0 : index
    %c0_12 = arith.constant 0 : index
    %c0_13 = arith.constant 0 : index
    %15 = vector.load %arg9[%c0_11, %c0_12, %c0_13] : memref<1x32x32xbf16, #tpu.memory_space<vmem>>, vector<1x32x32xbf16>
    %16 = vector.shape_cast %15 : vector<1x32x32xbf16> to vector<32x32xbf16>
    %cst_14 = arith.constant dense<0.000000e+00> : vector<16x32xf32>
    %17 = tpu.matmul %7, %16, %cst_14 {dimension_numbers = #tpu.dot_dimension_numbers<[1], [0], [0], [1], [0, 0, 1, 1], [], []>} : vector<16x32xbf16>, vector<32x32xbf16>, vector<16x32xf32> -> vector<16x32xf32>
    %c0_15 = arith.constant 0 : index
    %c0_16 = arith.constant 0 : index
    %c0_17 = arith.constant 0 : index
    %18 = vector.load %arg10[%c0_15, %c0_16, %c0_17] : memref<1x1x32xf32, #tpu.memory_space<vmem>>, vector<1x1x32xf32>
    %19 = vector.shape_cast %18 : vector<1x1x32xf32> to vector<1x32xf32>
    %20 = vector.broadcast %19 : vector<1x32xf32> to vector<16x32xf32>
    %21 = arith.addf %17, %20 : vector<16x32xf32>
    %c0_18 = arith.constant 0 : index
    %c0_19 = arith.constant 0 : index
    %c0_20 = arith.constant 0 : index
    %22 = vector.load %arg11[%c0_18, %c0_19, %c0_20] : memref<1x32x32xbf16, #tpu.memory_space<vmem>>, vector<1x32x32xbf16>
    %23 = vector.shape_cast %22 : vector<1x32x32xbf16> to vector<32x32xbf16>
    %cst_21 = arith.constant dense<0.000000e+00> : vector<16x32xf32>
    %24 = tpu.matmul %7, %23, %cst_21 {dimension_numbers = #tpu.dot_dimension_numbers<[1], [0], [0], [1], [0, 0, 1, 1], [], []>} : vector<16x32xbf16>, vector<32x32xbf16>, vector<16x32xf32> -> vector<16x32xf32>
    %c0_22 = arith.constant 0 : index
    %c0_23 = arith.constant 0 : index
    %c0_24 = arith.constant 0 : index
    %25 = vector.load %arg12[%c0_22, %c0_23, %c0_24] : memref<1x1x32xf32, #tpu.memory_space<vmem>>, vector<1x1x32xf32>
    %26 = vector.shape_cast %25 : vector<1x1x32xf32> to vector<1x32xf32>
    %27 = vector.broadcast %26 : vector<1x32xf32> to vector<16x32xf32>
    %28 = arith.addf %24, %27 : vector<16x32xf32>
    %29 = vector.shape_cast %14 : vector<16x32xf32> to vector<2x8x32xf32>
    %30 = arith.truncf %29 : vector<2x8x32xf32> to vector<2x8x32xbf16>
    %31 = vector.shape_cast %21 : vector<16x32xf32> to vector<2x8x32xf32>
    %32 = arith.truncf %31 : vector<2x8x32xf32> to vector<2x8x32xbf16>
    %33 = vector.shape_cast %28 : vector<16x32xf32> to vector<2x8x32xf32>
    %34 = arith.truncf %33 : vector<2x8x32xf32> to vector<2x8x32xbf16>
    %c0_25 = arith.constant 0 : index
    %c0_26 = arith.constant 0 : index
    %c0_27 = arith.constant 0 : index
    %35 = vector.load %arg13[%c0_25, %c0_26, %c0_27] : memref<1x1x32xbf16, #tpu.memory_space<vmem>>, vector<1x1x32xbf16>
    %36 = vector.shape_cast %35 : vector<1x1x32xbf16> to vector<1x32xbf16>
    %37 = arith.extf %36 : vector<1x32xbf16> to vector<1x32xf32>
    %c0_28 = arith.constant 0 : index
    %c0_29 = arith.constant 0 : index
    %c0_30 = arith.constant 0 : index
    %38 = vector.load %arg14[%c0_28, %c0_29, %c0_30] : memref<1x1x32xbf16, #tpu.memory_space<vmem>>, vector<1x1x32xbf16>
    %39 = vector.shape_cast %38 : vector<1x1x32xbf16> to vector<1x32xbf16>
    %40 = arith.extf %39 : vector<1x32xbf16> to vector<1x32xf32>
    %c0_31 = arith.constant 0 : index
    %c0_32 = arith.constant 0 : index
    %c0_33 = arith.constant 0 : index
    %41 = vector.load %arg15[%c0_31, %c0_32, %c0_33] : memref<1x32x32xbf16, #tpu.memory_space<vmem>>, vector<1x32x32xbf16>
    %42 = vector.shape_cast %41 : vector<1x32x32xbf16> to vector<32x32xbf16>
    %c0_34 = arith.constant 0 : index
    %c0_35 = arith.constant 0 : index
    %c0_36 = arith.constant 0 : index
    %43 = vector.load %arg16[%c0_34, %c0_35, %c0_36] : memref<1x1x32xf32, #tpu.memory_space<vmem>>, vector<1x1x32xf32>
    %44 = vector.shape_cast %43 : vector<1x1x32xf32> to vector<1x32xf32>
    %45 = vector.extract_strided_slice %30 {offsets = [0, 0, 0], sizes = [2, 8, 8], strides = [1, 1, 1]} : vector<2x8x32xbf16> to vector<2x8x8xbf16>
    %46 = vector.extract_strided_slice %32 {offsets = [0, 0, 0], sizes = [2, 8, 8], strides = [1, 1, 1]} : vector<2x8x32xbf16> to vector<2x8x8xbf16>
    %47 = vector.extract_strided_slice %34 {offsets = [0, 0, 0], sizes = [2, 8, 8], strides = [1, 1, 1]} : vector<2x8x32xbf16> to vector<2x8x8xbf16>
    "tpu.trace_start"() <{level = 10 : i32, message = "bqd,bkd->bqk"}> : () -> ()
    %cst_37 = arith.constant dense<0.000000e+00> : vector<2x8x8xf32>
    %48 = tpu.matmul %45, %46, %cst_37 {dimension_numbers = #tpu.dot_dimension_numbers<[2], [2], [1], [1], [0, 0, 0, 1, 1, 1], [0], [0]>} : vector<2x8x8xbf16>, vector<2x8x8xbf16>, vector<2x8x8xf32> -> vector<2x8x8xf32>
    "tpu.trace_stop"() : () -> ()
    %49 = arith.addf %48, %6 : vector<2x8x8xf32>
    %50 = arith.extf %45 : vector<2x8x8xbf16> to vector<2x8x8xf32>
    %51 = vector.extract_strided_slice %37 {offsets = [0, 0], sizes = [1, 8], strides = [1, 1]} : vector<1x32xf32> to vector<1x8xf32>
    %52 = vector.shape_cast %51 : vector<1x8xf32> to vector<1x1x8xf32>
    %53 = vector.broadcast %52 : vector<1x1x8xf32> to vector<2x8x8xf32>
    %54 = arith.mulf %50, %53 : vector<2x8x8xf32>
    %cst_38 = arith.constant dense<0.000000e+00> : vector<2x8xf32>
    %55 = vector.multi_reduction <add>, %54, %cst_38 [2] : vector<2x8x8xf32> to vector<2x8xf32>
    %56 = vector.shape_cast %55 : vector<2x8xf32> to vector<2x8x1xf32>
    %cst_39 = arith.constant dense<0xFF800000> : vector<2x8xf32>
    %57 = vector.multi_reduction <maximumf>, %49, %cst_39 [2] : vector<2x8x8xf32> to vector<2x8xf32>
    %58 = vector.shape_cast %57 : vector<2x8xf32> to vector<2x8x1xf32>
    %59 = arith.maximumf %58, %56 : vector<2x8x1xf32>
    %60 = vector.broadcast %59 : vector<2x8x1xf32> to vector<2x8x8xf32>
    %61 = arith.subf %49, %60 : vector<2x8x8xf32>
    %62 = math.exp %61 : vector<2x8x8xf32>
    %63 = arith.subf %56, %59 : vector<2x8x1xf32>
    %64 = math.exp %63 : vector<2x8x1xf32>
    %cst_40 = arith.constant dense<0.000000e+00> : vector<2x8xf32>
    %65 = vector.multi_reduction <add>, %62, %cst_40 [2] : vector<2x8x8xf32> to vector<2x8xf32>
    %66 = vector.shape_cast %65 : vector<2x8xf32> to vector<2x8x1xf32>
    %67 = arith.addf %66, %64 : vector<2x8x1xf32>
    %68 = tpu.reciprocal %67 {approx = true} : vector<2x8x1xf32> -> vector<2x8x1xf32>
    %69 = arith.mulf %67, %68 : vector<2x8x1xf32>
    %cst_41 = arith.constant 2.000000e+00 : f32
    %70 = vector.broadcast %cst_41 : f32 to vector<2x8x1xf32>
    %71 = arith.subf %70, %69 : vector<2x8x1xf32>
    %72 = arith.mulf %68, %71 : vector<2x8x1xf32>
    %73 = arith.truncf %62 : vector<2x8x8xf32> to vector<2x8x8xbf16>
    "tpu.trace_start"() <{level = 10 : i32, message = "bqk,bkd->bqd"}> : () -> ()
    %cst_42 = arith.constant dense<0.000000e+00> : vector<2x8x8xf32>
    %74 = tpu.matmul %73, %47, %cst_42 {dimension_numbers = #tpu.dot_dimension_numbers<[2], [1], [1], [2], [0, 0, 0, 1, 1, 2], [0], [0]>} : vector<2x8x8xbf16>, vector<2x8x8xbf16>, vector<2x8x8xf32> -> vector<2x8x8xf32>
    "tpu.trace_stop"() : () -> ()
    %75 = vector.extract_strided_slice %40 {offsets = [0, 0], sizes = [1, 8], strides = [1, 1]} : vector<1x32xf32> to vector<1x8xf32>
    %76 = vector.shape_cast %75 : vector<1x8xf32> to vector<1x1x8xf32>
    %77 = vector.broadcast %64 : vector<2x8x1xf32> to vector<2x8x8xf32>
    %78 = vector.broadcast %76 : vector<1x1x8xf32> to vector<2x8x8xf32>
    %79 = arith.mulf %77, %78 : vector<2x8x8xf32>
    %80 = arith.addf %74, %79 : vector<2x8x8xf32>
    %81 = vector.broadcast %72 : vector<2x8x1xf32> to vector<2x8x8xf32>
    %82 = arith.mulf %80, %81 : vector<2x8x8xf32>
    %83 = vector.shape_cast %82 : vector<2x8x8xf32> to vector<16x8xf32>
    %84 = arith.truncf %83 : vector<16x8xf32> to vector<16x8xbf16>
    %85 = vector.extract_strided_slice %42 {offsets = [0, 0], sizes = [8, 32], strides = [1, 1]} : vector<32x32xbf16> to vector<8x32xbf16>
    %cst_43 = arith.constant dense<0.000000e+00> : vector<16x32xf32>
    %86 = tpu.matmul %84, %85, %cst_43 {dimension_numbers = #tpu.dot_dimension_numbers<[1], [0], [0], [1], [0, 0, 1, 1], [], []>} : vector<16x8xbf16>, vector<8x32xbf16>, vector<16x32xf32> -> vector<16x32xf32>
    %87 = vector.broadcast %44 : vector<1x32xf32> to vector<16x32xf32>
    %88 = arith.addf %87, %86 : vector<16x32xf32>
    %89 = vector.extract_strided_slice %30 {offsets = [0, 0, 8], sizes = [2, 8, 8], strides = [1, 1, 1]} : vector<2x8x32xbf16> to vector<2x8x8xbf16>
    %90 = vector.extract_strided_slice %32 {offsets = [0, 0, 8], sizes = [2, 8, 8], strides = [1, 1, 1]} : vector<2x8x32xbf16> to vector<2x8x8xbf16>
    %91 = vector.extract_strided_slice %34 {offsets = [0, 0, 8], sizes = [2, 8, 8], strides = [1, 1, 1]} : vector<2x8x32xbf16> to vector<2x8x8xbf16>
    "tpu.trace_start"() <{level = 10 : i32, message = "bqd,bkd->bqk"}> : () -> ()
    %cst_44 = arith.constant dense<0.000000e+00> : vector<2x8x8xf32>
    %92 = tpu.matmul %89, %90, %cst_44 {dimension_numbers = #tpu.dot_dimension_numbers<[2], [2], [1], [1], [0, 0, 0, 1, 1, 1], [0], [0]>} : vector<2x8x8xbf16>, vector<2x8x8xbf16>, vector<2x8x8xf32> -> vector<2x8x8xf32>
    "tpu.trace_stop"() : () -> ()
    %93 = arith.addf %92, %6 : vector<2x8x8xf32>
    %94 = arith.extf %89 : vector<2x8x8xbf16> to vector<2x8x8xf32>
    %95 = vector.extract_strided_slice %37 {offsets = [0, 8], sizes = [1, 8], strides = [1, 1]} : vector<1x32xf32> to vector<1x8xf32>
    %96 = vector.shape_cast %95 : vector<1x8xf32> to vector<1x1x8xf32>
    %97 = vector.broadcast %96 : vector<1x1x8xf32> to vector<2x8x8xf32>
    %98 = arith.mulf %94, %97 : vector<2x8x8xf32>
    %cst_45 = arith.constant dense<0.000000e+00> : vector<2x8xf32>
    %99 = vector.multi_reduction <add>, %98, %cst_45 [2] : vector<2x8x8xf32> to vector<2x8xf32>
    %100 = vector.shape_cast %99 : vector<2x8xf32> to vector<2x8x1xf32>
    %cst_46 = arith.constant dense<0xFF800000> : vector<2x8xf32>
    %101 = vector.multi_reduction <maximumf>, %93, %cst_46 [2] : vector<2x8x8xf32> to vector<2x8xf32>
    %102 = vector.shape_cast %101 : vector<2x8xf32> to vector<2x8x1xf32>
    %103 = arith.maximumf %102, %100 : vector<2x8x1xf32>
    %104 = vector.broadcast %103 : vector<2x8x1xf32> to vector<2x8x8xf32>
    %105 = arith.subf %93, %104 : vector<2x8x8xf32>
    %106 = math.exp %105 : vector<2x8x8xf32>
    %107 = arith.subf %100, %103 : vector<2x8x1xf32>
    %108 = math.exp %107 : vector<2x8x1xf32>
    %cst_47 = arith.constant dense<0.000000e+00> : vector<2x8xf32>
    %109 = vector.multi_reduction <add>, %106, %cst_47 [2] : vector<2x8x8xf32> to vector<2x8xf32>
    %110 = vector.shape_cast %109 : vector<2x8xf32> to vector<2x8x1xf32>
    %111 = arith.addf %110, %108 : vector<2x8x1xf32>
    %112 = tpu.reciprocal %111 {approx = true} : vector<2x8x1xf32> -> vector<2x8x1xf32>
    %113 = arith.mulf %111, %112 : vector<2x8x1xf32>
    %cst_48 = arith.constant 2.000000e+00 : f32
    %114 = vector.broadcast %cst_48 : f32 to vector<2x8x1xf32>
    %115 = arith.subf %114, %113 : vector<2x8x1xf32>
    %116 = arith.mulf %112, %115 : vector<2x8x1xf32>
    %117 = arith.truncf %106 : vector<2x8x8xf32> to vector<2x8x8xbf16>
    "tpu.trace_start"() <{level = 10 : i32, message = "bqk,bkd->bqd"}> : () -> ()
    %cst_49 = arith.constant dense<0.000000e+00> : vector<2x8x8xf32>
    %118 = tpu.matmul %117, %91, %cst_49 {dimension_numbers = #tpu.dot_dimension_numbers<[2], [1], [1], [2], [0, 0, 0, 1, 1, 2], [0], [0]>} : vector<2x8x8xbf16>, vector<2x8x8xbf16>, vector<2x8x8xf32> -> vector<2x8x8xf32>
    "tpu.trace_stop"() : () -> ()
    %119 = vector.extract_strided_slice %40 {offsets = [0, 8], sizes = [1, 8], strides = [1, 1]} : vector<1x32xf32> to vector<1x8xf32>
    %120 = vector.shape_cast %119 : vector<1x8xf32> to vector<1x1x8xf32>
    %121 = vector.broadcast %108 : vector<2x8x1xf32> to vector<2x8x8xf32>
    %122 = vector.broadcast %120 : vector<1x1x8xf32> to vector<2x8x8xf32>
    %123 = arith.mulf %121, %122 : vector<2x8x8xf32>
    %124 = arith.addf %118, %123 : vector<2x8x8xf32>
    %125 = vector.broadcast %116 : vector<2x8x1xf32> to vector<2x8x8xf32>
    %126 = arith.mulf %124, %125 : vector<2x8x8xf32>
    %127 = vector.shape_cast %126 : vector<2x8x8xf32> to vector<16x8xf32>
    %128 = arith.truncf %127 : vector<16x8xf32> to vector<16x8xbf16>
    %129 = vector.extract_strided_slice %42 {offsets = [8, 0], sizes = [8, 32], strides = [1, 1]} : vector<32x32xbf16> to vector<8x32xbf16>
    %cst_50 = arith.constant dense<0.000000e+00> : vector<16x32xf32>
    %130 = tpu.matmul %128, %129, %cst_50 {dimension_numbers = #tpu.dot_dimension_numbers<[1], [0], [0], [1], [0, 0, 1, 1], [], []>} : vector<16x8xbf16>, vector<8x32xbf16>, vector<16x32xf32> -> vector<16x32xf32>
    %131 = arith.addf %88, %130 : vector<16x32xf32>
    %132 = vector.extract_strided_slice %30 {offsets = [0, 0, 16], sizes = [2, 8, 8], strides = [1, 1, 1]} : vector<2x8x32xbf16> to vector<2x8x8xbf16>
    %133 = vector.extract_strided_slice %32 {offsets = [0, 0, 16], sizes = [2, 8, 8], strides = [1, 1, 1]} : vector<2x8x32xbf16> to vector<2x8x8xbf16>
    %134 = vector.extract_strided_slice %34 {offsets = [0, 0, 16], sizes = [2, 8, 8], strides = [1, 1, 1]} : vector<2x8x32xbf16> to vector<2x8x8xbf16>
    "tpu.trace_start"() <{level = 10 : i32, message = "bqd,bkd->bqk"}> : () -> ()
    %cst_51 = arith.constant dense<0.000000e+00> : vector<2x8x8xf32>
    %135 = tpu.matmul %132, %133, %cst_51 {dimension_numbers = #tpu.dot_dimension_numbers<[2], [2], [1], [1], [0, 0, 0, 1, 1, 1], [0], [0]>} : vector<2x8x8xbf16>, vector<2x8x8xbf16>, vector<2x8x8xf32> -> vector<2x8x8xf32>
    "tpu.trace_stop"() : () -> ()
    %136 = arith.addf %135, %6 : vector<2x8x8xf32>
    %137 = arith.extf %132 : vector<2x8x8xbf16> to vector<2x8x8xf32>
    %138 = vector.extract_strided_slice %37 {offsets = [0, 16], sizes = [1, 8], strides = [1, 1]} : vector<1x32xf32> to vector<1x8xf32>
    %139 = vector.shape_cast %138 : vector<1x8xf32> to vector<1x1x8xf32>
    %140 = vector.broadcast %139 : vector<1x1x8xf32> to vector<2x8x8xf32>
    %141 = arith.mulf %137, %140 : vector<2x8x8xf32>
    %cst_52 = arith.constant dense<0.000000e+00> : vector<2x8xf32>
    %142 = vector.multi_reduction <add>, %141, %cst_52 [2] : vector<2x8x8xf32> to vector<2x8xf32>
    %143 = vector.shape_cast %142 : vector<2x8xf32> to vector<2x8x1xf32>
    %cst_53 = arith.constant dense<0xFF800000> : vector<2x8xf32>
    %144 = vector.multi_reduction <maximumf>, %136, %cst_53 [2] : vector<2x8x8xf32> to vector<2x8xf32>
    %145 = vector.shape_cast %144 : vector<2x8xf32> to vector<2x8x1xf32>
    %146 = arith.maximumf %145, %143 : vector<2x8x1xf32>
    %147 = vector.broadcast %146 : vector<2x8x1xf32> to vector<2x8x8xf32>
    %148 = arith.subf %136, %147 : vector<2x8x8xf32>
    %149 = math.exp %148 : vector<2x8x8xf32>
    %150 = arith.subf %143, %146 : vector<2x8x1xf32>
    %151 = math.exp %150 : vector<2x8x1xf32>
    %cst_54 = arith.constant dense<0.000000e+00> : vector<2x8xf32>
    %152 = vector.multi_reduction <add>, %149, %cst_54 [2] : vector<2x8x8xf32> to vector<2x8xf32>
    %153 = vector.shape_cast %152 : vector<2x8xf32> to vector<2x8x1xf32>
    %154 = arith.addf %153, %151 : vector<2x8x1xf32>
    %155 = tpu.reciprocal %154 {approx = true} : vector<2x8x1xf32> -> vector<2x8x1xf32>
    %156 = arith.mulf %154, %155 : vector<2x8x1xf32>
    %cst_55 = arith.constant 2.000000e+00 : f32
    %157 = vector.broadcast %cst_55 : f32 to vector<2x8x1xf32>
    %158 = arith.subf %157, %156 : vector<2x8x1xf32>
    %159 = arith.mulf %155, %158 : vector<2x8x1xf32>
    %160 = arith.truncf %149 : vector<2x8x8xf32> to vector<2x8x8xbf16>
    "tpu.trace_start"() <{level = 10 : i32, message = "bqk,bkd->bqd"}> : () -> ()
    %cst_56 = arith.constant dense<0.000000e+00> : vector<2x8x8xf32>
    %161 = tpu.matmul %160, %134, %cst_56 {dimension_numbers = #tpu.dot_dimension_numbers<[2], [1], [1], [2], [0, 0, 0, 1, 1, 2], [0], [0]>} : vector<2x8x8xbf16>, vector<2x8x8xbf16>, vector<2x8x8xf32> -> vector<2x8x8xf32>
    "tpu.trace_stop"() : () -> ()
    %162 = vector.extract_strided_slice %40 {offsets = [0, 16], sizes = [1, 8], strides = [1, 1]} : vector<1x32xf32> to vector<1x8xf32>
    %163 = vector.shape_cast %162 : vector<1x8xf32> to vector<1x1x8xf32>
    %164 = vector.broadcast %151 : vector<2x8x1xf32> to vector<2x8x8xf32>
    %165 = vector.broadcast %163 : vector<1x1x8xf32> to vector<2x8x8xf32>
    %166 = arith.mulf %164, %165 : vector<2x8x8xf32>
    %167 = arith.addf %161, %166 : vector<2x8x8xf32>
    %168 = vector.broadcast %159 : vector<2x8x1xf32> to vector<2x8x8xf32>
    %169 = arith.mulf %167, %168 : vector<2x8x8xf32>
    %170 = vector.shape_cast %169 : vector<2x8x8xf32> to vector<16x8xf32>
    %171 = arith.truncf %170 : vector<16x8xf32> to vector<16x8xbf16>
    %172 = vector.extract_strided_slice %42 {offsets = [16, 0], sizes = [8, 32], strides = [1, 1]} : vector<32x32xbf16> to vector<8x32xbf16>
    %cst_57 = arith.constant dense<0.000000e+00> : vector<16x32xf32>
    %173 = tpu.matmul %171, %172, %cst_57 {dimension_numbers = #tpu.dot_dimension_numbers<[1], [0], [0], [1], [0, 0, 1, 1], [], []>} : vector<16x8xbf16>, vector<8x32xbf16>, vector<16x32xf32> -> vector<16x32xf32>
    %174 = arith.addf %131, %173 : vector<16x32xf32>
    %175 = vector.extract_strided_slice %30 {offsets = [0, 0, 24], sizes = [2, 8, 8], strides = [1, 1, 1]} : vector<2x8x32xbf16> to vector<2x8x8xbf16>
    %176 = vector.extract_strided_slice %32 {offsets = [0, 0, 24], sizes = [2, 8, 8], strides = [1, 1, 1]} : vector<2x8x32xbf16> to vector<2x8x8xbf16>
    %177 = vector.extract_strided_slice %34 {offsets = [0, 0, 24], sizes = [2, 8, 8], strides = [1, 1, 1]} : vector<2x8x32xbf16> to vector<2x8x8xbf16>
    "tpu.trace_start"() <{level = 10 : i32, message = "bqd,bkd->bqk"}> : () -> ()
    %cst_58 = arith.constant dense<0.000000e+00> : vector<2x8x8xf32>
    %178 = tpu.matmul %175, %176, %cst_58 {dimension_numbers = #tpu.dot_dimension_numbers<[2], [2], [1], [1], [0, 0, 0, 1, 1, 1], [0], [0]>} : vector<2x8x8xbf16>, vector<2x8x8xbf16>, vector<2x8x8xf32> -> vector<2x8x8xf32>
    "tpu.trace_stop"() : () -> ()
    %179 = arith.addf %178, %6 : vector<2x8x8xf32>
    %180 = arith.extf %175 : vector<2x8x8xbf16> to vector<2x8x8xf32>
    %181 = vector.extract_strided_slice %37 {offsets = [0, 24], sizes = [1, 8], strides = [1, 1]} : vector<1x32xf32> to vector<1x8xf32>
    %182 = vector.shape_cast %181 : vector<1x8xf32> to vector<1x1x8xf32>
    %183 = vector.broadcast %182 : vector<1x1x8xf32> to vector<2x8x8xf32>
    %184 = arith.mulf %180, %183 : vector<2x8x8xf32>
    %cst_59 = arith.constant dense<0.000000e+00> : vector<2x8xf32>
    %185 = vector.multi_reduction <add>, %184, %cst_59 [2] : vector<2x8x8xf32> to vector<2x8xf32>
    %186 = vector.shape_cast %185 : vector<2x8xf32> to vector<2x8x1xf32>
    %cst_60 = arith.constant dense<0xFF800000> : vector<2x8xf32>
    %187 = vector.multi_reduction <maximumf>, %179, %cst_60 [2] : vector<2x8x8xf32> to vector<2x8xf32>
    %188 = vector.shape_cast %187 : vector<2x8xf32> to vector<2x8x1xf32>
    %189 = arith.maximumf %188, %186 : vector<2x8x1xf32>
    %190 = vector.broadcast %189 : vector<2x8x1xf32> to vector<2x8x8xf32>
    %191 = arith.subf %179, %190 : vector<2x8x8xf32>
    %192 = math.exp %191 : vector<2x8x8xf32>
    %193 = arith.subf %186, %189 : vector<2x8x1xf32>
    %194 = math.exp %193 : vector<2x8x1xf32>
    %cst_61 = arith.constant dense<0.000000e+00> : vector<2x8xf32>
    %195 = vector.multi_reduction <add>, %192, %cst_61 [2] : vector<2x8x8xf32> to vector<2x8xf32>
    %196 = vector.shape_cast %195 : vector<2x8xf32> to vector<2x8x1xf32>
    %197 = arith.addf %196, %194 : vector<2x8x1xf32>
    %198 = tpu.reciprocal %197 {approx = true} : vector<2x8x1xf32> -> vector<2x8x1xf32>
    %199 = arith.mulf %197, %198 : vector<2x8x1xf32>
    %cst_62 = arith.constant 2.000000e+00 : f32
    %200 = vector.broadcast %cst_62 : f32 to vector<2x8x1xf32>
    %201 = arith.subf %200, %199 : vector<2x8x1xf32>
    %202 = arith.mulf %198, %201 : vector<2x8x1xf32>
    %203 = arith.truncf %192 : vector<2x8x8xf32> to vector<2x8x8xbf16>
    "tpu.trace_start"() <{level = 10 : i32, message = "bqk,bkd->bqd"}> : () -> ()
    %cst_63 = arith.constant dense<0.000000e+00> : vector<2x8x8xf32>
    %204 = tpu.matmul %203, %177, %cst_63 {dimension_numbers = #tpu.dot_dimension_numbers<[2], [1], [1], [2], [0, 0, 0, 1, 1, 2], [0], [0]>} : vector<2x8x8xbf16>, vector<2x8x8xbf16>, vector<2x8x8xf32> -> vector<2x8x8xf32>
    "tpu.trace_stop"() : () -> ()
    %205 = vector.extract_strided_slice %40 {offsets = [0, 24], sizes = [1, 8], strides = [1, 1]} : vector<1x32xf32> to vector<1x8xf32>
    %206 = vector.shape_cast %205 : vector<1x8xf32> to vector<1x1x8xf32>
    %207 = vector.broadcast %194 : vector<2x8x1xf32> to vector<2x8x8xf32>
    %208 = vector.broadcast %206 : vector<1x1x8xf32> to vector<2x8x8xf32>
    %209 = arith.mulf %207, %208 : vector<2x8x8xf32>
    %210 = arith.addf %204, %209 : vector<2x8x8xf32>
    %211 = vector.broadcast %202 : vector<2x8x1xf32> to vector<2x8x8xf32>
    %212 = arith.mulf %210, %211 : vector<2x8x8xf32>
    %213 = vector.shape_cast %212 : vector<2x8x8xf32> to vector<16x8xf32>
    %214 = arith.truncf %213 : vector<16x8xf32> to vector<16x8xbf16>
    %215 = vector.extract_strided_slice %42 {offsets = [24, 0], sizes = [8, 32], strides = [1, 1]} : vector<32x32xbf16> to vector<8x32xbf16>
    %cst_64 = arith.constant dense<0.000000e+00> : vector<16x32xf32>
    %216 = tpu.matmul %214, %215, %cst_64 {dimension_numbers = #tpu.dot_dimension_numbers<[1], [0], [0], [1], [0, 0, 1, 1], [], []>} : vector<16x8xbf16>, vector<8x32xbf16>, vector<16x32xf32> -> vector<16x32xf32>
    %217 = arith.addf %174, %216 : vector<16x32xf32>
    %c0_65 = arith.constant 0 : index
    %c0_66 = arith.constant 0 : index
    %c0_67 = arith.constant 0 : index
    %218 = vector.load %arg17[%c0_65, %c0_66, %c0_67] : memref<1x1x32xf32, #tpu.memory_space<vmem>>, vector<1x1x32xf32>
    %219 = vector.shape_cast %218 : vector<1x1x32xf32> to vector<1x32xf32>
    %c0_68 = arith.constant 0 : index
    %c0_69 = arith.constant 0 : index
    %c0_70 = arith.constant 0 : index
    %220 = vector.load %arg18[%c0_68, %c0_69, %c0_70] : memref<1x1x32xf32, #tpu.memory_space<vmem>>, vector<1x1x32xf32>
    %221 = vector.shape_cast %220 : vector<1x1x32xf32> to vector<1x32xf32>
    %cst_71 = arith.constant dense<0.000000e+00> : vector<16xf32>
    %222 = vector.multi_reduction <add>, %217, %cst_71 [1] : vector<16x32xf32> to vector<16xf32>
    %223 = vector.shape_cast %222 : vector<16xf32> to vector<16x1xf32>
    %cst_72 = arith.constant 3.200000e+01 : f32
    %224 = vector.broadcast %cst_72 : f32 to vector<16x1xf32>
    %225 = arith.divf %223, %224 : vector<16x1xf32>
    %226 = vector.broadcast %225 : vector<16x1xf32> to vector<16x32xf32>
    %227 = arith.subf %217, %226 : vector<16x32xf32>
    %228 = arith.mulf %227, %227 : vector<16x32xf32>
    %cst_73 = arith.constant dense<0.000000e+00> : vector<16xf32>
    %229 = vector.multi_reduction <add>, %228, %cst_73 [1] : vector<16x32xf32> to vector<16xf32>
    %230 = vector.shape_cast %229 : vector<16xf32> to vector<16x1xf32>
    %cst_74 = arith.constant 3.200000e+01 : f32
    %231 = vector.broadcast %cst_74 : f32 to vector<16x1xf32>
    %232 = arith.divf %230, %231 : vector<16x1xf32>
    %233 = vector.broadcast %225 : vector<16x1xf32> to vector<16x32xf32>
    %234 = arith.subf %217, %233 : vector<16x32xf32>
    %cst_75 = arith.constant 9.99999996E-13 : f32
    %235 = vector.broadcast %cst_75 : f32 to vector<16x1xf32>
    %236 = arith.addf %232, %235 : vector<16x1xf32>
    %237 = math.rsqrt %236 : vector<16x1xf32>
    %238 = vector.broadcast %237 : vector<16x1xf32> to vector<16x32xf32>
    %239 = arith.mulf %234, %238 : vector<16x32xf32>
    %240 = vector.broadcast %219 : vector<1x32xf32> to vector<16x32xf32>
    %241 = arith.mulf %239, %240 : vector<16x32xf32>
    %242 = vector.broadcast %221 : vector<1x32xf32> to vector<16x32xf32>
    %243 = arith.addf %241, %242 : vector<16x32xf32>
    %244 = arith.addf %3, %243 : vector<16x32xf32>
    %245 = arith.truncf %244 : vector<16x32xf32> to vector<16x32xbf16>
    %c0_76 = arith.constant 0 : index
    %c0_77 = arith.constant 0 : index
    %c0_78 = arith.constant 0 : index
    %246 = vector.load %arg19[%c0_76, %c0_77, %c0_78] : memref<1x32x128xbf16, #tpu.memory_space<vmem>>, vector<1x32x128xbf16>
    %247 = vector.shape_cast %246 : vector<1x32x128xbf16> to vector<32x128xbf16>
    %cst_79 = arith.constant dense<0.000000e+00> : vector<16x128xf32>
    %248 = tpu.matmul %245, %247, %cst_79 {dimension_numbers = #tpu.dot_dimension_numbers<[1], [0], [0], [1], [0, 0, 1, 1], [], []>} : vector<16x32xbf16>, vector<32x128xbf16>, vector<16x128xf32> -> vector<16x128xf32>
    %c0_80 = arith.constant 0 : index
    %c0_81 = arith.constant 0 : index
    %c0_82 = arith.constant 0 : index
    %249 = vector.load %arg20[%c0_80, %c0_81, %c0_82] : memref<1x1x128xf32, #tpu.memory_space<vmem>>, vector<1x1x128xf32>
    %250 = vector.shape_cast %249 : vector<1x1x128xf32> to vector<1x128xf32>
    %251 = vector.broadcast %250 : vector<1x128xf32> to vector<16x128xf32>
    %252 = arith.addf %248, %251 : vector<16x128xf32>
    %cst_83 = arith.constant 5.000000e-01 : f32
    %253 = vector.broadcast %cst_83 : f32 to vector<16x128xf32>
    %254 = arith.mulf %253, %252 : vector<16x128xf32>
    %cst_84 = arith.constant 0.707106769 : f32
    %255 = vector.broadcast %cst_84 : f32 to vector<16x128xf32>
    %256 = arith.mulf %252, %255 : vector<16x128xf32>
    %cst_85 = arith.constant 0.000000e+00 : f32
    %257 = vector.broadcast %cst_85 : f32 to vector<16x128xf32>
    %258 = arith.cmpf oge, %256, %257 : vector<16x128xf32>
    %cst_86 = arith.constant 1.000000e+00 : f32
    %cst_87 = arith.constant -1.000000e+00 : f32
    %259 = vector.broadcast %cst_86 : f32 to vector<16x128xf32>
    %260 = vector.broadcast %cst_87 : f32 to vector<16x128xf32>
    %261 = arith.select %258, %259, %260 : vector<16x128xi1>, vector<16x128xf32>
    %262 = math.absf %256 : vector<16x128xf32>
    %cst_88 = arith.constant 0.327591091 : f32
    %263 = vector.broadcast %cst_88 : f32 to vector<16x128xf32>
    %264 = arith.mulf %263, %262 : vector<16x128xf32>
    %cst_89 = arith.constant 1.000000e+00 : f32
    %265 = vector.broadcast %cst_89 : f32 to vector<16x128xf32>
    %266 = arith.addf %265, %264 : vector<16x128xf32>
    %267 = tpu.reciprocal %266 {approx = true} : vector<16x128xf32> -> vector<16x128xf32>
    %268 = arith.mulf %266, %267 : vector<16x128xf32>
    %cst_90 = arith.constant 2.000000e+00 : f32
    %269 = vector.broadcast %cst_90 : f32 to vector<16x128xf32>
    %270 = arith.subf %269, %268 : vector<16x128xf32>
    %271 = arith.mulf %267, %270 : vector<16x128xf32>
    %cst_91 = arith.constant 1.06140542 : f32
    %272 = vector.broadcast %cst_91 : f32 to vector<16x128xf32>
    %273 = arith.mulf %272, %271 : vector<16x128xf32>
    %cst_92 = arith.constant -1.45315206 : f32
    %274 = vector.broadcast %cst_92 : f32 to vector<16x128xf32>
    %275 = arith.addf %273, %274 : vector<16x128xf32>
    %276 = arith.mulf %275, %271 : vector<16x128xf32>
    %cst_93 = arith.constant 1.42141378 : f32
    %277 = vector.broadcast %cst_93 : f32 to vector<16x128xf32>
    %278 = arith.addf %276, %277 : vector<16x128xf32>
    %279 = arith.mulf %278, %271 : vector<16x128xf32>
    %cst_94 = arith.constant -0.284496725 : f32
    %280 = vector.broadcast %cst_94 : f32 to vector<16x128xf32>
    %281 = arith.addf %279, %280 : vector<16x128xf32>
    %282 = arith.mulf %281, %271 : vector<16x128xf32>
    %cst_95 = arith.constant 0.254829586 : f32
    %283 = vector.broadcast %cst_95 : f32 to vector<16x128xf32>
    %284 = arith.addf %282, %283 : vector<16x128xf32>
    %285 = arith.mulf %284, %271 : vector<16x128xf32>
    %cst_96 = arith.constant 0.000000e+00 : f32
    %286 = vector.broadcast %cst_96 : f32 to vector<16x128xf32>
    %287 = arith.subf %286, %262 : vector<16x128xf32>
    %288 = arith.mulf %287, %262 : vector<16x128xf32>
    %289 = math.exp %288 : vector<16x128xf32>
    %290 = arith.mulf %285, %289 : vector<16x128xf32>
    %cst_97 = arith.constant 1.000000e+00 : f32
    %291 = vector.broadcast %cst_97 : f32 to vector<16x128xf32>
    %292 = arith.subf %291, %290 : vector<16x128xf32>
    %293 = arith.mulf %261, %292 : vector<16x128xf32>
    %cst_98 = arith.constant 1.000000e+00 : f32
    %294 = vector.broadcast %cst_98 : f32 to vector<16x128xf32>
    %295 = arith.addf %294, %293 : vector<16x128xf32>
    %296 = arith.mulf %254, %295 : vector<16x128xf32>
    %297 = arith.truncf %296 : vector<16x128xf32> to vector<16x128xbf16>
    %c0_99 = arith.constant 0 : index
    %c0_100 = arith.constant 0 : index
    %c0_101 = arith.constant 0 : index
    %298 = vector.load %arg21[%c0_99, %c0_100, %c0_101] : memref<1x128x32xbf16, #tpu.memory_space<vmem>>, vector<1x128x32xbf16>
    %299 = vector.shape_cast %298 : vector<1x128x32xbf16> to vector<128x32xbf16>
    %cst_102 = arith.constant dense<0.000000e+00> : vector<16x32xf32>
    %300 = tpu.matmul %297, %299, %cst_102 {dimension_numbers = #tpu.dot_dimension_numbers<[1], [0], [0], [1], [0, 0, 1, 1], [], []>} : vector<16x128xbf16>, vector<128x32xbf16>, vector<16x32xf32> -> vector<16x32xf32>
    %c0_103 = arith.constant 0 : index
    %c0_104 = arith.constant 0 : index
    %c0_105 = arith.constant 0 : index
    %301 = vector.load %arg22[%c0_103, %c0_104, %c0_105] : memref<1x1x32xf32, #tpu.memory_space<vmem>>, vector<1x1x32xf32>
    %302 = vector.shape_cast %301 : vector<1x1x32xf32> to vector<1x32xf32>
    %303 = vector.broadcast %302 : vector<1x32xf32> to vector<16x32xf32>
    %304 = arith.addf %300, %303 : vector<16x32xf32>
    %c0_106 = arith.constant 0 : index
    %c0_107 = arith.constant 0 : index
    %c0_108 = arith.constant 0 : index
    %305 = vector.load %arg23[%c0_106, %c0_107, %c0_108] : memref<1x1x32xf32, #tpu.memory_space<vmem>>, vector<1x1x32xf32>
    %306 = vector.shape_cast %305 : vector<1x1x32xf32> to vector<1x32xf32>
    %c0_109 = arith.constant 0 : index
    %c0_110 = arith.constant 0 : index
    %c0_111 = arith.constant 0 : index
    %307 = vector.load %arg24[%c0_109, %c0_110, %c0_111] : memref<1x1x32xf32, #tpu.memory_space<vmem>>, vector<1x1x32xf32>
    %308 = vector.shape_cast %307 : vector<1x1x32xf32> to vector<1x32xf32>
    %cst_112 = arith.constant dense<0.000000e+00> : vector<16xf32>
    %309 = vector.multi_reduction <add>, %304, %cst_112 [1] : vector<16x32xf32> to vector<16xf32>
    %310 = vector.shape_cast %309 : vector<16xf32> to vector<16x1xf32>
    %cst_113 = arith.constant 3.200000e+01 : f32
    %311 = vector.broadcast %cst_113 : f32 to vector<16x1xf32>
    %312 = arith.divf %310, %311 : vector<16x1xf32>
    %313 = vector.broadcast %312 : vector<16x1xf32> to vector<16x32xf32>
    %314 = arith.subf %304, %313 : vector<16x32xf32>
    %315 = arith.mulf %314, %314 : vector<16x32xf32>
    %cst_114 = arith.constant dense<0.000000e+00> : vector<16xf32>
    %316 = vector.multi_reduction <add>, %315, %cst_114 [1] : vector<16x32xf32> to vector<16xf32>
    %317 = vector.shape_cast %316 : vector<16xf32> to vector<16x1xf32>
    %cst_115 = arith.constant 3.200000e+01 : f32
    %318 = vector.broadcast %cst_115 : f32 to vector<16x1xf32>
    %319 = arith.divf %317, %318 : vector<16x1xf32>
    %320 = vector.broadcast %312 : vector<16x1xf32> to vector<16x32xf32>
    %321 = arith.subf %304, %320 : vector<16x32xf32>
    %cst_116 = arith.constant 9.99999996E-13 : f32
    %322 = vector.broadcast %cst_116 : f32 to vector<16x1xf32>
    %323 = arith.addf %319, %322 : vector<16x1xf32>
    %324 = math.rsqrt %323 : vector<16x1xf32>
    %325 = vector.broadcast %324 : vector<16x1xf32> to vector<16x32xf32>
    %326 = arith.mulf %321, %325 : vector<16x32xf32>
    %327 = vector.broadcast %306 : vector<1x32xf32> to vector<16x32xf32>
    %328 = arith.mulf %326, %327 : vector<16x32xf32>
    %329 = vector.broadcast %308 : vector<1x32xf32> to vector<16x32xf32>
    %330 = arith.addf %328, %329 : vector<16x32xf32>
    %331 = arith.addf %244, %330 : vector<16x32xf32>
    %c0_117 = arith.constant 0 : index
    %c0_118 = arith.constant 0 : index
    %332 = vector.load %arg26[%c0_117, %c0_118] : memref<16x32xf32, #tpu.memory_space<vmem>>, vector<16x32xf32>
    tpu.vector_store %arg26[%c0_117, %c0_118], %331 {strides = array<i32>} : memref<16x32xf32, #tpu.memory_space<vmem>>, vector<16x32xf32>,
    %c1_i32 = arith.constant 1 : i32
    %333 = arith.cmpi eq, %arg1, %c1_i32 : i32
    %334 = arith.extui %333 : i1 to i32
    %c0_i32_119 = arith.constant 0 : i32
    %335 = arith.cmpi ne, %334, %c0_i32_119 : i32
    scf.if %335 {
      %336 = vector.shape_cast %331 : vector<16x32xf32> to vector<2x8x32xf32>
      %c0_120 = arith.constant 0 : index
      %c0_121 = arith.constant 0 : index
      %c0_122 = arith.constant 0 : index
      %337 = vector.load %arg25[%c0_120, %c0_121, %c0_122] : memref<2x8x32xf32, #tpu.memory_space<vmem>>, vector<2x8x32xf32>
      tpu.vector_store %arg25[%c0_120, %c0_121, %c0_122], %336 {strides = array<i32>} : memref<2x8x32xf32, #tpu.memory_space<vmem>>, vector<2x8x32xf32>,
    } else {
    }
    return
  }
  func.func @transform_0(%arg0: i32, %arg1: i32) -> (i32, i32, i32) {
    %c0_i32 = arith.constant 0 : i32
    %c0_i32_0 = arith.constant 0 : i32
    %c0_i32_1 = arith.constant 0 : i32
    return %arg0, %c0_i32, %c0_i32_0 : i32, i32, i32
  }
  func.func @transform_1(%arg0: i32, %arg1: i32) -> (i32, i32) {
    %c0_i32 = arith.constant 0 : i32
    %c0_i32_0 = arith.constant 0 : i32
    %c0_i32_1 = arith.constant 0 : i32
    return %c0_i32, %c0_i32_0 : i32, i32
  }
  func.func @transform_2(%arg0: i32, %arg1: i32) -> (i32, i32) {
    %c0_i32 = arith.constant 0 : i32
    %c0_i32_0 = arith.constant 0 : i32
    %c0_i32_1 = arith.constant 0 : i32
    return %c0_i32, %c0_i32_0 : i32, i32
  }
  func.func @transform_3(%arg0: i32, %arg1: i32) -> (i32, i32) {
    %c0_i32 = arith.constant 0 : i32
    %c0_i32_0 = arith.constant 0 : i32
    %c0_i32_1 = arith.constant 0 : i32
    return %c0_i32, %c0_i32_0 : i32, i32
  }
  func.func @transform_4(%arg0: i32, %arg1: i32) -> (i32, i32, i32) {
    %c0_i32 = arith.constant 0 : i32
    %c0_i32_0 = arith.constant 0 : i32
    %c0_i32_1 = arith.constant 0 : i32
    return %arg0, %c0_i32, %c0_i32_0 : i32, i32, i32
  }
  func.func @transform_5(%arg0: i32, %arg1: i32) -> (i32, i32, i32) {
    %c0_i32 = arith.constant 0 : i32
    %c0_i32_0 = arith.constant 0 : i32
    %c0_i32_1 = arith.constant 0 : i32
    return %arg1, %c0_i32, %c0_i32_0 : i32, i32, i32
  }
  func.func @transform_6(%arg0: i32, %arg1: i32) -> (i32, i32, i32) {
    %c0_i32 = arith.constant 0 : i32
    %c0_i32_0 = arith.constant 0 : i32
    %c0_i32_1 = arith.constant 0 : i32
    return %arg1, %c0_i32, %c0_i32_0 : i32, i32, i32
  }
  func.func @transform_7(%arg0: i32, %arg1: i32) -> (i32, i32, i32) {
    %c0_i32 = arith.constant 0 : i32
    %c0_i32_0 = arith.constant 0 : i32
    %c0_i32_1 = arith.constant 0 : i32
    return %arg1, %c0_i32, %c0_i32_0 : i32, i32, i32
  }
  func.func @transform_8(%arg0: i32, %arg1: i32) -> (i32, i32, i32) {
    %c0_i32 = arith.constant 0 : i32
    %c0_i32_0 = arith.constant 0 : i32
    %c0_i32_1 = arith.constant 0 : i32
    return %arg1, %c0_i32, %c0_i32_0 : i32, i32, i32
  }
  func.func @transform_9(%arg0: i32, %arg1: i32) -> (i32, i32, i32) {
    %c0_i32 = arith.constant 0 : i32
    %c0_i32_0 = arith.constant 0 : i32
    %c0_i32_1 = arith.constant 0 : i32
    return %arg1, %c0_i32, %c0_i32_0 : i32, i32, i32
  }
  func.func @transform_10(%arg0: i32, %arg1: i32) -> (i32, i32, i32) {
    %c0_i32 = arith.constant 0 : i32
    %c0_i32_0 = arith.constant 0 : i32
    %c0_i32_1 = arith.constant 0 : i32
    return %arg1, %c0_i32, %c0_i32_0 : i32, i32, i32
  }
  func.func @transform_11(%arg0: i32, %arg1: i32) -> (i32, i32, i32) {
    %c0_i32 = arith.constant 0 : i32
    %c0_i32_0 = arith.constant 0 : i32
    %c0_i32_1 = arith.constant 0 : i32
    return %arg1, %c0_i32, %c0_i32_0 : i32, i32, i32
  }
  func.func @transform_12(%arg0: i32, %arg1: i32) -> (i32, i32, i32) {
    %c0_i32 = arith.constant 0 : i32
    %c0_i32_0 = arith.constant 0 : i32
    %c0_i32_1 = arith.constant 0 : i32
    return %arg1, %c0_i32, %c0_i32_0 : i32, i32, i32
  }
  func.func @transform_13(%arg0: i32, %arg1: i32) -> (i32, i32, i32) {
    %c0_i32 = arith.constant 0 : i32
    %c0_i32_0 = arith.constant 0 : i32
    %c0_i32_1 = arith.constant 0 : i32
    return %arg1, %c0_i32, %c0_i32_0 : i32, i32, i32
  }
  func.func @transform_14(%arg0: i32, %arg1: i32) -> (i32, i32, i32) {
    %c0_i32 = arith.constant 0 : i32
    %c0_i32_0 = arith.constant 0 : i32
    %c0_i32_1 = arith.constant 0 : i32
    return %arg1, %c0_i32, %c0_i32_0 : i32, i32, i32
  }
  func.func @transform_15(%arg0: i32, %arg1: i32) -> (i32, i32, i32) {
    %c0_i32 = arith.constant 0 : i32
    %c0_i32_0 = arith.constant 0 : i32
    %c0_i32_1 = arith.constant 0 : i32
    return %arg1, %c0_i32, %c0_i32_0 : i32, i32, i32
  }
  func.func @transform_16(%arg0: i32, %arg1: i32) -> (i32, i32, i32) {
    %c0_i32 = arith.constant 0 : i32
    %c0_i32_0 = arith.constant 0 : i32
    %c0_i32_1 = arith.constant 0 : i32
    return %arg1, %c0_i32, %c0_i32_0 : i32, i32, i32
  }
  func.func @transform_17(%arg0: i32, %arg1: i32) -> (i32, i32, i32) {
    %c0_i32 = arith.constant 0 : i32
    %c0_i32_0 = arith.constant 0 : i32
    %c0_i32_1 = arith.constant 0 : i32
    return %arg1, %c0_i32, %c0_i32_0 : i32, i32, i32
  }
  func.func @transform_18(%arg0: i32, %arg1: i32) -> (i32, i32, i32) {
    %c0_i32 = arith.constant 0 : i32
    %c0_i32_0 = arith.constant 0 : i32
    %c0_i32_1 = arith.constant 0 : i32
    return %arg1, %c0_i32, %c0_i32_0 : i32, i32, i32
  }
  func.func @transform_19(%arg0: i32, %arg1: i32) -> (i32, i32, i32) {
    %c0_i32 = arith.constant 0 : i32
    %c0_i32_0 = arith.constant 0 : i32
    %c0_i32_1 = arith.constant 0 : i32
    return %arg1, %c0_i32, %c0_i32_0 : i32, i32, i32
  }
  func.func @transform_20(%arg0: i32, %arg1: i32) -> (i32, i32, i32) {
    %c0_i32 = arith.constant 0 : i32
    %c0_i32_0 = arith.constant 0 : i32
    %c0_i32_1 = arith.constant 0 : i32
    return %arg1, %c0_i32, %c0_i32_0 : i32, i32, i32
  }
  func.func @transform_21(%arg0: i32, %arg1: i32) -> (i32, i32, i32) {
    %c0_i32 = arith.constant 0 : i32
    %c0_i32_0 = arith.constant 0 : i32
    %c0_i32_1 = arith.constant 0 : i32
    return %arg1, %c0_i32, %c0_i32_0 : i32, i32, i32
  }
  func.func @transform_22(%arg0: i32, %arg1: i32) -> (i32, i32, i32) {
    %c0_i32 = arith.constant 0 : i32
    %c0_i32_0 = arith.constant 0 : i32
    %c0_i32_1 = arith.constant 0 : i32
    return %arg1, %c0_i32, %c0_i32_0 : i32, i32, i32
  }
  func.func @transform_23(%arg0: i32, %arg1: i32) -> (i32, i32, i32) {
    %c0_i32 = arith.constant 0 : i32
    %c0_i32_0 = arith.constant 0 : i32
    %c0_i32_1 = arith.constant 0 : i32
    return %arg0, %c0_i32, %c0_i32_0 : i32, i32, i32
  }
}

</mosaic_0001>

<llo_original>
// kernel: tpu_custom_call.1
$region0: #{tpu_custom_call.1}
  #allocation0 [shape = 'u32[]', space=smem, size = 0x4, offset = 0x4, fixed_abs, tag = 'smem constant byte address 0x4 - core index']
  #allocation1 [shape = 'u32[144,128]{1,0:T(1,128)}', space=vmem, size = 0x12000, scoped, tag = 'internal scratch']
  #allocation2 [shape = 'f32[16,32]{1,0:T(8,128)}', space=vmem, size = 0x2000, scoped, tag = 'scratch operand']
  %s0 = inlined_call_operand.hbm [shape: f32[2,8,32], index: 0, kind: input, shape index: {}]
  %s1 = inlined_call_operand.vmem [shape: f32[8,32], index: 1, kind: input, shape index: {}]
  %s2 = inlined_call_operand.hbm [shape: f32[1,32], index: 2, kind: input, shape index: {}]
  %s3 = inlined_call_operand.hbm [shape: f32[1,32], index: 3, kind: input, shape index: {}]
  %s4 = inlined_call_operand.vmem [shape: f32[2,1,8], index: 4, kind: input, shape index: {}]
  %s5 = inlined_call_operand.vmem [shape: bf16[2,32,32], index: 5, kind: input, shape index: {}]
  %s6 = inlined_call_operand.vmem [shape: f32[2,1,32], index: 6, kind: input, shape index: {}]
  %s7 = inlined_call_operand.vmem [shape: bf16[2,32,32], index: 7, kind: input, shape index: {}]
  %s8 = inlined_call_operand.vmem [shape: f32[2,1,32], index: 8, kind: input, shape index: {}]
  %s9 = inlined_call_operand.vmem [shape: bf16[2,32,32], index: 9, kind: input, shape index: {}]
  %s10 = inlined_call_operand.vmem [shape: f32[2,1,32], index: 10, kind: input, shape index: {}]
  %s11 = inlined_call_operand.vmem [shape: bf16[2,1,32], index: 11, kind: input, shape index: {}]
  %s12 = inlined_call_operand.vmem [shape: bf16[2,1,32], index: 12, kind: input, shape index: {}]
  %s13 = inlined_call_operand.vmem [shape: bf16[2,32,32], index: 13, kind: input, shape index: {}]
  %s14 = inlined_call_operand.vmem [shape: f32[2,1,32], index: 14, kind: input, shape index: {}]
  %s15 = inlined_call_operand.vmem [shape: f32[2,1,32], index: 15, kind: input, shape index: {}]
  %s16 = inlined_call_operand.vmem [shape: f32[2,1,32], index: 16, kind: input, shape index: {}]
  %s17 = inlined_call_operand.vmem [shape: bf16[2,32,128], index: 17, kind: input, shape index: {}]
  %s18 = inlined_call_operand.vmem [shape: f32[2,1,128], index: 18, kind: input, shape index: {}]
  %s19 = inlined_call_operand.vmem [shape: bf16[2,128,32], index: 19, kind: input, shape index: {}]
  %s20 = inlined_call_operand.vmem [shape: f32[2,1,32], index: 20, kind: input, shape index: {}]
  %s21 = inlined_call_operand.vmem [shape: f32[2,1,32], index: 21, kind: input, shape index: {}]
  %s22 = inlined_call_operand.vmem [shape: f32[2,1,32], index: 22, kind: input, shape index: {}]
  %s23 = inlined_call_operand.hbm [shape: f32[2,8,32], index: 23, kind: output, shape index: {}]
  %s24 = sld [smem:[#allocation0]]
  $region145: #{tpu_custom_call.1} parent=0
    _
  %s26 = ssub.s32 1, %s24
  %s27 = scalar_select 0, %s26, %s24
  $region1: #{tpu_custom_call.1} parent=0
    #allocation3 [shape = 'u8[8192]{0}', space=vmem, size = 0x2000, scoped, tag = 'input window, operand 0, single buffered']
    #allocation4 [shape = 's32[2]{0}', space=sflag, size = 0x8, scoped, tag = 'scoped memory for tpu_custom_call.1']
    #allocation5 [shape = 's32[2]{0}', space=sflag, size = 0x8, scoped, tag = 'scoped memory for tpu_custom_call.1']
    #allocation6 [shape = 'u8[512]{0}', space=vmem, size = 0x400, scoped, tag = 'input window, operand 2, single buffered']
    #allocation7 [shape = 's32[1]{0}', space=sflag, size = 0x4, scoped, tag = 'scoped memory for tpu_custom_call.1']
    #allocation8 [shape = 'u8[512]{0}', space=vmem, size = 0x400, scoped, tag = 'input window, operand 3, single buffered']
    #allocation9 [shape = 'u8[8192]{0}', space=vmem, size = 0x2000, scoped, tag = 'output window, operand 0, single buffered']
    %28 = vsyncpa [#allocation4], 0
    %29 = vsyncpa [#allocation7], 0
    %30 = vsyncpa [#allocation5], 0
    loop: start=0, step=1, limit=4
    $region2: #{tpu_custom_call.1} parent=1 // loop_pre_header
      _
    $region3: #{tpu_custom_call.1} parent=1 // loop_header
      %s32 = sphi 0, %s36
      %p33 = scmp.ge.s32.totalorder %s32, 4
      %s39 = sphi 0, %s51
      %s40 = sphi 0, %s47
      %s41 = sphi 0, %s39
      %s42 = sphi 0, %s40
      %s43 = sphi 0, %s41
      %s44 = sphi 0, %s42
      %s54 = sphi 0, %s56
      %s57 = sphi 0, %s54
      %s58 = sphi 0, %s57
      %s74 = sphi 0, %s58
      %s78 = sphi 0, %s78
      %s80 = sphi 0, %s78
      %s81 = sphi 0, %s80
      %s95 = sphi 0, %s81
      %s99 = sphi 0, %s99
      %s101 = sphi 0, %s99
      %s102 = sphi 0, %s101
      %s116 = sphi 0, %s102
      %s120 = sphi 0, %s120
      %s122 = sphi 0, %s120
      %s123 = sphi 0, %s122
      %s137 = sphi 0, %s123
      %s143 = sphi 0, %s145
      %s146 = sphi 0, %s143
      %s147 = sphi 0, %s146
      %s163 = sphi 0, %s147
      %s169 = sphi 0, %s171
      %s172 = sphi 0, %s169
      %s173 = sphi 0, %s172
      %s189 = sphi 0, %s173
      %s195 = sphi 0, %s197
      %s198 = sphi 0, %s195
      %s199 = sphi 0, %s198
      %s215 = sphi 0, %s199
      %s221 = sphi 0, %s223
      %s224 = sphi 0, %s221
      %s225 = sphi 0, %s224
      %s241 = sphi 0, %s225
      %s247 = sphi 0, %s249
      %s250 = sphi 0, %s247
      %s251 = sphi 0, %s250
      %s267 = sphi 0, %s251
      %s273 = sphi 0, %s275
      %s276 = sphi 0, %s273
      %s277 = sphi 0, %s276
      %s293 = sphi 0, %s277
      %s299 = sphi 0, %s301
      %s302 = sphi 0, %s299
      %s303 = sphi 0, %s302
      %s319 = sphi 0, %s303
      %s325 = sphi 0, %s327
      %s328 = sphi 0, %s325
      %s329 = sphi 0, %s328
      %s345 = sphi 0, %s329
      %s351 = sphi 0, %s353
      %s354 = sphi 0, %s351
      %s355 = sphi 0, %s354
      %s371 = sphi 0, %s355
      %s377 = sphi 0, %s379
      %s380 = sphi 0, %s377
      %s381 = sphi 0, %s380
      %s397 = sphi 0, %s381
      %s403 = sphi 0, %s405
      %s406 = sphi 0, %s403
      %s407 = sphi 0, %s406
      %s423 = sphi 0, %s407
      %s429 = sphi 0, %s431
      %s432 = sphi 0, %s429
      %s433 = sphi 0, %s432
      %s449 = sphi 0, %s433
      %s455 = sphi 0, %s457
      %s458 = sphi 0, %s455
      %s459 = sphi 0, %s458
      %s475 = sphi 0, %s459
      %s481 = sphi 0, %s483
      %s484 = sphi 0, %s481
      %s485 = sphi 0, %s484
      %s501 = sphi 0, %s485
      %s507 = sphi 0, %s509
      %s510 = sphi 0, %s507
      %s511 = sphi 0, %s510
      %s527 = sphi 0, %s511
      %s533 = sphi 0, %s535
      %s536 = sphi 0, %s533
      %s537 = sphi 0, %s536
      %s553 = sphi 0, %s537
      %s559 = sphi 0, %s561
      %s562 = sphi 0, %s559
      %s563 = sphi 0, %s562
      %s579 = sphi 0, %s563
      %s585 = sphi 0, %s587
      %s588 = sphi 0, %s585
      %s589 = sphi 0, %s588
      %s605 = sphi 0, %s589
      %s611 = sphi 0, %s613
      %s614 = sphi 0, %s611
      %s615 = sphi 0, %s614
      %s631 = sphi 0, %s615
      %s637 = sphi 0, %s639
      %s640 = sphi 0, %s637
      %s641 = sphi 0, %s640
      %s657 = sphi 0, %s641
    $region4: #{tpu_custom_call.1} parent=1 // loop_header_branch
      %35 = sbr.rel (%p33) target = $region8
    $region5: #{tpu_custom_call.1} parent=1 // loop_body
      %s37 = ssub.s32 %s32, 1
      %s38 = ssub.s32 %s32, 2
      %s45 = sadd.s32 1, %s40
      %p46 = scmp.ge.s32.totalorder %s45, 2
      %s47 = scalar_select %p46, 0, %s45
      %s48 = sadd.s32 1, %s39
      %s49 = scalar_select %p46, %s48, %s39
      %p50 = scmp.ge.s32.totalorder %s49, 1
      %s51 = scalar_select %p50, 0, %s49
      %s52 = ssub.s32 %s39, %s51
      %p53 = scmp.eq.s32.totalorder %s52, 0
      %s55 = sadd.s32 %s54, 1
      %s56 = scalar_select %p53, %s54, %s55
      %p59 = pneg %p53
      %p60 = scmp.eq.s32.totalorder %s32, 1
      %p61 = por %p59, %p60
      %p62 = scmp.ne.s32.totalorder %s54, %s57
      %p63 = scmp.eq.s32.totalorder %s32, 0
      %p64 = por %p62, %p63
      %p65 = scmp.ne.s32.totalorder %s54, %s57
      %p66 = scmp.eq.s32.totalorder %s37, 1
      %p67 = por %p65, %p66
      %p68 = scmp.ne.s32.totalorder %s57, %s58
      %p69 = scmp.eq.s32.totalorder %s37, 0
      %p70 = por %p68, %p69
      %p71 = scmp.ne.s32.totalorder %s57, %s58
      %p72 = scmp.eq.s32.totalorder %s38, 1
      %p73 = por %p71, %p72
      %p75 = scmp.ne.s32.totalorder %s58, %s74
      %p76 = scmp.eq.s32.totalorder %s38, 0
      %p77 = por %p75, %p76
      %s79 = sadd.s32 %s78, 1
      %p82 = scmp.eq.s32.totalorder %s32, 1
      %p83 = scmp.ne.s32.totalorder %s78, %s80
      %p84 = scmp.eq.s32.totalorder %s32, 0
      %p85 = por %p83, %p84
      %p86 = scmp.ne.s32.totalorder %s78, %s80
      %p87 = scmp.eq.s32.totalorder %s37, 1
      %p88 = por %p86, %p87
      %p89 = scmp.ne.s32.totalorder %s80, %s81
      %p90 = scmp.eq.s32.totalorder %s37, 0
      %p91 = por %p89, %p90
      %p92 = scmp.ne.s32.totalorder %s80, %s81
      %p93 = scmp.eq.s32.totalorder %s38, 1
      %p94 = por %p92, %p93
      %p96 = scmp.ne.s32.totalorder %s81, %s95
      %p97 = scmp.eq.s32.totalorder %s38, 0
      %p98 = por %p96, %p97
      %s100 = sadd.s32 %s99, 1
      %p103 = scmp.eq.s32.totalorder %s32, 1
      %p104 = scmp.ne.s32.totalorder %s99, %s101
      %p105 = scmp.eq.s32.totalorder %s32, 0
      %p106 = por %p104, %p105
      %p107 = scmp.ne.s32.totalorder %s99, %s101
      %p108 = scmp.eq.s32.totalorder %s37, 1
      %p109 = por %p107, %p108
      %p110 = scmp.ne.s32.totalorder %s101, %s102
      %p111 = scmp.eq.s32.totalorder %s37, 0
      %p112 = por %p110, %p111
      %p113 = scmp.ne.s32.totalorder %s101, %s102
      %p114 = scmp.eq.s32.totalorder %s38, 1
      %p115 = por %p113, %p114
      %p117 = scmp.ne.s32.totalorder %s102, %s116
      %p118 = scmp.eq.s32.totalorder %s38, 0
      %p119 = por %p117, %p118
      %s121 = sadd.s32 %s120, 1
      %p124 = scmp.eq.s32.totalorder %s32, 1
      %p125 = scmp.ne.s32.totalorder %s120, %s122
      %p126 = scmp.eq.s32.totalorder %s32, 0
      %p127 = por %p125, %p126
      %p128 = scmp.ne.s32.totalorder %s120, %s122
      %p129 = scmp.eq.s32.totalorder %s37, 1
      %p130 = por %p128, %p129
      %p131 = scmp.ne.s32.totalorder %s122, %s123
      %p132 = scmp.eq.s32.totalorder %s37, 0
      %p133 = por %p131, %p132
      %p134 = scmp.ne.s32.totalorder %s122, %s123
      %p135 = scmp.eq.s32.totalorder %s38, 1
      %p136 = por %p134, %p135
      %p138 = scmp.ne.s32.totalorder %s123, %s137
      %p139 = scmp.eq.s32.totalorder %s38, 0
      %p140 = por %p138, %p139
      %s141 = ssub.s32 %s39, %s51
      %p142 = scmp.eq.s32.totalorder %s141, 0
      %s144 = sadd.s32 %s143, 1
      %s145 = scalar_select %p142, %s143, %s144
      %p148 = pneg %p142
      %p149 = scmp.eq.s32.totalorder %s32, 1
      %p150 = por %p148, %p149
      %p151 = scmp.ne.s32.totalorder %s143, %s146
      %p152 = scmp.eq.s32.totalorder %s32, 0
      %p153 = por %p151, %p152
      %p154 = scmp.ne.s32.totalorder %s143, %s146
      %p155 = scmp.eq.s32.totalorder %s37, 1
      %p156 = por %p154, %p155
      %p157 = scmp.ne.s32.totalorder %s146, %s147
      %p158 = scmp.eq.s32.totalorder %s37, 0
      %p159 = por %p157, %p158
      %p160 = scmp.ne.s32.totalorder %s146, %s147
      %p161 = scmp.eq.s32.totalorder %s38, 1
      %p162 = por %p160, %p161
      %p164 = scmp.ne.s32.totalorder %s147, %s163
      %p165 = scmp.eq.s32.totalorder %s38, 0
      %p166 = por %p164, %p165
      %s167 = ssub.s32 %s40, %s47
      %p168 = scmp.eq.s32.totalorder %s167, 0
      %s170 = sadd.s32 %s169, 1
      %s171 = scalar_select %p168, %s169, %s170
      %p174 = pneg %p168
      %p175 = scmp.eq.s32.totalorder %s32, 1
      %p176 = por %p174, %p175
      %p177 = scmp.ne.s32.totalorder %s169, %s172
      %p178 = scmp.eq.s32.totalorder %s32, 0
      %p179 = por %p177, %p178
      %p180 = scmp.ne.s32.totalorder %s169, %s172
      %p181 = scmp.eq.s32.totalorder %s37, 1
      %p182 = por %p180, %p181
      %p183 = scmp.ne.s32.totalorder %s172, %s173
      %p184 = scmp.eq.s32.totalorder %s37, 0
      %p185 = por %p183, %p184
      %p186 = scmp.ne.s32.totalorder %s172, %s173
      %p187 = scmp.eq.s32.totalorder %s38, 1
      %p188 = por %p186, %p187
      %p190 = scmp.ne.s32.totalorder %s173, %s189
      %p191 = scmp.eq.s32.totalorder %s38, 0
      %p192 = por %p190, %p191
      %s193 = ssub.s32 %s40, %s47
      %p194 = scmp.eq.s32.totalorder %s193, 0
      %s196 = sadd.s32 %s195, 1
      %s197 = scalar_select %p194, %s195, %s196
      %p200 = pneg %p194
      %p201 = scmp.eq.s32.totalorder %s32, 1
      %p202 = por %p200, %p201
      %p203 = scmp.ne.s32.totalorder %s195, %s198
      %p204 = scmp.eq.s32.totalorder %s32, 0
      %p205 = por %p203, %p204
      %p206 = scmp.ne.s32.totalorder %s195, %s198
      %p207 = scmp.eq.s32.totalorder %s37, 1
      %p208 = por %p206, %p207
      %p209 = scmp.ne.s32.totalorder %s198, %s199
      %p210 = scmp.eq.s32.totalorder %s37, 0
      %p211 = por %p209, %p210
      %p212 = scmp.ne.s32.totalorder %s198, %s199
      %p213 = scmp.eq.s32.totalorder %s38, 1
      %p214 = por %p212, %p213
      %p216 = scmp.ne.s32.totalorder %s199, %s215
      %p217 = scmp.eq.s32.totalorder %s38, 0
      %p218 = por %p216, %p217
      %s219 = ssub.s32 %s40, %s47
      %p220 = scmp.eq.s32.totalorder %s219, 0
      %s222 = sadd.s32 %s221, 1
      %s223 = scalar_select %p220, %s221, %s222
      %p226 = pneg %p220
      %p227 = scmp.eq.s32.totalorder %s32, 1
      %p228 = por %p226, %p227
      %p229 = scmp.ne.s32.totalorder %s221, %s224
      %p230 = scmp.eq.s32.totalorder %s32, 0
      %p231 = por %p229, %p230
      %p232 = scmp.ne.s32.totalorder %s221, %s224
      %p233 = scmp.eq.s32.totalorder %s37, 1
      %p234 = por %p232, %p233
      %p235 = scmp.ne.s32.totalorder %s224, %s225
      %p236 = scmp.eq.s32.totalorder %s37, 0
      %p237 = por %p235, %p236
      %p238 = scmp.ne.s32.totalorder %s224, %s225
      %p239 = scmp.eq.s32.totalorder %s38, 1
      %p240 = por %p238, %p239
      %p242 = scmp.ne.s32.totalorder %s225, %s241
      %p243 = scmp.eq.s32.totalorder %s38, 0
      %p244 = por %p242, %p243
      %s245 = ssub.s32 %s40, %s47
      %p246 = scmp.eq.s32.totalorder %s245, 0
      %s248 = sadd.s32 %s247, 1
      %s249 = scalar_select %p246, %s247, %s248
      %p252 = pneg %p246
      %p253 = scmp.eq.s32.totalorder %s32, 1
      %p254 = por %p252, %p253
      %p255 = scmp.ne.s32.totalorder %s247, %s250
      %p256 = scmp.eq.s32.totalorder %s32, 0
      %p257 = por %p255, %p256
      %p258 = scmp.ne.s32.totalorder %s247, %s250
      %p259 = scmp.eq.s32.totalorder %s37, 1
      %p260 = por %p258, %p259
      %p261 = scmp.ne.s32.totalorder %s250, %s251
      %p262 = scmp.eq.s32.totalorder %s37, 0
      %p263 = por %p261, %p262
      %p264 = scmp.ne.s32.totalorder %s250, %s251
      %p265 = scmp.eq.s32.totalorder %s38, 1
      %p266 = por %p264, %p265
      %p268 = scmp.ne.s32.totalorder %s251, %s267
      %p269 = scmp.eq.s32.totalorder %s38, 0
      %p270 = por %p268, %p269
      %s271 = ssub.s32 %s40, %s47
      %p272 = scmp.eq.s32.totalorder %s271, 0
      %s274 = sadd.s32 %s273, 1
      %s275 = scalar_select %p272, %s273, %s274
      %p278 = pneg %p272
      %p279 = scmp.eq.s32.totalorder %s32, 1
      %p280 = por %p278, %p279
      %p281 = scmp.ne.s32.totalorder %s273, %s276
      %p282 = scmp.eq.s32.totalorder %s32, 0
      %p283 = por %p281, %p282
      %p284 = scmp.ne.s32.totalorder %s273, %s276
      %p285 = scmp.eq.s32.totalorder %s37, 1
      %p286 = por %p284, %p285
      %p287 = scmp.ne.s32.totalorder %s276, %s277
      %p288 = scmp.eq.s32.totalorder %s37, 0
      %p289 = por %p287, %p288
      %p290 = scmp.ne.s32.totalorder %s276, %s277
      %p291 = scmp.eq.s32.totalorder %s38, 1
      %p292 = por %p290, %p291
      %p294 = scmp.ne.s32.totalorder %s277, %s293
      %p295 = scmp.eq.s32.totalorder %s38, 0
      %p296 = por %p294, %p295
      %s297 = ssub.s32 %s40, %s47
      %p298 = scmp.eq.s32.totalorder %s297, 0
      %s300 = sadd.s32 %s299, 1
      %s301 = scalar_select %p298, %s299, %s300
      %p304 = pneg %p298
      %p305 = scmp.eq.s32.totalorder %s32, 1
      %p306 = por %p304, %p305
      %p307 = scmp.ne.s32.totalorder %s299, %s302
      %p308 = scmp.eq.s32.totalorder %s32, 0
      %p309 = por %p307, %p308
      %p310 = scmp.ne.s32.totalorder %s299, %s302
      %p311 = scmp.eq.s32.totalorder %s37, 1
      %p312 = por %p310, %p311
      %p313 = scmp.ne.s32.totalorder %s302, %s303
      %p314 = scmp.eq.s32.totalorder %s37, 0
      %p315 = por %p313, %p314
      %p316 = scmp.ne.s32.totalorder %s302, %s303
      %p317 = scmp.eq.s32.totalorder %s38, 1
      %p318 = por %p316, %p317
      %p320 = scmp.ne.s32.totalorder %s303, %s319
      %p321 = scmp.eq.s32.totalorder %s38, 0
      %p322 = por %p320, %p321
      %s323 = ssub.s32 %s40, %s47
      %p324 = scmp.eq.s32.totalorder %s323, 0
      %s326 = sadd.s32 %s325, 1
      %s327 = scalar_select %p324, %s325, %s326
      %p330 = pneg %p324
      %p331 = scmp.eq.s32.totalorder %s32, 1
      %p332 = por %p330, %p331
      %p333 = scmp.ne.s32.totalorder %s325, %s328
      %p334 = scmp.eq.s32.totalorder %s32, 0
      %p335 = por %p333, %p334
      %p336 = scmp.ne.s32.totalorder %s325, %s328
      %p337 = scmp.eq.s32.totalorder %s37, 1
      %p338 = por %p336, %p337
      %p339 = scmp.ne.s32.totalorder %s328, %s329
      %p340 = scmp.eq.s32.totalorder %s37, 0
      %p341 = por %p339, %p340
      %p342 = scmp.ne.s32.totalorder %s328, %s329
      %p343 = scmp.eq.s32.totalorder %s38, 1
      %p344 = por %p342, %p343
      %p346 = scmp.ne.s32.totalorder %s329, %s345
      %p347 = scmp.eq.s32.totalorder %s38, 0
      %p348 = por %p346, %p347
      %s349 = ssub.s32 %s40, %s47
      %p350 = scmp.eq.s32.totalorder %s349, 0
      %s352 = sadd.s32 %s351, 1
      %s353 = scalar_select %p350, %s351, %s352
      %p356 = pneg %p350
      %p357 = scmp.eq.s32.totalorder %s32, 1
      %p358 = por %p356, %p357
      %p359 = scmp.ne.s32.totalorder %s351, %s354
      %p360 = scmp.eq.s32.totalorder %s32, 0
      %p361 = por %p359, %p360
      %p362 = scmp.ne.s32.totalorder %s351, %s354
      %p363 = scmp.eq.s32.totalorder %s37, 1
      %p364 = por %p362, %p363
      %p365 = scmp.ne.s32.totalorder %s354, %s355
      %p366 = scmp.eq.s32.totalorder %s37, 0
      %p367 = por %p365, %p366
      %p368 = scmp.ne.s32.totalorder %s354, %s355
      %p369 = scmp.eq.s32.totalorder %s38, 1
      %p370 = por %p368, %p369
      %p372 = scmp.ne.s32.totalorder %s355, %s371
      %p373 = scmp.eq.s32.totalorder %s38, 0
      %p374 = por %p372, %p373
      %s375 = ssub.s32 %s40, %s47
      %p376 = scmp.eq.s32.totalorder %s375, 0
      %s378 = sadd.s32 %s377, 1
      %s379 = scalar_select %p376, %s377, %s378
      %p382 = pneg %p376
      %p383 = scmp.eq.s32.totalorder %s32, 1
      %p384 = por %p382, %p383
      %p385 = scmp.ne.s32.totalorder %s377, %s380
      %p386 = scmp.eq.s32.totalorder %s32, 0
      %p387 = por %p385, %p386
      %p388 = scmp.ne.s32.totalorder %s377, %s380
      %p389 = scmp.eq.s32.totalorder %s37, 1
      %p390 = por %p388, %p389
      %p391 = scmp.ne.s32.totalorder %s380, %s381
      %p392 = scmp.eq.s32.totalorder %s37, 0
      %p393 = por %p391, %p392
      %p394 = scmp.ne.s32.totalorder %s380, %s381
      %p395 = scmp.eq.s32.totalorder %s38, 1
      %p396 = por %p394, %p395
      %p398 = scmp.ne.s32.totalorder %s381, %s397
      %p399 = scmp.eq.s32.totalorder %s38, 0
      %p400 = por %p398, %p399
      %s401 = ssub.s32 %s40, %s47
      %p402 = scmp.eq.s32.totalorder %s401, 0
      %s404 = sadd.s32 %s403, 1
      %s405 = scalar_select %p402, %s403, %s404
      %p408 = pneg %p402
      %p409 = scmp.eq.s32.totalorder %s32, 1
      %p410 = por %p408, %p409
      %p411 = scmp.ne.s32.totalorder %s403, %s406
      %p412 = scmp.eq.s32.totalorder %s32, 0
      %p413 = por %p411, %p412
      %p414 = scmp.ne.s32.totalorder %s403, %s406
      %p415 = scmp.eq.s32.totalorder %s37, 1
      %p416 = por %p414, %p415
      %p417 = scmp.ne.s32.totalorder %s406, %s407
      %p418 = scmp.eq.s32.totalorder %s37, 0
      %p419 = por %p417, %p418
      %p420 = scmp.ne.s32.totalorder %s406, %s407
      %p421 = scmp.eq.s32.totalorder %s38, 1
      %p422 = por %p420, %p421
      %p424 = scmp.ne.s32.totalorder %s407, %s423
      %p425 = scmp.eq.s32.totalorder %s38, 0
      %p426 = por %p424, %p425
      %s427 = ssub.s32 %s40, %s47
      %p428 = scmp.eq.s32.totalorder %s427, 0
      %s430 = sadd.s32 %s429, 1
      %s431 = scalar_select %p428, %s429, %s430
      %p434 = pneg %p428
      %p435 = scmp.eq.s32.totalorder %s32, 1
      %p436 = por %p434, %p435
      %p437 = scmp.ne.s32.totalorder %s429, %s432
      %p438 = scmp.eq.s32.totalorder %s32, 0
      %p439 = por %p437, %p438
      %p440 = scmp.ne.s32.totalorder %s429, %s432
      %p441 = scmp.eq.s32.totalorder %s37, 1
      %p442 = por %p440, %p441
      %p443 = scmp.ne.s32.totalorder %s432, %s433
      %p444 = scmp.eq.s32.totalorder %s37, 0
      %p445 = por %p443, %p444
      %p446 = scmp.ne.s32.totalorder %s432, %s433
      %p447 = scmp.eq.s32.totalorder %s38, 1
      %p448 = por %p446, %p447
      %p450 = scmp.ne.s32.totalorder %s433, %s449
      %p451 = scmp.eq.s32.totalorder %s38, 0
      %p452 = por %p450, %p451
      %s453 = ssub.s32 %s40, %s47
      %p454 = scmp.eq.s32.totalorder %s453, 0
      %s456 = sadd.s32 %s455, 1
      %s457 = scalar_select %p454, %s455, %s456
      %p460 = pneg %p454
      %p461 = scmp.eq.s32.totalorder %s32, 1
      %p462 = por %p460, %p461
      %p463 = scmp.ne.s32.totalorder %s455, %s458
      %p464 = scmp.eq.s32.totalorder %s32, 0
      %p465 = por %p463, %p464
      %p466 = scmp.ne.s32.totalorder %s455, %s458
      %p467 = scmp.eq.s32.totalorder %s37, 1
      %p468 = por %p466, %p467
      %p469 = scmp.ne.s32.totalorder %s458, %s459
      %p470 = scmp.eq.s32.totalorder %s37, 0
      %p471 = por %p469, %p470
      %p472 = scmp.ne.s32.totalorder %s458, %s459
      %p473 = scmp.eq.s32.totalorder %s38, 1
      %p474 = por %p472, %p473
      %p476 = scmp.ne.s32.totalorder %s459, %s475
      %p477 = scmp.eq.s32.totalorder %s38, 0
      %p478 = por %p476, %p477
      %s479 = ssub.s32 %s40, %s47
      %p480 = scmp.eq.s32.totalorder %s479, 0
      %s482 = sadd.s32 %s481, 1
      %s483 = scalar_select %p480, %s481, %s482
      %p486 = pneg %p480
      %p487 = scmp.eq.s32.totalorder %s32, 1
      %p488 = por %p486, %p487
      %p489 = scmp.ne.s32.totalorder %s481, %s484
      %p490 = scmp.eq.s32.totalorder %s32, 0
      %p491 = por %p489, %p490
      %p492 = scmp.ne.s32.totalorder %s481, %s484
      %p493 = scmp.eq.s32.totalorder %s37, 1
      %p494 = por %p492, %p493
      %p495 = scmp.ne.s32.totalorder %s484, %s485
      %p496 = scmp.eq.s32.totalorder %s37, 0
      %p497 = por %p495, %p496
      %p498 = scmp.ne.s32.totalorder %s484, %s485
      %p499 = scmp.eq.s32.totalorder %s38, 1
      %p500 = por %p498, %p499
      %p502 = scmp.ne.s32.totalorder %s485, %s501
      %p503 = scmp.eq.s32.totalorder %s38, 0
      %p504 = por %p502, %p503
      %s505 = ssub.s32 %s40, %s47
      %p506 = scmp.eq.s32.totalorder %s505, 0
      %s508 = sadd.s32 %s507, 1
      %s509 = scalar_select %p506, %s507, %s508
      %p512 = pneg %p506
      %p513 = scmp.eq.s32.totalorder %s32, 1
      %p514 = por %p512, %p513
      %p515 = scmp.ne.s32.totalorder %s507, %s510
      %p516 = scmp.eq.s32.totalorder %s32, 0
      %p517 = por %p515, %p516
      %p518 = scmp.ne.s32.totalorder %s507, %s510
      %p519 = scmp.eq.s32.totalorder %s37, 1
      %p520 = por %p518, %p519
      %p521 = scmp.ne.s32.totalorder %s510, %s511
      %p522 = scmp.eq.s32.totalorder %s37, 0
      %p523 = por %p521, %p522
      %p524 = scmp.ne.s32.totalorder %s510, %s511
      %p525 = scmp.eq.s32.totalorder %s38, 1
      %p526 = por %p524, %p525
      %p528 = scmp.ne.s32.totalorder %s511, %s527
      %p529 = scmp.eq.s32.totalorder %s38, 0
      %p530 = por %p528, %p529
      %s531 = ssub.s32 %s40, %s47
      %p532 = scmp.eq.s32.totalorder %s531, 0
      %s534 = sadd.s32 %s533, 1
      %s535 = scalar_select %p532, %s533, %s534
      %p538 = pneg %p532
      %p539 = scmp.eq.s32.totalorder %s32, 1
      %p540 = por %p538, %p539
      %p541 = scmp.ne.s32.totalorder %s533, %s536
      %p542 = scmp.eq.s32.totalorder %s32, 0
      %p543 = por %p541, %p542
      %p544 = scmp.ne.s32.totalorder %s533, %s536
      %p545 = scmp.eq.s32.totalorder %s37, 1
      %p546 = por %p544, %p545
      %p547 = scmp.ne.s32.totalorder %s536, %s537
      %p548 = scmp.eq.s32.totalorder %s37, 0
      %p549 = por %p547, %p548
      %p550 = scmp.ne.s32.totalorder %s536, %s537
      %p551 = scmp.eq.s32.totalorder %s38, 1
      %p552 = por %p550, %p551
      %p554 = scmp.ne.s32.totalorder %s537, %s553
      %p555 = scmp.eq.s32.totalorder %s38, 0
      %p556 = por %p554, %p555
      %s557 = ssub.s32 %s40, %s47
      %p558 = scmp.eq.s32.totalorder %s557, 0
      %s560 = sadd.s32 %s559, 1
      %s561 = scalar_select %p558, %s559, %s560
      %p564 = pneg %p558
      %p565 = scmp.eq.s32.totalorder %s32, 1
      %p566 = por %p564, %p565
      %p567 = scmp.ne.s32.totalorder %s559, %s562
      %p568 = scmp.eq.s32.totalorder %s32, 0
      %p569 = por %p567, %p568
      %p570 = scmp.ne.s32.totalorder %s559, %s562
      %p571 = scmp.eq.s32.totalorder %s37, 1
      %p572 = por %p570, %p571
      %p573 = scmp.ne.s32.totalorder %s562, %s563
      %p574 = scmp.eq.s32.totalorder %s37, 0
      %p575 = por %p573, %p574
      %p576 = scmp.ne.s32.totalorder %s562, %s563
      %p577 = scmp.eq.s32.totalorder %s38, 1
      %p578 = por %p576, %p577
      %p580 = scmp.ne.s32.totalorder %s563, %s579
      %p581 = scmp.eq.s32.totalorder %s38, 0
      %p582 = por %p580, %p581
      %s583 = ssub.s32 %s40, %s47
      %p584 = scmp.eq.s32.totalorder %s583, 0
      %s586 = sadd.s32 %s585, 1
      %s587 = scalar_select %p584, %s585, %s586
      %p590 = pneg %p584
      %p591 = scmp.eq.s32.totalorder %s32, 1
      %p592 = por %p590, %p591
      %p593 = scmp.ne.s32.totalorder %s585, %s588
      %p594 = scmp.eq.s32.totalorder %s32, 0
      %p595 = por %p593, %p594
      %p596 = scmp.ne.s32.totalorder %s585, %s588
      %p597 = scmp.eq.s32.totalorder %s37, 1
      %p598 = por %p596, %p597
      %p599 = scmp.ne.s32.totalorder %s588, %s589
      %p600 = scmp.eq.s32.totalorder %s37, 0
      %p601 = por %p599, %p600
      %p602 = scmp.ne.s32.totalorder %s588, %s589
      %p603 = scmp.eq.s32.totalorder %s38, 1
      %p604 = por %p602, %p603
      %p606 = scmp.ne.s32.totalorder %s589, %s605
      %p607 = scmp.eq.s32.totalorder %s38, 0
      %p608 = por %p606, %p607
      %s609 = ssub.s32 %s40, %s47
      %p610 = scmp.eq.s32.totalorder %s609, 0
      %s612 = sadd.s32 %s611, 1
      %s613 = scalar_select %p610, %s611, %s612
      %p616 = pneg %p610
      %p617 = scmp.eq.s32.totalorder %s32, 1
      %p618 = por %p616, %p617
      %p619 = scmp.ne.s32.totalorder %s611, %s614
      %p620 = scmp.eq.s32.totalorder %s32, 0
      %p621 = por %p619, %p620
      %p622 = scmp.ne.s32.totalorder %s611, %s614
      %p623 = scmp.eq.s32.totalorder %s37, 1
      %p624 = por %p622, %p623
      %p625 = scmp.ne.s32.totalorder %s614, %s615
      %p626 = scmp.eq.s32.totalorder %s37, 0
      %p627 = por %p625, %p626
      %p628 = scmp.ne.s32.totalorder %s614, %s615
      %p629 = scmp.eq.s32.totalorder %s38, 1
      %p630 = por %p628, %p629
      %p632 = scmp.ne.s32.totalorder %s615, %s631
      %p633 = scmp.eq.s32.totalorder %s38, 0
      %p634 = por %p632, %p633
      %s635 = ssub.s32 %s39, %s51
      %p636 = scmp.eq.s32.totalorder %s635, 0
      %s638 = sadd.s32 %s637, 1
      %s639 = scalar_select %p636, %s637, %s638
      %p642 = pneg %p636
      %p643 = scmp.eq.s32.totalorder %s32, 1
      %p644 = por %p642, %p643
      %p645 = scmp.ne.s32.totalorder %s637, %s640
      %p646 = scmp.eq.s32.totalorder %s32, 0
      %p647 = por %p645, %p646
      %p648 = scmp.ne.s32.totalorder %s637, %s640
      %p649 = scmp.eq.s32.totalorder %s37, 1
      %p650 = por %p648, %p649
      %p651 = scmp.ne.s32.totalorder %s640, %s641
      %p652 = scmp.eq.s32.totalorder %s37, 0
      %p653 = por %p651, %p652
      %p654 = scmp.ne.s32.totalorder %s640, %s641
      %p655 = scmp.eq.s32.totalorder %s38, 1
      %p656 = por %p654, %p655
      %p658 = scmp.ne.s32.totalorder %s641, %s657
      %p659 = scmp.eq.s32.totalorder %s38, 0
      %p660 = por %p658, %p659
      %p661 = scmp.le.s32.totalorder 1, %s32
      %p662 = scmp.lt.s32.totalorder %s32, 3
      %p663 = pnand %p661, %p662
      %p664 = pneg %p663
      // Predicated region
      $region9: #{tpu_custom_call.1} parent=5 // pred_check
        _
      $region10: #{tpu_custom_call.1} parent=5 // pred_check_branch
        %666 = sbr.rel (%p663) target = $region12
      $region11: #{tpu_custom_call.1} parent=5 // pred_region
        %s667 = ssub.s32 %s32, 1
        // Predicated region
        $region13: #{tpu_custom_call.1} parent=11 // pred_check
          %p668 = pneg %p70
        $region14: #{tpu_custom_call.1} parent=11 // pred_check_branch
          %670 = sbr.rel (%p668) target = $region16
        $region15: #{tpu_custom_call.1} parent=11 // pred_region
          %s671 = smul.u32 2, %s41
          %s673 = ssub.s32 256, 256
          %674 = vsyncadd [#allocation4], %s673
          %s675 = smul.addr %s671, 128
          %s676 = scalar_lea.hbm %s0, %s675
          %s677 = sshll.u32 [#allocation3], 4
          %s678 = int_to_ptr.vmem [resolvable:$true] %s677
          %683 = dma.hbm_to_vmem [thread:$0]  %s676, 256, %s678, [#allocation4], 128, 128, 8
        $region16: #{tpu_custom_call.1} parent=11 // pred_fallthru
          _
        // Predicated region
        $region17: #{tpu_custom_call.1} parent=11 // pred_check
          %p684 = pneg %p91
        $region18: #{tpu_custom_call.1} parent=11 // pred_check_branch
          %686 = sbr.rel (%p684) target = $region20
        $region19: #{tpu_custom_call.1} parent=11 // pred_region
          _
        $region20: #{tpu_custom_call.1} parent=11 // pred_fallthru
          _
        // Predicated region
        $region21: #{tpu_custom_call.1} parent=11 // pred_check
          %p687 = pneg %p112
        $region22: #{tpu_custom_call.1} parent=11 // pred_check_branch
          %689 = sbr.rel (%p687) target = $region24
        $region23: #{tpu_custom_call.1} parent=11 // pred_region
          %s691 = ssub.s32 16, 16
          %692 = vsyncadd [#allocation7], %s691
          %s694 = sshll.u32 [#allocation6], 4
          %s695 = int_to_ptr.vmem [resolvable:$true] %s694
          %697 = dma.hbm_to_vmem [thread:$0]  %s2, 16, %s695, [#allocation7]
        $region24: #{tpu_custom_call.1} parent=11 // pred_fallthru
          _
        // Predicated region
        $region25: #{tpu_custom_call.1} parent=11 // pred_check
          %p698 = pneg %p133
        $region26: #{tpu_custom_call.1} parent=11 // pred_check_branch
          %700 = sbr.rel (%p698) target = $region28
        $region27: #{tpu_custom_call.1} parent=11 // pred_region
          %s702 = ssub.s32 16, 16
          %703 = vsyncadd [#allocation7], %s702
          %s705 = sshll.u32 [#allocation8], 4
          %s706 = int_to_ptr.vmem [resolvable:$true] %s705
          %708 = dma.hbm_to_vmem [thread:$0]  %s3, 16, %s706, [#allocation7]
        $region28: #{tpu_custom_call.1} parent=11 // pred_fallthru
          _
        // Predicated region
        $region29: #{tpu_custom_call.1} parent=11 // pred_check
          %p709 = pneg %p159
        $region30: #{tpu_custom_call.1} parent=11 // pred_check_branch
          %711 = sbr.rel (%p709) target = $region32
        $region31: #{tpu_custom_call.1} parent=11 // pred_region
          %s712 = smul.u32 2, %s41
          %p713 = scmp.lt.s32.totalorder %s712, 1
          %s714 = scalar_select %p713, %s712, 1
          %s715 = scalar_lea.vmem %s4, %s714
          %s716 = smul.u32 2, %s41
        $region32: #{tpu_custom_call.1} parent=11 // pred_fallthru
          _
      $region12: #{tpu_custom_call.1} parent=5 // pred_fallthru
        _
      %p717 = scmp.lt.s32.totalorder %s32, 2
      // Predicated region
      $region33: #{tpu_custom_call.1} parent=5 // pred_check
        %p718 = pneg %p717
      $region34: #{tpu_custom_call.1} parent=5 // pred_check_branch
        %720 = sbr.rel (%p718) target = $region36
      $region35: #{tpu_custom_call.1} parent=5 // pred_region
        // Predicated region
        $region37: #{tpu_custom_call.1} parent=35 // pred_check
          %p721 = pneg %p179
        $region38: #{tpu_custom_call.1} parent=35 // pred_check_branch
          %723 = sbr.rel (%p721) target = $region40
        $region39: #{tpu_custom_call.1} parent=35 // pred_region
          %p724 = scmp.lt.s32.totalorder %s40, 1
          %s725 = scalar_select %p724, %s40, 1
          %s726 = smul.addr %s725, 4
          %s727 = smul.addr %s726, 4
          %s728 = scalar_lea.vmem %s5, %s727
        $region40: #{tpu_custom_call.1} parent=35 // pred_fallthru
          _
        // Predicated region
        $region41: #{tpu_custom_call.1} parent=35 // pred_check
          %p729 = pneg %p205
        $region42: #{tpu_custom_call.1} parent=35 // pred_check_branch
          %731 = sbr.rel (%p729) target = $region44
        $region43: #{tpu_custom_call.1} parent=35 // pred_region
          %p732 = scmp.lt.s32.totalorder %s40, 1
          %s733 = scalar_select %p732, %s40, 1
          %s734 = scalar_lea.vmem %s6, %s733
        $region44: #{tpu_custom_call.1} parent=35 // pred_fallthru
          _
        // Predicated region
        $region45: #{tpu_custom_call.1} parent=35 // pred_check
          %p735 = pneg %p231
        $region46: #{tpu_custom_call.1} parent=35 // pred_check_branch
          %737 = sbr.rel (%p735) target = $region48
        $region47: #{tpu_custom_call.1} parent=35 // pred_region
          %p738 = scmp.lt.s32.totalorder %s40, 1
          %s739 = scalar_select %p738, %s40, 1
          %s740 = smul.addr %s739, 4
          %s741 = smul.addr %s740, 4
          %s742 = scalar_lea.vmem %s7, %s741
        $region48: #{tpu_custom_call.1} parent=35 // pred_fallthru
          _
        // Predicated region
        $region49: #{tpu_custom_call.1} parent=35 // pred_check
          %p743 = pneg %p257
        $region50: #{tpu_custom_call.1} parent=35 // pred_check_branch
          %745 = sbr.rel (%p743) target = $region52
        $region51: #{tpu_custom_call.1} parent=35 // pred_region
          %p746 = scmp.lt.s32.totalorder %s40, 1
          %s747 = scalar_select %p746, %s40, 1
          %s748 = scalar_lea.vmem %s8, %s747
        $region52: #{tpu_custom_call.1} parent=35 // pred_fallthru
          _
        // Predicated region
        $region53: #{tpu_custom_call.1} parent=35 // pred_check
          %p749 = pneg %p283
        $region54: #{tpu_custom_call.1} parent=35 // pred_check_branch
          %751 = sbr.rel (%p749) target = $region56
        $region55: #{tpu_custom_call.1} parent=35 // pred_region
          %p752 = scmp.lt.s32.totalorder %s40, 1
          %s753 = scalar_select %p752, %s40, 1
          %s754 = smul.addr %s753, 4
          %s755 = smul.addr %s754, 4
          %s756 = scalar_lea.vmem %s9, %s755
        $region56: #{tpu_custom_call.1} parent=35 // pred_fallthru
          _
        // Predicated region
        $region57: #{tpu_custom_call.1} parent=35 // pred_check
          %p757 = pneg %p309
        $region58: #{tpu_custom_call.1} parent=35 // pred_check_branch
          %759 = sbr.rel (%p757) target = $region60
        $region59: #{tpu_custom_call.1} parent=35 // pred_region
          %p760 = scmp.lt.s32.totalorder %s40, 1
          %s761 = scalar_select %p760, %s40, 1
          %s762 = scalar_lea.vmem %s10, %s761
        $region60: #{tpu_custom_call.1} parent=35 // pred_fallthru
          _
        // Predicated region
        $region61: #{tpu_custom_call.1} parent=35 // pred_check
          %p763 = pneg %p335
        $region62: #{tpu_custom_call.1} parent=35 // pred_check_branch
          %765 = sbr.rel (%p763) target = $region64
        $region63: #{tpu_custom_call.1} parent=35 // pred_region
          %p766 = scmp.lt.s32.totalorder %s40, 1
          %s767 = scalar_select %p766, %s40, 1
          %s768 = scalar_lea.vmem %s11, %s767
        $region64: #{tpu_custom_call.1} parent=35 // pred_fallthru
          _
        // Predicated region
        $region65: #{tpu_custom_call.1} parent=35 // pred_check
          %p769 = pneg %p361
        $region66: #{tpu_custom_call.1} parent=35 // pred_check_branch
          %771 = sbr.rel (%p769) target = $region68
        $region67: #{tpu_custom_call.1} parent=35 // pred_region
          %p772 = scmp.lt.s32.totalorder %s40, 1
          %s773 = scalar_select %p772, %s40, 1
          %s774 = scalar_lea.vmem %s12, %s773
        $region68: #{tpu_custom_call.1} parent=35 // pred_fallthru
          _
        // Predicated region
        $region69: #{tpu_custom_call.1} parent=35 // pred_check
          %p775 = pneg %p387
        $region70: #{tpu_custom_call.1} parent=35 // pred_check_branch
          %777 = sbr.rel (%p775) target = $region72
        $region71: #{tpu_custom_call.1} parent=35 // pred_region
          %p778 = scmp.lt.s32.totalorder %s40, 1
          %s779 = scalar_select %p778, %s40, 1
          %s780 = smul.addr %s779, 4
          %s781 = smul.addr %s780, 4
          %s782 = scalar_lea.vmem %s13, %s781
        $region72: #{tpu_custom_call.1} parent=35 // pred_fallthru
          _
        // Predicated region
        $region73: #{tpu_custom_call.1} parent=35 // pred_check
          %p783 = pneg %p413
        $region74: #{tpu_custom_call.1} parent=35 // pred_check_branch
          %785 = sbr.rel (%p783) target = $region76
        $region75: #{tpu_custom_call.1} parent=35 // pred_region
          %p786 = scmp.lt.s32.totalorder %s40, 1
          %s787 = scalar_select %p786, %s40, 1
          %s788 = scalar_lea.vmem %s14, %s787
        $region76: #{tpu_custom_call.1} parent=35 // pred_fallthru
          _
        // Predicated region
        $region77: #{tpu_custom_call.1} parent=35 // pred_check
          %p789 = pneg %p439
        $region78: #{tpu_custom_call.1} parent=35 // pred_check_branch
          %791 = sbr.rel (%p789) target = $region80
        $region79: #{tpu_custom_call.1} parent=35 // pred_region
          %p792 = scmp.lt.s32.totalorder %s40, 1
          %s793 = scalar_select %p792, %s40, 1
          %s794 = scalar_lea.vmem %s15, %s793
        $region80: #{tpu_custom_call.1} parent=35 // pred_fallthru
          _
        // Predicated region
        $region81: #{tpu_custom_call.1} parent=35 // pred_check
          %p795 = pneg %p465
        $region82: #{tpu_custom_call.1} parent=35 // pred_check_branch
          %797 = sbr.rel (%p795) target = $region84
        $region83: #{tpu_custom_call.1} parent=35 // pred_region
          %p798 = scmp.lt.s32.totalorder %s40, 1
          %s799 = scalar_select %p798, %s40, 1
          %s800 = scalar_lea.vmem %s16, %s799
        $region84: #{tpu_custom_call.1} parent=35 // pred_fallthru
          _
        // Predicated region
        $region85: #{tpu_custom_call.1} parent=35 // pred_check
          %p801 = pneg %p491
        $region86: #{tpu_custom_call.1} parent=35 // pred_check_branch
          %803 = sbr.rel (%p801) target = $region88
        $region87: #{tpu_custom_call.1} parent=35 // pred_region
          %p804 = scmp.lt.s32.totalorder %s40, 1
          %s805 = scalar_select %p804, %s40, 1
          %s806 = smul.addr %s805, 4
          %s807 = smul.addr %s806, 4
          %s808 = scalar_lea.vmem %s17, %s807
        $region88: #{tpu_custom_call.1} parent=35 // pred_fallthru
          _
        // Predicated region
        $region89: #{tpu_custom_call.1} parent=35 // pred_check
          %p809 = pneg %p517
        $region90: #{tpu_custom_call.1} parent=35 // pred_check_branch
          %811 = sbr.rel (%p809) target = $region92
        $region91: #{tpu_custom_call.1} parent=35 // pred_region
          %p812 = scmp.lt.s32.totalorder %s40, 1
          %s813 = scalar_select %p812, %s40, 1
          %s814 = scalar_lea.vmem %s18, %s813
        $region92: #{tpu_custom_call.1} parent=35 // pred_fallthru
          _
        // Predicated region
        $region93: #{tpu_custom_call.1} parent=35 // pred_check
          %p815 = pneg %p543
        $region94: #{tpu_custom_call.1} parent=35 // pred_check_branch
          %817 = sbr.rel (%p815) target = $region96
        $region95: #{tpu_custom_call.1} parent=35 // pred_region
          %p818 = scmp.lt.s32.totalorder %s40, 1
          %s819 = scalar_select %p818, %s40, 1
          %s820 = smul.addr %s819, 16
          %s821 = smul.addr %s820, 4
          %s822 = scalar_lea.vmem %s19, %s821
        $region96: #{tpu_custom_call.1} parent=35 // pred_fallthru
          _
        // Predicated region
        $region97: #{tpu_custom_call.1} parent=35 // pred_check
          %p823 = pneg %p569
        $region98: #{tpu_custom_call.1} parent=35 // pred_check_branch
          %825 = sbr.rel (%p823) target = $region100
        $region99: #{tpu_custom_call.1} parent=35 // pred_region
          %p826 = scmp.lt.s32.totalorder %s40, 1
          %s827 = scalar_select %p826, %s40, 1
          %s828 = scalar_lea.vmem %s20, %s827
        $region100: #{tpu_custom_call.1} parent=35 // pred_fallthru
          _
        // Predicated region
        $region101: #{tpu_custom_call.1} parent=35 // pred_check
          %p829 = pneg %p595
        $region102: #{tpu_custom_call.1} parent=35 // pred_check_branch
          %831 = sbr.rel (%p829) target = $region104
        $region103: #{tpu_custom_call.1} parent=35 // pred_region
          %p832 = scmp.lt.s32.totalorder %s40, 1
          %s833 = scalar_select %p832, %s40, 1
          %s834 = scalar_lea.vmem %s21, %s833
        $region104: #{tpu_custom_call.1} parent=35 // pred_fallthru
          _
        // Predicated region
        $region105: #{tpu_custom_call.1} parent=35 // pred_check
          %p835 = pneg %p621
        $region106: #{tpu_custom_call.1} parent=35 // pred_check_branch
          %837 = sbr.rel (%p835) target = $region108
        $region107: #{tpu_custom_call.1} parent=35 // pred_region
          %p838 = scmp.lt.s32.totalorder %s40, 1
          %s839 = scalar_select %p838, %s40, 1
          %s840 = scalar_lea.vmem %s22, %s839
        $region108: #{tpu_custom_call.1} parent=35 // pred_fallthru
          _
      $region36: #{tpu_custom_call.1} parent=5 // pred_fallthru
        _
      %p841 = scmp.le.s32.totalorder 1, %s32
      %p842 = scmp.lt.s32.totalorder %s32, 3
      %p843 = pnand %p841, %p842
      %p844 = pneg %p843
      // Predicated region
      $region109: #{tpu_custom_call.1} parent=5 // pred_check
        _
      $region110: #{tpu_custom_call.1} parent=5 // pred_check_branch
        %846 = sbr.rel (%p843) target = $region112
      $region111: #{tpu_custom_call.1} parent=5 // pred_region
        %s847 = ssub.s32 %s32, 1
        // Predicated region
        $region113: #{tpu_custom_call.1} parent=111 // pred_check
          %p848 = pneg %p70
        $region114: #{tpu_custom_call.1} parent=111 // pred_check_branch
          %850 = sbr.rel (%p848) target = $region116
        $region115: #{tpu_custom_call.1} parent=111 // pred_region
          %851 = dma.done [#allocation4], 256
        $region116: #{tpu_custom_call.1} parent=111 // pred_fallthru
          _
        // Predicated region
        $region117: #{tpu_custom_call.1} parent=111 // pred_check
          %p852 = pneg %p112
        $region118: #{tpu_custom_call.1} parent=111 // pred_check_branch
          %854 = sbr.rel (%p852) target = $region120
        $region119: #{tpu_custom_call.1} parent=111 // pred_region
          %855 = dma.done [#allocation7], 16
        $region120: #{tpu_custom_call.1} parent=111 // pred_fallthru
          _
        // Predicated region
        $region121: #{tpu_custom_call.1} parent=111 // pred_check
          %p856 = pneg %p133
        $region122: #{tpu_custom_call.1} parent=111 // pred_check_branch
          %858 = sbr.rel (%p856) target = $region124
        $region123: #{tpu_custom_call.1} parent=111 // pred_region
          %859 = dma.done [#allocation7], 16
        $region124: #{tpu_custom_call.1} parent=111 // pred_fallthru
          _
        %p860 = pneg %p70
        %p861 = pneg %p67
        %p862 = pneg %p91
        %p863 = pneg %p88
        %p864 = pneg %p112
        %p865 = pneg %p109
        %p866 = pneg %p133
        %p867 = pneg %p130
        %s868 = smul.u32 2, %s41
        %p869 = scmp.lt.s32.totalorder %s868, 1
        %s870 = scalar_select %p869, %s868, 1
        %s871 = scalar_lea.vmem %s4, %s870
        %p872 = pneg %p159
        %p873 = pneg %p156
        %p874 = scmp.lt.s32.totalorder %s42, 1
        %s875 = scalar_select %p874, %s42, 1
        %s876 = smul.addr %s875, 4
        %s877 = smul.addr %s876, 4
        %s878 = scalar_lea.vmem %s5, %s877
        %p879 = pneg %p185
        %p880 = pneg %p182
        %p881 = scmp.lt.s32.totalorder %s42, 1
        %s882 = scalar_select %p881, %s42, 1
        %s883 = scalar_lea.vmem %s6, %s882
        %p884 = pneg %p211
        %p885 = pneg %p208
        %p886 = scmp.lt.s32.totalorder %s42, 1
        %s887 = scalar_select %p886, %s42, 1
        %s888 = smul.addr %s887, 4
        %s889 = smul.addr %s888, 4
        %s890 = scalar_lea.vmem %s7, %s889
        %p891 = pneg %p237
        %p892 = pneg %p234
        %p893 = scmp.lt.s32.totalorder %s42, 1
        %s894 = scalar_select %p893, %s42, 1
        %s895 = scalar_lea.vmem %s8, %s894
        %p896 = pneg %p263
        %p897 = pneg %p260
        %p898 = scmp.lt.s32.totalorder %s42, 1
        %s899 = scalar_select %p898, %s42, 1
        %s900 = smul.addr %s899, 4
        %s901 = smul.addr %s900, 4
        %s902 = scalar_lea.vmem %s9, %s901
        %p903 = pneg %p289
        %p904 = pneg %p286
        %p905 = scmp.lt.s32.totalorder %s42, 1
        %s906 = scalar_select %p905, %s42, 1
        %s907 = scalar_lea.vmem %s10, %s906
        %p908 = pneg %p315
        %p909 = pneg %p312
        %p910 = scmp.lt.s32.totalorder %s42, 1
        %s911 = scalar_select %p910, %s42, 1
        %s912 = scalar_lea.vmem %s11, %s911
        %p913 = pneg %p341
        %p914 = pneg %p338
        %p915 = scmp.lt.s32.totalorder %s42, 1
        %s916 = scalar_select %p915, %s42, 1
        %s917 = scalar_lea.vmem %s12, %s916
        %p918 = pneg %p367
        %p919 = pneg %p364
        %p920 = scmp.lt.s32.totalorder %s42, 1
        %s921 = scalar_select %p920, %s42, 1
        %s922 = smul.addr %s921, 4
        %s923 = smul.addr %s922, 4
        %s924 = scalar_lea.vmem %s13, %s923
        %p925 = pneg %p393
        %p926 = pneg %p390
        %p927 = scmp.lt.s32.totalorder %s42, 1
        %s928 = scalar_select %p927, %s42, 1
        %s929 = scalar_lea.vmem %s14, %s928
        %p930 = pneg %p419
        %p931 = pneg %p416
        %p932 = scmp.lt.s32.totalorder %s42, 1
        %s933 = scalar_select %p932, %s42, 1
        %s934 = scalar_lea.vmem %s15, %s933
        %p935 = pneg %p445
        %p936 = pneg %p442
        %p937 = scmp.lt.s32.totalorder %s42, 1
        %s938 = scalar_select %p937, %s42, 1
        %s939 = scalar_lea.vmem %s16, %s938
        %p940 = pneg %p471
        %p941 = pneg %p468
        %p942 = scmp.lt.s32.totalorder %s42, 1
        %s943 = scalar_select %p942, %s42, 1
        %s944 = smul.addr %s943, 4
        %s945 = smul.addr %s944, 4
        %s946 = scalar_lea.vmem %s17, %s945
        %p947 = pneg %p497
        %p948 = pneg %p494
        %p949 = scmp.lt.s32.totalorder %s42, 1
        %s950 = scalar_select %p949, %s42, 1
        %s951 = scalar_lea.vmem %s18, %s950
        %p952 = pneg %p523
        %p953 = pneg %p520
        %p954 = scmp.lt.s32.totalorder %s42, 1
        %s955 = scalar_select %p954, %s42, 1
        %s956 = smul.addr %s955, 16
        %s957 = smul.addr %s956, 4
        %s958 = scalar_lea.vmem %s19, %s957
        %p959 = pneg %p549
        %p960 = pneg %p546
        %p961 = scmp.lt.s32.totalorder %s42, 1
        %s962 = scalar_select %p961, %s42, 1
        %s963 = scalar_lea.vmem %s20, %s962
        %p964 = pneg %p575
        %p965 = pneg %p572
        %p966 = scmp.lt.s32.totalorder %s42, 1
        %s967 = scalar_select %p966, %s42, 1
        %s968 = scalar_lea.vmem %s21, %s967
        %p969 = pneg %p601
        %p970 = pneg %p598
        %p971 = scmp.lt.s32.totalorder %s42, 1
        %s972 = scalar_select %p971, %s42, 1
        %s973 = scalar_lea.vmem %s22, %s972
        %p974 = pneg %p627
        %p975 = pneg %p624
        %p976 = pneg %p653
        %p977 = pneg %p650
        %s978 = smul.u32 2, %s41
        %s979 = smul.u32 2, %s41
        %p980 = scmp.lt.s32.totalorder %s979, 1
        %s981 = scalar_select %p980, %s979, 1
        %s982 = scalar_lea.vmem %s4, %s981
        %s983 = smul.u32 2, %s41
        %p984 = scmp.lt.s32.totalorder %s42, 1
        %s985 = scalar_select %p984, %s42, 1
        %s986 = smul.addr %s985, 4
        %s987 = smul.addr %s986, 4
        %s988 = scalar_lea.vmem %s5, %s987
        %p989 = scmp.lt.s32.totalorder %s42, 1
        %s990 = scalar_select %p989, %s42, 1
        %s991 = scalar_lea.vmem %s6, %s990
        %p992 = scmp.lt.s32.totalorder %s42, 1
        %s993 = scalar_select %p992, %s42, 1
        %s994 = smul.addr %s993, 4
        %s995 = smul.addr %s994, 4
        %s996 = scalar_lea.vmem %s7, %s995
        %p997 = scmp.lt.s32.totalorder %s42, 1
        %s998 = scalar_select %p997, %s42, 1
        %s999 = scalar_lea.vmem %s8, %s998
        %p1000 = scmp.lt.s32.totalorder %s42, 1
        %s1001 = scalar_select %p1000, %s42, 1
        %s1002 = smul.addr %s1001, 4
        %s1003 = smul.addr %s1002, 4
        %s1004 = scalar_lea.vmem %s9, %s1003
        %p1005 = scmp.lt.s32.totalorder %s42, 1
        %s1006 = scalar_select %p1005, %s42, 1
        %s1007 = scalar_lea.vmem %s10, %s1006
        %p1008 = scmp.lt.s32.totalorder %s42, 1
        %s1009 = scalar_select %p1008, %s42, 1
        %s1010 = scalar_lea.vmem %s11, %s1009
        %p1011 = scmp.lt.s32.totalorder %s42, 1
        %s1012 = scalar_select %p1011, %s42, 1
        %s1013 = scalar_lea.vmem %s12, %s1012
        %p1014 = scmp.lt.s32.totalorder %s42, 1
        %s1015 = scalar_select %p1014, %s42, 1
        %s1016 = smul.addr %s1015, 4
        %s1017 = smul.addr %s1016, 4
        %s1018 = scalar_lea.vmem %s13, %s1017
        %p1019 = scmp.lt.s32.totalorder %s42, 1
        %s1020 = scalar_select %p1019, %s42, 1
        %s1021 = scalar_lea.vmem %s14, %s1020
        %p1022 = scmp.lt.s32.totalorder %s42, 1
        %s1023 = scalar_select %p1022, %s42, 1
        %s1024 = scalar_lea.vmem %s15, %s1023
        %p1025 = scmp.lt.s32.totalorder %s42, 1
        %s1026 = scalar_select %p1025, %s42, 1
        %s1027 = scalar_lea.vmem %s16, %s1026
        %p1028 = scmp.lt.s32.totalorder %s42, 1
        %s1029 = scalar_select %p1028, %s42, 1
        %s1030 = smul.addr %s1029, 4
        %s1031 = smul.addr %s1030, 4
        %s1032 = scalar_lea.vmem %s17, %s1031
        %p1033 = scmp.lt.s32.totalorder %s42, 1
        %s1034 = scalar_select %p1033, %s42, 1
        %s1035 = scalar_lea.vmem %s18, %s1034
        %p1036 = scmp.lt.s32.totalorder %s42, 1
        %s1037 = scalar_select %p1036, %s42, 1
        %s1038 = smul.addr %s1037, 16
        %s1039 = smul.addr %s1038, 4
        %s1040 = scalar_lea.vmem %s19, %s1039
        %p1041 = scmp.lt.s32.totalorder %s42, 1
        %s1042 = scalar_select %p1041, %s42, 1
        %s1043 = scalar_lea.vmem %s20, %s1042
        %p1044 = scmp.lt.s32.totalorder %s42, 1
        %s1045 = scalar_select %p1044, %s42, 1
        %s1046 = scalar_lea.vmem %s21, %s1045
        %p1047 = scmp.lt.s32.totalorder %s42, 1
        %s1048 = scalar_select %p1047, %s42, 1
        %s1049 = scalar_lea.vmem %s22, %s1048
        %s1050 = smul.u32 2, %s41
        %p1052 = scmp.eq.s32.totalorder %s42, 0
        // Predicated region
        $region125: #{tpu_custom_call.1} parent=111 // pred_check
          %p1053 = pneg %p1052
        $region126: #{tpu_custom_call.1} parent=111 // pred_check_branch
          %1055 = sbr.rel (%p1053) target = $region128
        $region127: #{tpu_custom_call.1} parent=111 // pred_region
          %v1056 = vld [vmem:[#allocation3] sm:$0xff]
          %v1057 = vld [vmem:[#allocation3 + $0x8] sm:$0xff]
          %v1058 = vld [vmem:[%s1] sm:$0xff]
          %v1059 = vadd.f32 %v1056, %v1058
          %v1060 = vadd.f32 %v1057, %v1058
          %v1061 = vld [vmem:[#allocation6] sm:$0x1]
          %v1062 = vld [vmem:[#allocation8] sm:$0x1]
          %vm1063 = vcmask 261120
          %v1064 = vsel %vm1063, %v1059, 0.0
          %1065 = vadd.xlane.f32.xlu0 %v1064
          %v1066 = vpop.xlane.xlu0 %1065
          %v1067 = vsel %vm1063, %v1060, 0.0
          %1068 = vadd.xlane.f32.xlu0 %v1067
          %v1069 = vpop.xlane.xlu0 %1068
          %v1070 = vrcp.pop 32.0
          %v1071 = vmul.f32 %v1066, %v1070
          %v1072 = vmul.f32 %v1069, %v1070
          %v1073 = vsub.f32 %v1059, %v1071
          %v1074 = vsub.f32 %v1060, %v1072
          %v1075 = vmul.f32 %v1073, %v1073
          %v1076 = vmul.f32 %v1074, %v1074
          %v1077 = vsel %vm1063, %v1075, 0.0
          %1078 = vadd.xlane.f32.xlu0 %v1077
          %v1079 = vpop.xlane.xlu0 %1078
          %v1080 = vsel %vm1063, %v1076, 0.0
          %1081 = vadd.xlane.f32.xlu0 %v1080
          %v1082 = vpop.xlane.xlu0 %1081
          %v1083 = vmul.f32 %v1079, %v1070
          %v1084 = vmul.f32 %v1082, %v1070
          %v1085 = vadd.f32 %v1083, 1e-12
          %v1086 = vadd.f32 %v1084, 1e-12
          %v1087 = vrsqrt.pop %v1085
          %v1088 = vrsqrt.pop %v1086
          %v1089 = vmul.f32 %v1073, %v1087
          %v1090 = vmul.f32 %v1074, %v1088
          %v1092 = vlaneseq
          %v1093 = vshrl.u32 %v1092, 7
          %v1094 = vsub.s32 0, %v1093
          %v1095 = vrot.slane %v1061, %v1094
          %v1097 = vmul.f32 %v1089, %v1095
          %v1098 = vmul.f32 %v1090, %v1095
          %v1100 = vlaneseq
          %v1101 = vshrl.u32 %v1100, 7
          %v1102 = vsub.s32 0, %v1101
          %v1103 = vrot.slane %v1062, %v1102
          %v1105 = vadd.f32 %v1097, %v1103
          %v1106 = vadd.f32 %v1098, %v1103
          %1107 = vst.msk [vmem:[#allocation2] sm:$0xff] %vm1063, %v1105
          %1108 = vst.msk [vmem:[#allocation2 + $0x8] sm:$0xff] %vm1063, %v1106
        $region128: #{tpu_custom_call.1} parent=111 // pred_fallthru
          _
        %v1109 = vld [vmem:[#allocation2] sm:$0xff]
        %v1110 = vld [vmem:[#allocation2 + $0x8] sm:$0xff]
        %v1111 = vld [vmem:[%s982] sm:$0x1]
        %v1112 = vld [vmem:[%s982 + $0x1] sm:$0x1]
        %v1115 = vlaneseq
        %v1116 = vshrl.u32 %v1115, 7
        %v1117 = vsub.s32 0, %v1116
        %v1118 = vrot.slane %v1111, %v1117
        %v1119 = vlaneseq
        %v1120 = vshrl.u32 %v1119, 7
        %v1121 = vsub.s32 0, %v1120
        %v1122 = vrot.slane %v1112, %v1121
        %v1125 = vpack.c.bf16 %v1110, %v1109
        %v1126 = vld [vmem:[%s988] sm:$0xf]
        %v1127 = vld [vmem:[%s988 + $0x4] sm:$0xf]
        %v1128 = vld [vmem:[%s988 + $0x8] sm:$0xf]
        %v1129 = vld [vmem:[%s988 + $0xc] sm:$0xf]
        %v1130 = vld [vmem:[%s991] sm:$0x1]
        %v1132 = vlaneseq
        %v1133 = vshrl.u32 %v1132, 7
        %v1134 = vsub.s32 0, %v1133
        %v1135 = vrot.slane %v1130, %v1134
        %v1141 = vunpack.c.l.b16 %v1126
        %v1142 = vunpack.c.l.b16 %v1127
        %v1143 = vunpack.c.l.b16 %v1128
        %v1144 = vunpack.c.l.b16 %v1129
        %v1145 = vpack.c.b16 %v1142, %v1141
        %v1146 = vpack.c.b16 %v1144, %v1143
        %vm1149 = vcmask 261120
        %v1151 = vsel %vm1149, %v1125, 0
        %1153 = vmatprep.subr.bf16.mxu0 0
        %1154 = vmatpush1.bf16.msra.mxu0 %v1145
        %1155 = vmatprep.subr.bf16.mxu0 0
        %1156 = vmatpush1.bf16.msra.mxu0 %v1146
        %1157 = vmatprep.subr.bf16.mxu0 0
        %1158 = vmatpush1.bf16.msra.mxu0 0
        %1159 = vmatprep.subr.bf16.mxu0 0
        %1160 = vmatpush1.bf16.msra.mxu0 0
        %1161 = vmatprep.subr.bf16.mxu0 0
        %1162 = vmatpush1.bf16.msra.mxu0 0
        %1163 = vmatprep.subr.bf16.mxu0 0
        %1164 = vmatpush1.bf16.msra.mxu0 0
        %1165 = vmatprep.subr.bf16.mxu0 0
        %1166 = vmatpush1.bf16.msra.mxu0 0
        %1167 = vmatprep.subr.bf16.mxu0 0
        %1168 = vmatpush1.bf16.msra.mxu0 0
        %1169 = vmatprep.subr.bf16.mxu0 0
        %1170 = vmatpush1.bf16.msra.mxu0 0
        %1171 = vmatprep.subr.bf16.mxu0 0
        %1172 = vmatpush1.bf16.msra.mxu0 0
        %1173 = vmatprep.subr.bf16.mxu0 0
        %1174 = vmatpush1.bf16.msra.mxu0 0
        %1175 = vmatprep.subr.bf16.mxu0 0
        %1176 = vmatpush1.bf16.msra.mxu0 0
        %1177 = vmatprep.subr.bf16.mxu0 0
        %1178 = vmatpush1.bf16.msra.mxu0 0
        %1179 = vmatprep.subr.bf16.mxu0 0
        %1180 = vmatpush1.bf16.msra.mxu0 0
        %1181 = vmatprep.subr.bf16.mxu0 0
        %1182 = vmatpush1.bf16.msra.mxu0 0
        %1183 = vmatprep.subr.bf16.mxu0 0
        %1184 = vmatpush1.bf16.msra.mxu0 0
        %1185 = vmatprep.mubr.bf16.mxu0 0
        %1186 = vmatmul.mubr.bf16.gmra.mrb[0].mxu0 %v1151
        %v1187 = vpop.f32.mrb[0].mxu0
        %v1188 = vadd.f32 %v1135, %v1187
        %v1189 = vpop.f32.mrb[0].mxu0
        %v1190 = vpop.f32.mrb[0].mxu0
        %v1191 = vadd.f32 %v1135, %v1190
        %v1192 = vpop.f32.mrb[0].mxu0
        %1193 = vdwg.mxu0
        %v1194 = vld [vmem:[%s996] sm:$0xf]
        %v1195 = vld [vmem:[%s996 + $0x4] sm:$0xf]
        %v1196 = vld [vmem:[%s996 + $0x8] sm:$0xf]
        %v1197 = vld [vmem:[%s996 + $0xc] sm:$0xf]
        %v1198 = vld [vmem:[%s999] sm:$0x1]
        %v1200 = vlaneseq
        %v1201 = vshrl.u32 %v1200, 7
        %v1202 = vsub.s32 0, %v1201
        %v1203 = vrot.slane %v1198, %v1202
        %v1209 = vunpack.c.l.b16 %v1194
        %v1210 = vunpack.c.l.b16 %v1195
        %v1211 = vunpack.c.l.b16 %v1196
        %v1212 = vunpack.c.l.b16 %v1197
        %v1213 = vpack.c.b16 %v1210, %v1209
        %v1214 = vpack.c.b16 %v1212, %v1211
        %1217 = vmatprep.subr.bf16.mxu0 0
        %1218 = vmatpush1.bf16.msra.mxu0 %v1213
        %1219 = vmatprep.subr.bf16.mxu0 0
        %1220 = vmatpush1.bf16.msra.mxu0 %v1214
        %1221 = vmatprep.subr.bf16.mxu0 0
        %1222 = vmatpush1.bf16.msra.mxu0 0
        %1223 = vmatprep.subr.bf16.mxu0 0
        %1224 = vmatpush1.bf16.msra.mxu0 0
        %1225 = vmatprep.subr.bf16.mxu0 0
        %1226 = vmatpush1.bf16.msra.mxu0 0
        %1227 = vmatprep.subr.bf16.mxu0 0
        %1228 = vmatpush1.bf16.msra.mxu0 0
        %1229 = vmatprep.subr.bf16.mxu0 0
        %1230 = vmatpush1.bf16.msra.mxu0 0
        %1231 = vmatprep.subr.bf16.mxu0 0
        %1232 = vmatpush1.bf16.msra.mxu0 0
        %1233 = vmatprep.subr.bf16.mxu0 0
        %1234 = vmatpush1.bf16.msra.mxu0 0
        %1235 = vmatprep.subr.bf16.mxu0 0
        %1236 = vmatpush1.bf16.msra.mxu0 0
        %1237 = vmatprep.subr.bf16.mxu0 0
        %1238 = vmatpush1.bf16.msra.mxu0 0
        %1239 = vmatprep.subr.bf16.mxu0 0
        %1240 = vmatpush1.bf16.msra.mxu0 0
        %1241 = vmatprep.subr.bf16.mxu0 0
        %1242 = vmatpush1.bf16.msra.mxu0 0
        %1243 = vmatprep.subr.bf16.mxu0 0
        %1244 = vmatpush1.bf16.msra.mxu0 0
        %1245 = vmatprep.subr.bf16.mxu0 0
        %1246 = vmatpush1.bf16.msra.mxu0 0
        %1247 = vmatprep.subr.bf16.mxu0 0
        %1248 = vmatpush1.bf16.msra.mxu0 0
        %1249 = vmatprep.mubr.bf16.mxu0 0
        %1250 = vmatmul.mubr.bf16.gmra.mrb[0].mxu0 %v1151
        %v1251 = vpop.f32.mrb[0].mxu0
        %v1252 = vadd.f32 %v1203, %v1251
        %v1253 = vpop.f32.mrb[0].mxu0
        %v1254 = vpop.f32.mrb[0].mxu0
        %v1255 = vadd.f32 %v1203, %v1254
        %v1256 = vpop.f32.mrb[0].mxu0
        %1257 = vdwg.mxu0
        %v1258 = vld [vmem:[%s1004] sm:$0xf]
        %v1259 = vld [vmem:[%s1004 + $0x4] sm:$0xf]
        %v1260 = vld [vmem:[%s1004 + $0x8] sm:$0xf]
        %v1261 = vld [vmem:[%s1004 + $0xc] sm:$0xf]
        %v1262 = vld [vmem:[%s1007] sm:$0x1]
        %v1264 = vlaneseq
        %v1265 = vshrl.u32 %v1264, 7
        %v1266 = vsub.s32 0, %v1265
        %v1267 = vrot.slane %v1262, %v1266
        %v1273 = vunpack.c.l.b16 %v1258
        %v1274 = vunpack.c.l.b16 %v1259
        %v1275 = vunpack.c.l.b16 %v1260
        %v1276 = vunpack.c.l.b16 %v1261
        %v1277 = vpack.c.b16 %v1274, %v1273
        %v1278 = vpack.c.b16 %v1276, %v1275
        %1281 = vmatprep.subr.bf16.mxu0 0
        %1282 = vmatpush1.bf16.msra.mxu0 %v1277
        %1283 = vmatprep.subr.bf16.mxu0 0
        %1284 = vmatpush1.bf16.msra.mxu0 %v1278
        %1285 = vmatprep.subr.bf16.mxu0 0
        %1286 = vmatpush1.bf16.msra.mxu0 0
        %1287 = vmatprep.subr.bf16.mxu0 0
        %1288 = vmatpush1.bf16.msra.mxu0 0
        %1289 = vmatprep.subr.bf16.mxu0 0
        %1290 = vmatpush1.bf16.msra.mxu0 0
        %1291 = vmatprep.subr.bf16.mxu0 0
        %1292 = vmatpush1.bf16.msra.mxu0 0
        %1293 = vmatprep.subr.bf16.mxu0 0
        %1294 = vmatpush1.bf16.msra.mxu0 0
        %1295 = vmatprep.subr.bf16.mxu0 0
        %1296 = vmatpush1.bf16.msra.mxu0 0
        %1297 = vmatprep.subr.bf16.mxu0 0
        %1298 = vmatpush1.bf16.msra.mxu0 0
        %1299 = vmatprep.subr.bf16.mxu0 0
        %1300 = vmatpush1.bf16.msra.mxu0 0
        %1301 = vmatprep.subr.bf16.mxu0 0
        %1302 = vmatpush1.bf16.msra.mxu0 0
        %1303 = vmatprep.subr.bf16.mxu0 0
        %1304 = vmatpush1.bf16.msra.mxu0 0
        %1305 = vmatprep.subr.bf16.mxu0 0
        %1306 = vmatpush1.bf16.msra.mxu0 0
        %1307 = vmatprep.subr.bf16.mxu0 0
        %1308 = vmatpush1.bf16.msra.mxu0 0
        %1309 = vmatprep.subr.bf16.mxu0 0
        %1310 = vmatpush1.bf16.msra.mxu0 0
        %1311 = vmatprep.subr.bf16.mxu0 0
        %1312 = vmatpush1.bf16.msra.mxu0 0
        %1313 = vmatprep.mubr.bf16.mxu0 0
        %1314 = vmatmul.mubr.bf16.gmra.mrb[0].mxu0 %v1151
        %v1315 = vpop.f32.mrb[0].mxu0
        %v1316 = vadd.f32 %v1267, %v1315
        %v1317 = vpop.f32.mrb[0].mxu0
        %v1318 = vpop.f32.mrb[0].mxu0
        %v1319 = vadd.f32 %v1267, %v1318
        %v1320 = vpop.f32.mrb[0].mxu0
        %1321 = vdwg.mxu0
        %v1322 = vpack.c.bf16 %v1188, %v1188
        %v1323 = vpack.c.bf16 %v1191, %v1191
        %v1324 = vpack.c.bf16 %v1252, %v1252
        %v1325 = vpack.c.bf16 %v1255, %v1255
        %v1326 = vpack.c.bf16 %v1316, %v1316
        %v1327 = vpack.c.bf16 %v1319, %v1319
        %v1328 = vld [vmem:[%s1010] sm:$0x1]
        %v1329 = vunpack.c.l.bf16 %v1328
        %v1330 = vld [vmem:[%s1013] sm:$0x1]
        %v1331 = vunpack.c.l.bf16 %v1330
        %v1332 = vld [vmem:[%s1018] sm:$0xf]
        %v1333 = vld [vmem:[%s1018 + $0x4] sm:$0xf]
        %v1334 = vld [vmem:[%s1018 + $0x8] sm:$0xf]
        %v1335 = vld [vmem:[%s1018 + $0xc] sm:$0xf]
        %v1336 = vld [vmem:[%s1021] sm:$0x1]
        %vm1337 = vcmask 64512
        %v1339 = vsel %vm1337, %v1322, 0
        %v1342 = vsel %vm1337, %v1324, 0
        %1344 = vmatprep.subr.bf16.mxu0 0
        %1345 = vmatpush1.bf16.xpose.msra.mxu0 %v1342
        %1346 = vmatprep.subr.bf16.mxu0 0
        %1347 = vmatpush1.bf16.xpose.msra.mxu0 0
        %1348 = vmatprep.subr.bf16.mxu0 0
        %1349 = vmatpush1.bf16.xpose.msra.mxu0 0
        %1350 = vmatprep.subr.bf16.mxu0 0
        %1351 = vmatpush1.bf16.xpose.msra.mxu0 0
        %1352 = vmatprep.subr.bf16.mxu0 0
        %1353 = vmatpush1.bf16.xpose.msra.mxu0 0
        %1354 = vmatprep.subr.bf16.mxu0 0
        %1355 = vmatpush1.bf16.xpose.msra.mxu0 0
        %1356 = vmatprep.subr.bf16.mxu0 0
        %1357 = vmatpush1.bf16.xpose.msra.mxu0 0
        %1358 = vmatprep.subr.bf16.mxu0 0
        %1359 = vmatpush1.bf16.xpose.msra.mxu0 0
        %1360 = vmatprep.subr.bf16.mxu0 0
        %1361 = vmatpush1.bf16.xpose.msra.mxu0 0
        %1362 = vmatprep.subr.bf16.mxu0 0
        %1363 = vmatpush1.bf16.xpose.msra.mxu0 0
        %1364 = vmatprep.subr.bf16.mxu0 0
        %1365 = vmatpush1.bf16.xpose.msra.mxu0 0
        %1366 = vmatprep.subr.bf16.mxu0 0
        %1367 = vmatpush1.bf16.xpose.msra.mxu0 0
        %1368 = vmatprep.subr.bf16.mxu0 0
        %1369 = vmatpush1.bf16.xpose.msra.mxu0 0
        %1370 = vmatprep.subr.bf16.mxu0 0
        %1371 = vmatpush1.bf16.xpose.msra.mxu0 0
        %1372 = vmatprep.subr.bf16.mxu0 0
        %1373 = vmatpush1.bf16.xpose.msra.mxu0 0
        %1374 = vmatprep.subr.bf16.mxu0 0
        %1375 = vmatpush1.bf16.xpose.msra.mxu0 0
        %1376 = vmatprep.mubr.bf16.mxu0 0
        %1377 = vmatmul.mubr.bf16.gmra.mrb[0].mxu0 %v1339
        %v1378 = vpop.f32.mrb[0].mxu0
        %v1379 = vadd.f32 %v1118, %v1378
        %v1380 = vpop.f32.mrb[0].mxu0
        %v1381 = vpop.f32.mrb[0].mxu0
        %v1382 = vpop.f32.mrb[0].mxu0
        %1383 = vdwg.mxu0
        %v1385 = vsel %vm1337, %v1323, 0
        %v1388 = vsel %vm1337, %v1325, 0
        %1390 = vmatprep.subr.bf16.mxu0 0
        %1391 = vmatpush1.bf16.xpose.msra.mxu0 %v1388
        %1392 = vmatprep.subr.bf16.mxu0 0
        %1393 = vmatpush1.bf16.xpose.msra.mxu0 0
        %1394 = vmatprep.subr.bf16.mxu0 0
        %1395 = vmatpush1.bf16.xpose.msra.mxu0 0
        %1396 = vmatprep.subr.bf16.mxu0 0
        %1397 = vmatpush1.bf16.xpose.msra.mxu0 0
        %1398 = vmatprep.subr.bf16.mxu0 0
        %1399 = vmatpush1.bf16.xpose.msra.mxu0 0
        %1400 = vmatprep.subr.bf16.mxu0 0
        %1401 = vmatpush1.bf16.xpose.msra.mxu0 0
        %1402 = vmatprep.subr.bf16.mxu0 0
        %1403 = vmatpush1.bf16.xpose.msra.mxu0 0
        %1404 = vmatprep.subr.bf16.mxu0 0
        %1405 = vmatpush1.bf16.xpose.msra.mxu0 0
        %1406 = vmatprep.subr.bf16.mxu0 0
        %1407 = vmatpush1.bf16.xpose.msra.mxu0 0
        %1408 = vmatprep.subr.bf16.mxu0 0
        %1409 = vmatpush1.bf16.xpose.msra.mxu0 0
        %1410 = vmatprep.subr.bf16.mxu0 0
        %1411 = vmatpush1.bf16.xpose.msra.mxu0 0
        %1412 = vmatprep.subr.bf16.mxu0 0
        %1413 = vmatpush1.bf16.xpose.msra.mxu0 0
        %1414 = vmatprep.subr.bf16.mxu0 0
        %1415 = vmatpush1.bf16.xpose.msra.mxu0 0
        %1416 = vmatprep.subr.bf16.mxu0 0
        %1417 = vmatpush1.bf16.xpose.msra.mxu0 0
        %1418 = vmatprep.subr.bf16.mxu0 0
        %1419 = vmatpush1.bf16.xpose.msra.mxu0 0
        %1420 = vmatprep.subr.bf16.mxu0 0
        %1421 = vmatpush1.bf16.xpose.msra.mxu0 0
        %1422 = vmatprep.mubr.bf16.mxu0 0
        %1423 = vmatmul.mubr.bf16.gmra.mrb[0].mxu0 %v1385
        %v1424 = vpop.f32.mrb[0].mxu0
        %v1425 = vadd.f32 %v1122, %v1424
        %v1426 = vpop.f32.mrb[0].mxu0
        %v1427 = vpop.f32.mrb[0].mxu0
        %v1428 = vpop.f32.mrb[0].mxu0
        %1429 = vdwg.mxu0
        %v1430 = vunpack.c.l.bf16 %v1322
        %v1431 = vunpack.c.l.bf16 %v1323
        %v1432 = vlaneseq
        %v1433 = vshrl.u32 %v1432, 7
        %v1434 = vsub.s32 0, %v1433
        %v1435 = vrot.slane %v1329, %v1434
        %v1436 = vmul.f32 %v1430, %v1435
        %v1437 = vmul.f32 %v1431, %v1435
        %v1438 = vsel %vm1337, %v1436, 0.0
        %1439 = vadd.xlane.f32.xlu0 %v1438
        %v1440 = vpop.xlane.xlu0 %1439
        %v1441 = vsel %vm1337, %v1437, 0.0
        %1442 = vadd.xlane.f32.xlu0 %v1441
        %v1443 = vpop.xlane.xlu0 %1442
        %v1444 = vsel %vm1337, %v1379, -inf
        %1445 = vmax.xlane.f32.xlu0 %v1444
        %v1446 = vpop.xlane.xlu0 %1445
        %v1447 = vsel %vm1337, %v1425, -inf
        %1448 = vmax.xlane.f32.xlu0 %v1447
        %v1449 = vpop.xlane.xlu0 %1448
        %v1450 = vmax.f32 %v1446, %v1440
        %v1451 = vmax.f32 %v1449, %v1443
        %v1452 = vsub.f32 %v1379, %v1450
        %v1453 = vsub.f32 %v1425, %v1451
        %v1454 = vmul.f32 %v1452, 1.442695
        %v1455 = vpow.pop %v1454
        %v1456 = vmul.f32 %v1453, 1.442695
        %v1457 = vpow.pop %v1456
        %v1458 = vsub.f32 %v1440, %v1450
        %v1459 = vsub.f32 %v1443, %v1451
        %v1460 = vmul.f32 %v1458, 1.442695
        %v1461 = vpow.pop %v1460
        %v1462 = vmul.f32 %v1459, 1.442695
        %v1463 = vpow.pop %v1462
        %v1464 = vsel %vm1337, %v1455, 0.0
        %1465 = vadd.xlane.f32.xlu0 %v1464
        %v1466 = vpop.xlane.xlu0 %1465
        %v1467 = vsel %vm1337, %v1457, 0.0
        %1468 = vadd.xlane.f32.xlu0 %v1467
        %v1469 = vpop.xlane.xlu0 %1468
        %v1470 = vadd.f32 %v1466, %v1461
        %v1471 = vadd.f32 %v1469, %v1463
        %v1472 = vrcp.pop %v1470
        %v1473 = vrcp.pop %v1471
        %v1474 = vmul.f32 %v1470, %v1472
        %v1475 = vmul.f32 %v1471, %v1473
        %v1476 = vsub.f32 2.0, %v1474
        %v1477 = vsub.f32 2.0, %v1475
        %v1478 = vmul.f32 %v1472, %v1476
        %v1479 = vmul.f32 %v1473, %v1477
        %v1480 = vpack.c.bf16 %v1455, %v1455
        %v1481 = vpack.c.bf16 %v1457, %v1457
        %v1482 = vlaneseq
        %v1483 = vshrl.u32 %v1482, 7
        %v1484 = vsub.s32 0, %v1483
        %v1485 = vrot.slane %v1331, %v1484
        %v1486 = vmul.f32 %v1461, %v1485
        %v1487 = vmul.f32 %v1463, %v1485
        %v1489 = vsel %vm1337, %v1480, 0
        %vm1491 = vcmask 1043456
        %v1493 = vsel %vm1491, %v1326, 0
        %1495 = vmatprep.subr.bf16.mxu0 0
        %1496 = vmatpush1.bf16.msra.mxu0 %v1493
        %1497 = vmatprep.subr.bf16.mxu0 0
        %1498 = vmatpush1.bf16.msra.mxu0 0
        %1499 = vmatprep.subr.bf16.mxu0 0
        %1500 = vmatpush1.bf16.msra.mxu0 0
        %1501 = vmatprep.subr.bf16.mxu0 0
        %1502 = vmatpush1.bf16.msra.mxu0 0
        %1503 = vmatprep.subr.bf16.mxu0 0
        %1504 = vmatpush1.bf16.msra.mxu0 0
        %1505 = vmatprep.subr.bf16.mxu0 0
        %1506 = vmatpush1.bf16.msra.mxu0 0
        %1507 = vmatprep.subr.bf16.mxu0 0
        %1508 = vmatpush1.bf16.msra.mxu0 0
        %1509 = vmatprep.subr.bf16.mxu0 0
        %1510 = vmatpush1.bf16.msra.mxu0 0
        %1511 = vmatprep.subr.bf16.mxu0 0
        %1512 = vmatpush1.bf16.msra.mxu0 0
        %1513 = vmatprep.subr.bf16.mxu0 0
        %1514 = vmatpush1.bf16.msra.mxu0 0
        %1515 = vmatprep.subr.bf16.mxu0 0
        %1516 = vmatpush1.bf16.msra.mxu0 0
        %1517 = vmatprep.subr.bf16.mxu0 0
        %1518 = vmatpush1.bf16.msra.mxu0 0
        %1519 = vmatprep.subr.bf16.mxu0 0
        %1520 = vmatpush1.bf16.msra.mxu0 0
        %1521 = vmatprep.subr.bf16.mxu0 0
        %1522 = vmatpush1.bf16.msra.mxu0 0
        %1523 = vmatprep.subr.bf16.mxu0 0
        %1524 = vmatpush1.bf16.msra.mxu0 0
        %1525 = vmatprep.subr.bf16.mxu0 0
        %1526 = vmatpush1.bf16.msra.mxu0 0
        %1527 = vmatprep.mubr.bf16.mxu0 0
        %1528 = vmatmul.mubr.bf16.gmra.mrb[0].mxu0 %v1489
        %v1529 = vpop.f32.mrb[0].mxu0
        %v1530 = vadd.f32 %v1486, %v1529
        %v1531 = vpop.f32.mrb[0].mxu0
        %v1532 = vpop.f32.mrb[0].mxu0
        %v1533 = vpop.f32.mrb[0].mxu0
        %1534 = vdwg.mxu0
        %v1536 = vsel %vm1337, %v1481, 0
        %v1539 = vsel %vm1491, %v1327, 0
        %1541 = vmatprep.subr.bf16.mxu0 0
        %1542 = vmatpush1.bf16.msra.mxu0 %v1539
        %1543 = vmatprep.subr.bf16.mxu0 0
        %1544 = vmatpush1.bf16.msra.mxu0 0
        %1545 = vmatprep.subr.bf16.mxu0 0
        %1546 = vmatpush1.bf16.msra.mxu0 0
        %1547 = vmatprep.subr.bf16.mxu0 0
        %1548 = vmatpush1.bf16.msra.mxu0 0
        %1549 = vmatprep.subr.bf16.mxu0 0
        %1550 = vmatpush1.bf16.msra.mxu0 0
        %1551 = vmatprep.subr.bf16.mxu0 0
        %1552 = vmatpush1.bf16.msra.mxu0 0
        %1553 = vmatprep.subr.bf16.mxu0 0
        %1554 = vmatpush1.bf16.msra.mxu0 0
        %1555 = vmatprep.subr.bf16.mxu0 0
        %1556 = vmatpush1.bf16.msra.mxu0 0
        %1557 = vmatprep.subr.bf16.mxu0 0
        %1558 = vmatpush1.bf16.msra.mxu0 0
        %1559 = vmatprep.subr.bf16.mxu0 0
        %1560 = vmatpush1.bf16.msra.mxu0 0
        %1561 = vmatprep.subr.bf16.mxu0 0
        %1562 = vmatpush1.bf16.msra.mxu0 0
        %1563 = vmatprep.subr.bf16.mxu0 0
        %1564 = vmatpush1.bf16.msra.mxu0 0
        %1565 = vmatprep.subr.bf16.mxu0 0
        %1566 = vmatpush1.bf16.msra.mxu0 0
        %1567 = vmatprep.subr.bf16.mxu0 0
        %1568 = vmatpush1.bf16.msra.mxu0 0
        %1569 = vmatprep.subr.bf16.mxu0 0
        %1570 = vmatpush1.bf16.msra.mxu0 0
        %1571 = vmatprep.subr.bf16.mxu0 0
        %1572 = vmatpush1.bf16.msra.mxu0 0
        %1573 = vmatprep.mubr.bf16.mxu0 0
        %1574 = vmatmul.mubr.bf16.gmra.mrb[0].mxu0 %v1536
        %v1575 = vpop.f32.mrb[0].mxu0
        %v1576 = vadd.f32 %v1487, %v1575
        %v1577 = vpop.f32.mrb[0].mxu0
        %v1578 = vpop.f32.mrb[0].mxu0
        %v1579 = vpop.f32.mrb[0].mxu0
        %1580 = vdwg.mxu0
        %v1581 = vmul.f32 %v1530, %v1478
        %v1582 = vmul.f32 %v1576, %v1479
        %v1583 = vpack.c.bf16 %v1582, %v1581
        %v1585 = vsel %vm1337, %v1583, 0
        %v1588 = vsel %vm1491, %v1332, 0
        %1590 = vmatprep.subr.bf16.mxu0 0
        %1591 = vmatpush1.bf16.msra.mxu0 %v1588
        %1592 = vmatprep.subr.bf16.mxu0 0
        %1593 = vmatpush1.bf16.msra.mxu0 0
        %1594 = vmatprep.subr.bf16.mxu0 0
        %1595 = vmatpush1.bf16.msra.mxu0 0
        %1596 = vmatprep.subr.bf16.mxu0 0
        %1597 = vmatpush1.bf16.msra.mxu0 0
        %1598 = vmatprep.subr.bf16.mxu0 0
        %1599 = vmatpush1.bf16.msra.mxu0 0
        %1600 = vmatprep.subr.bf16.mxu0 0
        %1601 = vmatpush1.bf16.msra.mxu0 0
        %1602 = vmatprep.subr.bf16.mxu0 0
        %1603 = vmatpush1.bf16.msra.mxu0 0
        %1604 = vmatprep.subr.bf16.mxu0 0
        %1605 = vmatpush1.bf16.msra.mxu0 0
        %1606 = vmatprep.subr.bf16.mxu0 0
        %1607 = vmatpush1.bf16.msra.mxu0 0
        %1608 = vmatprep.subr.bf16.mxu0 0
        %1609 = vmatpush1.bf16.msra.mxu0 0
        %1610 = vmatprep.subr.bf16.mxu0 0
        %1611 = vmatpush1.bf16.msra.mxu0 0
        %1612 = vmatprep.subr.bf16.mxu0 0
        %1613 = vmatpush1.bf16.msra.mxu0 0
        %1614 = vmatprep.subr.bf16.mxu0 0
        %1615 = vmatpush1.bf16.msra.mxu0 0
        %1616 = vmatprep.subr.bf16.mxu0 0
        %1617 = vmatpush1.bf16.msra.mxu0 0
        %1618 = vmatprep.subr.bf16.mxu0 0
        %1619 = vmatpush1.bf16.msra.mxu0 0
        %1620 = vmatprep.subr.bf16.mxu0 0
        %1621 = vmatpush1.bf16.msra.mxu0 0
        %1622 = vmatprep.mubr.bf16.mxu0 0
        %1623 = vmatmul.mubr.bf16.gmra.mrb[0].mxu0 %v1585
        %v1624 = vpop.f32.mrb[0].mxu0
        %v1625 = vadd.f32 0.0, %v1624
        %v1626 = vpop.f32.mrb[0].mxu0
        %v1627 = vpop.f32.mrb[0].mxu0
        %v1628 = vadd.f32 0.0, %v1627
        %v1629 = vpop.f32.mrb[0].mxu0
        %1630 = vdwg.mxu0
        %v1632 = vlaneseq
        %v1633 = vshrl.u32 %v1632, 7
        %v1634 = vsub.s32 0, %v1633
        %v1635 = vrot.slane %v1336, %v1634
        %v1637 = vadd.f32 %v1635, %v1625
        %v1638 = vadd.f32 %v1635, %v1628
        %1640 = vrot.lane.b32.xlu0 %v1322, 120
        %v1641 = vpop.permute.xlu0 %1640
        %1643 = vrot.lane.b32.xlu0 %v1324, 120
        %v1644 = vpop.permute.xlu0 %1643
        %v1646 = vsel %vm1337, %v1641, 0
        %v1649 = vsel %vm1337, %v1644, 0
        %1651 = vmatprep.subr.bf16.mxu0 0
        %1652 = vmatpush1.bf16.xpose.msra.mxu0 %v1649
        %1653 = vmatprep.subr.bf16.mxu0 0
        %1654 = vmatpush1.bf16.xpose.msra.mxu0 0
        %1655 = vmatprep.subr.bf16.mxu0 0
        %1656 = vmatpush1.bf16.xpose.msra.mxu0 0
        %1657 = vmatprep.subr.bf16.mxu0 0
        %1658 = vmatpush1.bf16.xpose.msra.mxu0 0
        %1659 = vmatprep.subr.bf16.mxu0 0
        %1660 = vmatpush1.bf16.xpose.msra.mxu0 0
        %1661 = vmatprep.subr.bf16.mxu0 0
        %1662 = vmatpush1.bf16.xpose.msra.mxu0 0
        %1663 = vmatprep.subr.bf16.mxu0 0
        %1664 = vmatpush1.bf16.xpose.msra.mxu0 0
        %1665 = vmatprep.subr.bf16.mxu0 0
        %1666 = vmatpush1.bf16.xpose.msra.mxu0 0
        %1667 = vmatprep.subr.bf16.mxu0 0
        %1668 = vmatpush1.bf16.xpose.msra.mxu0 0
        %1669 = vmatprep.subr.bf16.mxu0 0
        %1670 = vmatpush1.bf16.xpose.msra.mxu0 0
        %1671 = vmatprep.subr.bf16.mxu0 0
        %1672 = vmatpush1.bf16.xpose.msra.mxu0 0
        %1673 = vmatprep.subr.bf16.mxu0 0
        %1674 = vmatpush1.bf16.xpose.msra.mxu0 0
        %1675 = vmatprep.subr.bf16.mxu0 0
        %1676 = vmatpush1.bf16.xpose.msra.mxu0 0
        %1677 = vmatprep.subr.bf16.mxu0 0
        %1678 = vmatpush1.bf16.xpose.msra.mxu0 0
        %1679 = vmatprep.subr.bf16.mxu0 0
        %1680 = vmatpush1.bf16.xpose.msra.mxu0 0
        %1681 = vmatprep.subr.bf16.mxu0 0
        %1682 = vmatpush1.bf16.xpose.msra.mxu0 0
        %1683 = vmatprep.mubr.bf16.mxu0 0
        %1684 = vmatmul.mubr.bf16.gmra.mrb[0].mxu0 %v1646
        %v1685 = vpop.f32.mrb[0].mxu0
        %v1686 = vadd.f32 %v1118, %v1685
        %v1687 = vpop.f32.mrb[0].mxu0
        %v1688 = vpop.f32.mrb[0].mxu0
        %v1689 = vpop.f32.mrb[0].mxu0
        %1690 = vdwg.mxu0
        %1692 = vrot.lane.b32.xlu0 %v1323, 120
        %v1693 = vpop.permute.xlu0 %1692
        %1695 = vrot.lane.b32.xlu0 %v1325, 120
        %v1696 = vpop.permute.xlu0 %1695
        %v1698 = vsel %vm1337, %v1693, 0
        %v1701 = vsel %vm1337, %v1696, 0
        %1703 = vmatprep.subr.bf16.mxu0 0
        %1704 = vmatpush1.bf16.xpose.msra.mxu0 %v1701
        %1705 = vmatprep.subr.bf16.mxu0 0
        %1706 = vmatpush1.bf16.xpose.msra.mxu0 0
        %1707 = vmatprep.subr.bf16.mxu0 0
        %1708 = vmatpush1.bf16.xpose.msra.mxu0 0
        %1709 = vmatprep.subr.bf16.mxu0 0
        %1710 = vmatpush1.bf16.xpose.msra.mxu0 0
        %1711 = vmatprep.subr.bf16.mxu0 0
        %1712 = vmatpush1.bf16.xpose.msra.mxu0 0
        %1713 = vmatprep.subr.bf16.mxu0 0
        %1714 = vmatpush1.bf16.xpose.msra.mxu0 0
        %1715 = vmatprep.subr.bf16.mxu0 0
        %1716 = vmatpush1.bf16.xpose.msra.mxu0 0
        %1717 = vmatprep.subr.bf16.mxu0 0
        %1718 = vmatpush1.bf16.xpose.msra.mxu0 0
        %1719 = vmatprep.subr.bf16.mxu0 0
        %1720 = vmatpush1.bf16.xpose.msra.mxu0 0
        %1721 = vmatprep.subr.bf16.mxu0 0
        %1722 = vmatpush1.bf16.xpose.msra.mxu0 0
        %1723 = vmatprep.subr.bf16.mxu0 0
        %1724 = vmatpush1.bf16.xpose.msra.mxu0 0
        %1725 = vmatprep.subr.bf16.mxu0 0
        %1726 = vmatpush1.bf16.xpose.msra.mxu0 0
        %1727 = vmatprep.subr.bf16.mxu0 0
        %1728 = vmatpush1.bf16.xpose.msra.mxu0 0
        %1729 = vmatprep.subr.bf16.mxu0 0
        %1730 = vmatpush1.bf16.xpose.msra.mxu0 0
        %1731 = vmatprep.subr.bf16.mxu0 0
        %1732 = vmatpush1.bf16.xpose.msra.mxu0 0
        %1733 = vmatprep.subr.bf16.mxu0 0
        %1734 = vmatpush1.bf16.xpose.msra.mxu0 0
        %1735 = vmatprep.mubr.bf16.mxu0 0
        %1736 = vmatmul.mubr.bf16.gmra.mrb[0].mxu0 %v1698
        %v1737 = vpop.f32.mrb[0].mxu0
        %v1738 = vadd.f32 %v1122, %v1737
        %v1739 = vpop.f32.mrb[0].mxu0
        %v1740 = vpop.f32.mrb[0].mxu0
        %v1741 = vpop.f32.mrb[0].mxu0
        %1742 = vdwg.mxu0
        %1745 = vrot.lane.b32.xlu0 %v1436, 120
        %v1746 = vpop.permute.xlu0 %1745
        %1747 = vrot.lane.b32.xlu0 %v1437, 120
        %v1748 = vpop.permute.xlu0 %1747
        %v1751 = vsel %vm1337, %v1746, 0.0
        %1752 = vadd.xlane.f32.xlu0 %v1751
        %v1753 = vpop.xlane.xlu0 %1752
        %v1754 = vsel %vm1337, %v1748, 0.0
        %1755 = vadd.xlane.f32.xlu0 %v1754
        %v1756 = vpop.xlane.xlu0 %1755
        %v1757 = vsel %vm1337, %v1686, -inf
        %1758 = vmax.xlane.f32.xlu0 %v1757
        %v1759 = vpop.xlane.xlu0 %1758
        %v1760 = vsel %vm1337, %v1738, -inf
        %1761 = vmax.xlane.f32.xlu0 %v1760
        %v1762 = vpop.xlane.xlu0 %1761
        %v1763 = vmax.f32 %v1759, %v1753
        %v1764 = vmax.f32 %v1762, %v1756
        %v1765 = vsub.f32 %v1686, %v1763
        %v1766 = vsub.f32 %v1738, %v1764
        %v1767 = vmul.f32 %v1765, 1.442695
        %v1768 = vpow.pop %v1767
        %v1769 = vmul.f32 %v1766, 1.442695
        %v1770 = vpow.pop %v1769
        %v1771 = vsub.f32 %v1753, %v1763
        %v1772 = vsub.f32 %v1756, %v1764
        %v1773 = vmul.f32 %v1771, 1.442695
        %v1774 = vpow.pop %v1773
        %v1775 = vmul.f32 %v1772, 1.442695
        %v1776 = vpow.pop %v1775
        %v1777 = vsel %vm1337, %v1768, 0.0
        %1778 = vadd.xlane.f32.xlu0 %v1777
        %v1779 = vpop.xlane.xlu0 %1778
        %v1780 = vsel %vm1337, %v1770, 0.0
        %1781 = vadd.xlane.f32.xlu0 %v1780
        %v1782 = vpop.xlane.xlu0 %1781
        %v1783 = vadd.f32 %v1779, %v1774
        %v1784 = vadd.f32 %v1782, %v1776
        %v1785 = vrcp.pop %v1783
        %v1786 = vrcp.pop %v1784
        %v1787 = vmul.f32 %v1783, %v1785
        %v1788 = vmul.f32 %v1784, %v1786
        %v1789 = vsub.f32 2.0, %v1787
        %v1790 = vsub.f32 2.0, %v1788
        %v1791 = vmul.f32 %v1785, %v1789
        %v1792 = vmul.f32 %v1786, %v1790
        %v1793 = vpack.c.bf16 %v1768, %v1768
        %v1794 = vpack.c.bf16 %v1770, %v1770
        %v1795 = vmul.f32 %v1774, %v1485
        %v1796 = vmul.f32 %v1776, %v1485
        %1798 = vrot.lane.b32.xlu0 %v1326, 120
        %v1799 = vpop.permute.xlu0 %1798
        %1801 = vrot.lane.b32.xlu0 %v1795, 120
        %v1802 = vpop.permute.xlu0 %1801
        %v1805 = vsel %vm1337, %v1793, 0
        %v1808 = vsel %vm1491, %v1799, 0
        %1810 = vmatprep.subr.bf16.mxu0 0
        %1811 = vmatpush1.bf16.msra.mxu0 %v1808
        %1812 = vmatprep.subr.bf16.mxu0 0
        %1813 = vmatpush1.bf16.msra.mxu0 0
        %1814 = vmatprep.subr.bf16.mxu0 0
        %1815 = vmatpush1.bf16.msra.mxu0 0
        %1816 = vmatprep.subr.bf16.mxu0 0
        %1817 = vmatpush1.bf16.msra.mxu0 0
        %1818 = vmatprep.subr.bf16.mxu0 0
        %1819 = vmatpush1.bf16.msra.mxu0 0
        %1820 = vmatprep.subr.bf16.mxu0 0
        %1821 = vmatpush1.bf16.msra.mxu0 0
        %1822 = vmatprep.subr.bf16.mxu0 0
        %1823 = vmatpush1.bf16.msra.mxu0 0
        %1824 = vmatprep.subr.bf16.mxu0 0
        %1825 = vmatpush1.bf16.msra.mxu0 0
        %1826 = vmatprep.subr.bf16.mxu0 0
        %1827 = vmatpush1.bf16.msra.mxu0 0
        %1828 = vmatprep.subr.bf16.mxu0 0
        %1829 = vmatpush1.bf16.msra.mxu0 0
        %1830 = vmatprep.subr.bf16.mxu0 0
        %1831 = vmatpush1.bf16.msra.mxu0 0
        %1832 = vmatprep.subr.bf16.mxu0 0
        %1833 = vmatpush1.bf16.msra.mxu0 0
        %1834 = vmatprep.subr.bf16.mxu0 0
        %1835 = vmatpush1.bf16.msra.mxu0 0
        %1836 = vmatprep.subr.bf16.mxu0 0
        %1837 = vmatpush1.bf16.msra.mxu0 0
        %1838 = vmatprep.subr.bf16.mxu0 0
        %1839 = vmatpush1.bf16.msra.mxu0 0
        %1840 = vmatprep.subr.bf16.mxu0 0
        %1841 = vmatpush1.bf16.msra.mxu0 0
        %1842 = vmatprep.mubr.bf16.mxu0 0
        %1843 = vmatmul.mubr.bf16.gmra.mrb[0].mxu0 %v1805
        %v1844 = vpop.f32.mrb[0].mxu0
        %v1845 = vadd.f32 %v1802, %v1844
        %v1846 = vpop.f32.mrb[0].mxu0
        %v1847 = vpop.f32.mrb[0].mxu0
        %v1848 = vpop.f32.mrb[0].mxu0
        %1849 = vdwg.mxu0
        %1851 = vrot.lane.b32.xlu0 %v1327, 120
        %v1852 = vpop.permute.xlu0 %1851
        %1854 = vrot.lane.b32.xlu0 %v1796, 120
        %v1855 = vpop.permute.xlu0 %1854
        %v1858 = vsel %vm1337, %v1794, 0
        %v1861 = vsel %vm1491, %v1852, 0
        %1863 = vmatprep.subr.bf16.mxu0 0
        %1864 = vmatpush1.bf16.msra.mxu0 %v1861
        %1865 = vmatprep.subr.bf16.mxu0 0
        %1866 = vmatpush1.bf16.msra.mxu0 0
        %1867 = vmatprep.subr.bf16.mxu0 0
        %1868 = vmatpush1.bf16.msra.mxu0 0
        %1869 = vmatprep.subr.bf16.mxu0 0
        %1870 = vmatpush1.bf16.msra.mxu0 0
        %1871 = vmatprep.subr.bf16.mxu0 0
        %1872 = vmatpush1.bf16.msra.mxu0 0
        %1873 = vmatprep.subr.bf16.mxu0 0
        %1874 = vmatpush1.bf16.msra.mxu0 0
        %1875 = vmatprep.subr.bf16.mxu0 0
        %1876 = vmatpush1.bf16.msra.mxu0 0
        %1877 = vmatprep.subr.bf16.mxu0 0
        %1878 = vmatpush1.bf16.msra.mxu0 0
        %1879 = vmatprep.subr.bf16.mxu0 0
        %1880 = vmatpush1.bf16.msra.mxu0 0
        %1881 = vmatprep.subr.bf16.mxu0 0
        %1882 = vmatpush1.bf16.msra.mxu0 0
        %1883 = vmatprep.subr.bf16.mxu0 0
        %1884 = vmatpush1.bf16.msra.mxu0 0
        %1885 = vmatprep.subr.bf16.mxu0 0
        %1886 = vmatpush1.bf16.msra.mxu0 0
        %1887 = vmatprep.subr.bf16.mxu0 0
        %1888 = vmatpush1.bf16.msra.mxu0 0
        %1889 = vmatprep.subr.bf16.mxu0 0
        %1890 = vmatpush1.bf16.msra.mxu0 0
        %1891 = vmatprep.subr.bf16.mxu0 0
        %1892 = vmatpush1.bf16.msra.mxu0 0
        %1893 = vmatprep.subr.bf16.mxu0 0
        %1894 = vmatpush1.bf16.msra.mxu0 0
        %1895 = vmatprep.mubr.bf16.mxu0 0
        %1896 = vmatmul.mubr.bf16.gmra.mrb[0].mxu0 %v1858
        %v1897 = vpop.f32.mrb[0].mxu0
        %v1898 = vadd.f32 %v1855, %v1897
        %v1899 = vpop.f32.mrb[0].mxu0
        %v1900 = vpop.f32.mrb[0].mxu0
        %v1901 = vpop.f32.mrb[0].mxu0
        %1902 = vdwg.mxu0
        %v1903 = vmul.f32 %v1845, %v1791
        %v1904 = vmul.f32 %v1898, %v1792
        %v1905 = vpack.c.bf16 %v1904, %v1903
        %v1907 = vsel %vm1337, %v1905, 0
        %v1910 = vsel %vm1491, %v1333, 0
        %1912 = vmatprep.subr.bf16.mxu0 0
        %1913 = vmatpush1.bf16.msra.mxu0 %v1910
        %1914 = vmatprep.subr.bf16.mxu0 0
        %1915 = vmatpush1.bf16.msra.mxu0 0
        %1916 = vmatprep.subr.bf16.mxu0 0
        %1917 = vmatpush1.bf16.msra.mxu0 0
        %1918 = vmatprep.subr.bf16.mxu0 0
        %1919 = vmatpush1.bf16.msra.mxu0 0
        %1920 = vmatprep.subr.bf16.mxu0 0
        %1921 = vmatpush1.bf16.msra.mxu0 0
        %1922 = vmatprep.subr.bf16.mxu0 0
        %1923 = vmatpush1.bf16.msra.mxu0 0
        %1924 = vmatprep.subr.bf16.mxu0 0
        %1925 = vmatpush1.bf16.msra.mxu0 0
        %1926 = vmatprep.subr.bf16.mxu0 0
        %1927 = vmatpush1.bf16.msra.mxu0 0
        %1928 = vmatprep.subr.bf16.mxu0 0
        %1929 = vmatpush1.bf16.msra.mxu0 0
        %1930 = vmatprep.subr.bf16.mxu0 0
        %1931 = vmatpush1.bf16.msra.mxu0 0
        %1932 = vmatprep.subr.bf16.mxu0 0
        %1933 = vmatpush1.bf16.msra.mxu0 0
        %1934 = vmatprep.subr.bf16.mxu0 0
        %1935 = vmatpush1.bf16.msra.mxu0 0
        %1936 = vmatprep.subr.bf16.mxu0 0
        %1937 = vmatpush1.bf16.msra.mxu0 0
        %1938 = vmatprep.subr.bf16.mxu0 0
        %1939 = vmatpush1.bf16.msra.mxu0 0
        %1940 = vmatprep.subr.bf16.mxu0 0
        %1941 = vmatpush1.bf16.msra.mxu0 0
        %1942 = vmatprep.subr.bf16.mxu0 0
        %1943 = vmatpush1.bf16.msra.mxu0 0
        %1944 = vmatprep.mubr.bf16.mxu0 0
        %1945 = vmatmul.mubr.bf16.gmra.mrb[0].mxu0 %v1907
        %v1946 = vpop.f32.mrb[0].mxu0
        %v1947 = vadd.f32 0.0, %v1946
        %v1948 = vpop.f32.mrb[0].mxu0
        %v1949 = vpop.f32.mrb[0].mxu0
        %v1950 = vadd.f32 0.0, %v1949
        %v1951 = vpop.f32.mrb[0].mxu0
        %1952 = vdwg.mxu0
        %v1953 = vadd.f32 %v1637, %v1947
        %v1954 = vadd.f32 %v1638, %v1950
        %1955 = vrot.lane.b32.xlu0 %v1322, 112
        %v1956 = vpop.permute.xlu0 %1955
        %1957 = vrot.lane.b32.xlu0 %v1324, 112
        %v1958 = vpop.permute.xlu0 %1957
        %v1960 = vsel %vm1337, %v1956, 0
        %v1963 = vsel %vm1337, %v1958, 0
        %1965 = vmatprep.subr.bf16.mxu0 0
        %1966 = vmatpush1.bf16.xpose.msra.mxu0 %v1963
        %1967 = vmatprep.subr.bf16.mxu0 0
        %1968 = vmatpush1.bf16.xpose.msra.mxu0 0
        %1969 = vmatprep.subr.bf16.mxu0 0
        %1970 = vmatpush1.bf16.xpose.msra.mxu0 0
        %1971 = vmatprep.subr.bf16.mxu0 0
        %1972 = vmatpush1.bf16.xpose.msra.mxu0 0
        %1973 = vmatprep.subr.bf16.mxu0 0
        %1974 = vmatpush1.bf16.xpose.msra.mxu0 0
        %1975 = vmatprep.subr.bf16.mxu0 0
        %1976 = vmatpush1.bf16.xpose.msra.mxu0 0
        %1977 = vmatprep.subr.bf16.mxu0 0
        %1978 = vmatpush1.bf16.xpose.msra.mxu0 0
        %1979 = vmatprep.subr.bf16.mxu0 0
        %1980 = vmatpush1.bf16.xpose.msra.mxu0 0
        %1981 = vmatprep.subr.bf16.mxu0 0
        %1982 = vmatpush1.bf16.xpose.msra.mxu0 0
        %1983 = vmatprep.subr.bf16.mxu0 0
        %1984 = vmatpush1.bf16.xpose.msra.mxu0 0
        %1985 = vmatprep.subr.bf16.mxu0 0
        %1986 = vmatpush1.bf16.xpose.msra.mxu0 0
        %1987 = vmatprep.subr.bf16.mxu0 0
        %1988 = vmatpush1.bf16.xpose.msra.mxu0 0
        %1989 = vmatprep.subr.bf16.mxu0 0
        %1990 = vmatpush1.bf16.xpose.msra.mxu0 0
        %1991 = vmatprep.subr.bf16.mxu0 0
        %1992 = vmatpush1.bf16.xpose.msra.mxu0 0
        %1993 = vmatprep.subr.bf16.mxu0 0
        %1994 = vmatpush1.bf16.xpose.msra.mxu0 0
        %1995 = vmatprep.subr.bf16.mxu0 0
        %1996 = vmatpush1.bf16.xpose.msra.mxu0 0
        %1997 = vmatprep.mubr.bf16.mxu0 0
        %1998 = vmatmul.mubr.bf16.gmra.mrb[0].mxu0 %v1960
        %v1999 = vpop.f32.mrb[0].mxu0
        %v2000 = vadd.f32 %v1118, %v1999
        %v2001 = vpop.f32.mrb[0].mxu0
        %v2002 = vpop.f32.mrb[0].mxu0
        %v2003 = vpop.f32.mrb[0].mxu0
        %2004 = vdwg.mxu0
        %2005 = vrot.lane.b32.xlu0 %v1323, 112
        %v2006 = vpop.permute.xlu0 %2005
        %2007 = vrot.lane.b32.xlu0 %v1325, 112
        %v2008 = vpop.permute.xlu0 %2007
        %v2010 = vsel %vm1337, %v2006, 0
        %v2013 = vsel %vm1337, %v2008, 0
        %2015 = vmatprep.subr.bf16.mxu0 0
        %2016 = vmatpush1.bf16.xpose.msra.mxu0 %v2013
        %2017 = vmatprep.subr.bf16.mxu0 0
        %2018 = vmatpush1.bf16.xpose.msra.mxu0 0
        %2019 = vmatprep.subr.bf16.mxu0 0
        %2020 = vmatpush1.bf16.xpose.msra.mxu0 0
        %2021 = vmatprep.subr.bf16.mxu0 0
        %2022 = vmatpush1.bf16.xpose.msra.mxu0 0
        %2023 = vmatprep.subr.bf16.mxu0 0
        %2024 = vmatpush1.bf16.xpose.msra.mxu0 0
        %2025 = vmatprep.subr.bf16.mxu0 0
        %2026 = vmatpush1.bf16.xpose.msra.mxu0 0
        %2027 = vmatprep.subr.bf16.mxu0 0
        %2028 = vmatpush1.bf16.xpose.msra.mxu0 0
        %2029 = vmatprep.subr.bf16.mxu0 0
        %2030 = vmatpush1.bf16.xpose.msra.mxu0 0
        %2031 = vmatprep.subr.bf16.mxu0 0
        %2032 = vmatpush1.bf16.xpose.msra.mxu0 0
        %2033 = vmatprep.subr.bf16.mxu0 0
        %2034 = vmatpush1.bf16.xpose.msra.mxu0 0
        %2035 = vmatprep.subr.bf16.mxu0 0
        %2036 = vmatpush1.bf16.xpose.msra.mxu0 0
        %2037 = vmatprep.subr.bf16.mxu0 0
        %2038 = vmatpush1.bf16.xpose.msra.mxu0 0
        %2039 = vmatprep.subr.bf16.mxu0 0
        %2040 = vmatpush1.bf16.xpose.msra.mxu0 0
        %2041 = vmatprep.subr.bf16.mxu0 0
        %2042 = vmatpush1.bf16.xpose.msra.mxu0 0
        %2043 = vmatprep.subr.bf16.mxu0 0
        %2044 = vmatpush1.bf16.xpose.msra.mxu0 0
        %2045 = vmatprep.subr.bf16.mxu0 0
        %2046 = vmatpush1.bf16.xpose.msra.mxu0 0
        %2047 = vmatprep.mubr.bf16.mxu0 0
        %2048 = vmatmul.mubr.bf16.gmra.mrb[0].mxu0 %v2010
        %v2049 = vpop.f32.mrb[0].mxu0
        %v2050 = vadd.f32 %v1122, %v2049
        %v2051 = vpop.f32.mrb[0].mxu0
        %v2052 = vpop.f32.mrb[0].mxu0
        %v2053 = vpop.f32.mrb[0].mxu0
        %2054 = vdwg.mxu0
        %2055 = vrot.lane.b32.xlu0 %v1436, 112
        %v2056 = vpop.permute.xlu0 %2055
        %2057 = vrot.lane.b32.xlu0 %v1437, 112
        %v2058 = vpop.permute.xlu0 %2057
        %v2061 = vsel %vm1337, %v2056, 0.0
        %2062 = vadd.xlane.f32.xlu0 %v2061
        %v2063 = vpop.xlane.xlu0 %2062
        %v2064 = vsel %vm1337, %v2058, 0.0
        %2065 = vadd.xlane.f32.xlu0 %v2064
        %v2066 = vpop.xlane.xlu0 %2065
        %v2067 = vsel %vm1337, %v2000, -inf
        %2068 = vmax.xlane.f32.xlu0 %v2067
        %v2069 = vpop.xlane.xlu0 %2068
        %v2070 = vsel %vm1337, %v2050, -inf
        %2071 = vmax.xlane.f32.xlu0 %v2070
        %v2072 = vpop.xlane.xlu0 %2071
        %v2073 = vmax.f32 %v2069, %v2063
        %v2074 = vmax.f32 %v2072, %v2066
        %v2075 = vsub.f32 %v2000, %v2073
        %v2076 = vsub.f32 %v2050, %v2074
        %v2077 = vmul.f32 %v2075, 1.442695
        %v2078 = vpow.pop %v2077
        %v2079 = vmul.f32 %v2076, 1.442695
        %v2080 = vpow.pop %v2079
        %v2081 = vsub.f32 %v2063, %v2073
        %v2082 = vsub.f32 %v2066, %v2074
        %v2083 = vmul.f32 %v2081, 1.442695
        %v2084 = vpow.pop %v2083
        %v2085 = vmul.f32 %v2082, 1.442695
        %v2086 = vpow.pop %v2085
        %v2087 = vsel %vm1337, %v2078, 0.0
        %2088 = vadd.xlane.f32.xlu0 %v2087
        %v2089 = vpop.xlane.xlu0 %2088
        %v2090 = vsel %vm1337, %v2080, 0.0
        %2091 = vadd.xlane.f32.xlu0 %v2090
        %v2092 = vpop.xlane.xlu0 %2091
        %v2093 = vadd.f32 %v2089, %v2084
        %v2094 = vadd.f32 %v2092, %v2086
        %v2095 = vrcp.pop %v2093
        %v2096 = vrcp.pop %v2094
        %v2097 = vmul.f32 %v2093, %v2095
        %v2098 = vmul.f32 %v2094, %v2096
        %v2099 = vsub.f32 2.0, %v2097
        %v2100 = vsub.f32 2.0, %v2098
        %v2101 = vmul.f32 %v2095, %v2099
        %v2102 = vmul.f32 %v2096, %v2100
        %v2103 = vpack.c.bf16 %v2078, %v2078
        %v2104 = vpack.c.bf16 %v2080, %v2080
        %v2105 = vmul.f32 %v2084, %v1485
        %v2106 = vmul.f32 %v2086, %v1485
        %2107 = vrot.lane.b32.xlu0 %v1326, 112
        %v2108 = vpop.permute.xlu0 %2107
        %2110 = vrot.lane.b32.xlu0 %v2105, 112
        %v2111 = vpop.permute.xlu0 %2110
        %v2114 = vsel %vm1337, %v2103, 0
        %v2117 = vsel %vm1491, %v2108, 0
        %2119 = vmatprep.subr.bf16.mxu0 0
        %2120 = vmatpush1.bf16.msra.mxu0 %v2117
        %2121 = vmatprep.subr.bf16.mxu0 0
        %2122 = vmatpush1.bf16.msra.mxu0 0
        %2123 = vmatprep.subr.bf16.mxu0 0
        %2124 = vmatpush1.bf16.msra.mxu0 0
        %2125 = vmatprep.subr.bf16.mxu0 0
        %2126 = vmatpush1.bf16.msra.mxu0 0
        %2127 = vmatprep.subr.bf16.mxu0 0
        %2128 = vmatpush1.bf16.msra.mxu0 0
        %2129 = vmatprep.subr.bf16.mxu0 0
        %2130 = vmatpush1.bf16.msra.mxu0 0
        %2131 = vmatprep.subr.bf16.mxu0 0
        %2132 = vmatpush1.bf16.msra.mxu0 0
        %2133 = vmatprep.subr.bf16.mxu0 0
        %2134 = vmatpush1.bf16.msra.mxu0 0
        %2135 = vmatprep.subr.bf16.mxu0 0
        %2136 = vmatpush1.bf16.msra.mxu0 0
        %2137 = vmatprep.subr.bf16.mxu0 0
        %2138 = vmatpush1.bf16.msra.mxu0 0
        %2139 = vmatprep.subr.bf16.mxu0 0
        %2140 = vmatpush1.bf16.msra.mxu0 0
        %2141 = vmatprep.subr.bf16.mxu0 0
        %2142 = vmatpush1.bf16.msra.mxu0 0
        %2143 = vmatprep.subr.bf16.mxu0 0
        %2144 = vmatpush1.bf16.msra.mxu0 0
        %2145 = vmatprep.subr.bf16.mxu0 0
        %2146 = vmatpush1.bf16.msra.mxu0 0
        %2147 = vmatprep.subr.bf16.mxu0 0
        %2148 = vmatpush1.bf16.msra.mxu0 0
        %2149 = vmatprep.subr.bf16.mxu0 0
        %2150 = vmatpush1.bf16.msra.mxu0 0
        %2151 = vmatprep.mubr.bf16.mxu0 0
        %2152 = vmatmul.mubr.bf16.gmra.mrb[0].mxu0 %v2114
        %v2153 = vpop.f32.mrb[0].mxu0
        %v2154 = vadd.f32 %v2111, %v2153
        %v2155 = vpop.f32.mrb[0].mxu0
        %v2156 = vpop.f32.mrb[0].mxu0
        %v2157 = vpop.f32.mrb[0].mxu0
        %2158 = vdwg.mxu0
        %2159 = vrot.lane.b32.xlu0 %v1327, 112
        %v2160 = vpop.permute.xlu0 %2159
        %2162 = vrot.lane.b32.xlu0 %v2106, 112
        %v2163 = vpop.permute.xlu0 %2162
        %v2166 = vsel %vm1337, %v2104, 0
        %v2169 = vsel %vm1491, %v2160, 0
        %2171 = vmatprep.subr.bf16.mxu0 0
        %2172 = vmatpush1.bf16.msra.mxu0 %v2169
        %2173 = vmatprep.subr.bf16.mxu0 0
        %2174 = vmatpush1.bf16.msra.mxu0 0
        %2175 = vmatprep.subr.bf16.mxu0 0
        %2176 = vmatpush1.bf16.msra.mxu0 0
        %2177 = vmatprep.subr.bf16.mxu0 0
        %2178 = vmatpush1.bf16.msra.mxu0 0
        %2179 = vmatprep.subr.bf16.mxu0 0
        %2180 = vmatpush1.bf16.msra.mxu0 0
        %2181 = vmatprep.subr.bf16.mxu0 0
        %2182 = vmatpush1.bf16.msra.mxu0 0
        %2183 = vmatprep.subr.bf16.mxu0 0
        %2184 = vmatpush1.bf16.msra.mxu0 0
        %2185 = vmatprep.subr.bf16.mxu0 0
        %2186 = vmatpush1.bf16.msra.mxu0 0
        %2187 = vmatprep.subr.bf16.mxu0 0
        %2188 = vmatpush1.bf16.msra.mxu0 0
        %2189 = vmatprep.subr.bf16.mxu0 0
        %2190 = vmatpush1.bf16.msra.mxu0 0
        %2191 = vmatprep.subr.bf16.mxu0 0
        %2192 = vmatpush1.bf16.msra.mxu0 0
        %2193 = vmatprep.subr.bf16.mxu0 0
        %2194 = vmatpush1.bf16.msra.mxu0 0
        %2195 = vmatprep.subr.bf16.mxu0 0
        %2196 = vmatpush1.bf16.msra.mxu0 0
        %2197 = vmatprep.subr.bf16.mxu0 0
        %2198 = vmatpush1.bf16.msra.mxu0 0
        %2199 = vmatprep.subr.bf16.mxu0 0
        %2200 = vmatpush1.bf16.msra.mxu0 0
        %2201 = vmatprep.subr.bf16.mxu0 0
        %2202 = vmatpush1.bf16.msra.mxu0 0
        %2203 = vmatprep.mubr.bf16.mxu0 0
        %2204 = vmatmul.mubr.bf16.gmra.mrb[0].mxu0 %v2166
        %v2205 = vpop.f32.mrb[0].mxu0
        %v2206 = vadd.f32 %v2163, %v2205
        %v2207 = vpop.f32.mrb[0].mxu0
        %v2208 = vpop.f32.mrb[0].mxu0
        %v2209 = vpop.f32.mrb[0].mxu0
        %2210 = vdwg.mxu0
        %v2211 = vmul.f32 %v2154, %v2101
        %v2212 = vmul.f32 %v2206, %v2102
        %v2213 = vpack.c.bf16 %v2212, %v2211
        %v2215 = vsel %vm1337, %v2213, 0
        %v2218 = vsel %vm1491, %v1334, 0
        %2220 = vmatprep.subr.bf16.mxu0 0
        %2221 = vmatpush1.bf16.msra.mxu0 %v2218
        %2222 = vmatprep.subr.bf16.mxu0 0
        %2223 = vmatpush1.bf16.msra.mxu0 0
        %2224 = vmatprep.subr.bf16.mxu0 0
        %2225 = vmatpush1.bf16.msra.mxu0 0
        %2226 = vmatprep.subr.bf16.mxu0 0
        %2227 = vmatpush1.bf16.msra.mxu0 0
        %2228 = vmatprep.subr.bf16.mxu0 0
        %2229 = vmatpush1.bf16.msra.mxu0 0
        %2230 = vmatprep.subr.bf16.mxu0 0
        %2231 = vmatpush1.bf16.msra.mxu0 0
        %2232 = vmatprep.subr.bf16.mxu0 0
        %2233 = vmatpush1.bf16.msra.mxu0 0
        %2234 = vmatprep.subr.bf16.mxu0 0
        %2235 = vmatpush1.bf16.msra.mxu0 0
        %2236 = vmatprep.subr.bf16.mxu0 0
        %2237 = vmatpush1.bf16.msra.mxu0 0
        %2238 = vmatprep.subr.bf16.mxu0 0
        %2239 = vmatpush1.bf16.msra.mxu0 0
        %2240 = vmatprep.subr.bf16.mxu0 0
        %2241 = vmatpush1.bf16.msra.mxu0 0
        %2242 = vmatprep.subr.bf16.mxu0 0
        %2243 = vmatpush1.bf16.msra.mxu0 0
        %2244 = vmatprep.subr.bf16.mxu0 0
        %2245 = vmatpush1.bf16.msra.mxu0 0
        %2246 = vmatprep.subr.bf16.mxu0 0
        %2247 = vmatpush1.bf16.msra.mxu0 0
        %2248 = vmatprep.subr.bf16.mxu0 0
        %2249 = vmatpush1.bf16.msra.mxu0 0
        %2250 = vmatprep.subr.bf16.mxu0 0
        %2251 = vmatpush1.bf16.msra.mxu0 0
        %2252 = vmatprep.mubr.bf16.mxu0 0
        %2253 = vmatmul.mubr.bf16.gmra.mrb[0].mxu0 %v2215
        %v2254 = vpop.f32.mrb[0].mxu0
        %v2255 = vadd.f32 0.0, %v2254
        %v2256 = vpop.f32.mrb[0].mxu0
        %v2257 = vpop.f32.mrb[0].mxu0
        %v2258 = vadd.f32 0.0, %v2257
        %v2259 = vpop.f32.mrb[0].mxu0
        %2260 = vdwg.mxu0
        %v2261 = vadd.f32 %v1953, %v2255
        %v2262 = vadd.f32 %v1954, %v2258
        %2263 = vrot.lane.b32.xlu0 %v1322, 104
        %v2264 = vpop.permute.xlu0 %2263
        %2265 = vrot.lane.b32.xlu0 %v1324, 104
        %v2266 = vpop.permute.xlu0 %2265
        %v2268 = vsel %vm1337, %v2264, 0
        %v2271 = vsel %vm1337, %v2266, 0
        %2273 = vmatprep.subr.bf16.mxu0 0
        %2274 = vmatpush1.bf16.xpose.msra.mxu0 %v2271
        %2275 = vmatprep.subr.bf16.mxu0 0
        %2276 = vmatpush1.bf16.xpose.msra.mxu0 0
        %2277 = vmatprep.subr.bf16.mxu0 0
        %2278 = vmatpush1.bf16.xpose.msra.mxu0 0
        %2279 = vmatprep.subr.bf16.mxu0 0
        %2280 = vmatpush1.bf16.xpose.msra.mxu0 0
        %2281 = vmatprep.subr.bf16.mxu0 0
        %2282 = vmatpush1.bf16.xpose.msra.mxu0 0
        %2283 = vmatprep.subr.bf16.mxu0 0
        %2284 = vmatpush1.bf16.xpose.msra.mxu0 0
        %2285 = vmatprep.subr.bf16.mxu0 0
        %2286 = vmatpush1.bf16.xpose.msra.mxu0 0
        %2287 = vmatprep.subr.bf16.mxu0 0
        %2288 = vmatpush1.bf16.xpose.msra.mxu0 0
        %2289 = vmatprep.subr.bf16.mxu0 0
        %2290 = vmatpush1.bf16.xpose.msra.mxu0 0
        %2291 = vmatprep.subr.bf16.mxu0 0
        %2292 = vmatpush1.bf16.xpose.msra.mxu0 0
        %2293 = vmatprep.subr.bf16.mxu0 0
        %2294 = vmatpush1.bf16.xpose.msra.mxu0 0
        %2295 = vmatprep.subr.bf16.mxu0 0
        %2296 = vmatpush1.bf16.xpose.msra.mxu0 0
        %2297 = vmatprep.subr.bf16.mxu0 0
        %2298 = vmatpush1.bf16.xpose.msra.mxu0 0
        %2299 = vmatprep.subr.bf16.mxu0 0
        %2300 = vmatpush1.bf16.xpose.msra.mxu0 0
        %2301 = vmatprep.subr.bf16.mxu0 0
        %2302 = vmatpush1.bf16.xpose.msra.mxu0 0
        %2303 = vmatprep.subr.bf16.mxu0 0
        %2304 = vmatpush1.bf16.xpose.msra.mxu0 0
        %2305 = vmatprep.mubr.bf16.mxu0 0
        %2306 = vmatmul.mubr.bf16.gmra.mrb[0].mxu0 %v2268
        %v2307 = vpop.f32.mrb[0].mxu0
        %v2308 = vadd.f32 %v1118, %v2307
        %v2309 = vpop.f32.mrb[0].mxu0
        %v2310 = vpop.f32.mrb[0].mxu0
        %v2311 = vpop.f32.mrb[0].mxu0
        %2312 = vdwg.mxu0
        %2313 = vrot.lane.b32.xlu0 %v1323, 104
        %v2314 = vpop.permute.xlu0 %2313
        %2315 = vrot.lane.b32.xlu0 %v1325, 104
        %v2316 = vpop.permute.xlu0 %2315
        %v2318 = vsel %vm1337, %v2314, 0
        %v2321 = vsel %vm1337, %v2316, 0
        %2323 = vmatprep.subr.bf16.mxu0 0
        %2324 = vmatpush1.bf16.xpose.msra.mxu0 %v2321
        %2325 = vmatprep.subr.bf16.mxu0 0
        %2326 = vmatpush1.bf16.xpose.msra.mxu0 0
        %2327 = vmatprep.subr.bf16.mxu0 0
        %2328 = vmatpush1.bf16.xpose.msra.mxu0 0
        %2329 = vmatprep.subr.bf16.mxu0 0
        %2330 = vmatpush1.bf16.xpose.msra.mxu0 0
        %2331 = vmatprep.subr.bf16.mxu0 0
        %2332 = vmatpush1.bf16.xpose.msra.mxu0 0
        %2333 = vmatprep.subr.bf16.mxu0 0
        %2334 = vmatpush1.bf16.xpose.msra.mxu0 0
        %2335 = vmatprep.subr.bf16.mxu0 0
        %2336 = vmatpush1.bf16.xpose.msra.mxu0 0
        %2337 = vmatprep.subr.bf16.mxu0 0
        %2338 = vmatpush1.bf16.xpose.msra.mxu0 0
        %2339 = vmatprep.subr.bf16.mxu0 0
        %2340 = vmatpush1.bf16.xpose.msra.mxu0 0
        %2341 = vmatprep.subr.bf16.mxu0 0
        %2342 = vmatpush1.bf16.xpose.msra.mxu0 0
        %2343 = vmatprep.subr.bf16.mxu0 0
        %2344 = vmatpush1.bf16.xpose.msra.mxu0 0
        %2345 = vmatprep.subr.bf16.mxu0 0
        %2346 = vmatpush1.bf16.xpose.msra.mxu0 0
        %2347 = vmatprep.subr.bf16.mxu0 0
        %2348 = vmatpush1.bf16.xpose.msra.mxu0 0
        %2349 = vmatprep.subr.bf16.mxu0 0
        %2350 = vmatpush1.bf16.xpose.msra.mxu0 0
        %2351 = vmatprep.subr.bf16.mxu0 0
        %2352 = vmatpush1.bf16.xpose.msra.mxu0 0
        %2353 = vmatprep.subr.bf16.mxu0 0
        %2354 = vmatpush1.bf16.xpose.msra.mxu0 0
        %2355 = vmatprep.mubr.bf16.mxu0 0
        %2356 = vmatmul.mubr.bf16.gmra.mrb[0].mxu0 %v2318
        %v2357 = vpop.f32.mrb[0].mxu0
        %v2358 = vadd.f32 %v1122, %v2357
        %v2359 = vpop.f32.mrb[0].mxu0
        %v2360 = vpop.f32.mrb[0].mxu0
        %v2361 = vpop.f32.mrb[0].mxu0
        %2362 = vdwg.mxu0
        %2363 = vrot.lane.b32.xlu0 %v1436, 104
        %v2364 = vpop.permute.xlu0 %2363
        %2365 = vrot.lane.b32.xlu0 %v1437, 104
        %v2366 = vpop.permute.xlu0 %2365
        %v2369 = vsel %vm1337, %v2364, 0.0
        %2370 = vadd.xlane.f32.xlu0 %v2369
        %v2371 = vpop.xlane.xlu0 %2370
        %v2372 = vsel %vm1337, %v2366, 0.0
        %2373 = vadd.xlane.f32.xlu0 %v2372
        %v2374 = vpop.xlane.xlu0 %2373
        %v2375 = vsel %vm1337, %v2308, -inf
        %2376 = vmax.xlane.f32.xlu0 %v2375
        %v2377 = vpop.xlane.xlu0 %2376
        %v2378 = vsel %vm1337, %v2358, -inf
        %2379 = vmax.xlane.f32.xlu0 %v2378
        %v2380 = vpop.xlane.xlu0 %2379
        %v2381 = vmax.f32 %v2377, %v2371
        %v2382 = vmax.f32 %v2380, %v2374
        %v2383 = vsub.f32 %v2308, %v2381
        %v2384 = vsub.f32 %v2358, %v2382
        %v2385 = vmul.f32 %v2383, 1.442695
        %v2386 = vpow.pop %v2385
        %v2387 = vmul.f32 %v2384, 1.442695
        %v2388 = vpow.pop %v2387
        %v2389 = vsub.f32 %v2371, %v2381
        %v2390 = vsub.f32 %v2374, %v2382
        %v2391 = vmul.f32 %v2389, 1.442695
        %v2392 = vpow.pop %v2391
        %v2393 = vmul.f32 %v2390, 1.442695
        %v2394 = vpow.pop %v2393
        %v2395 = vsel %vm1337, %v2386, 0.0
        %2396 = vadd.xlane.f32.xlu0 %v2395
        %v2397 = vpop.xlane.xlu0 %2396
        %v2398 = vsel %vm1337, %v2388, 0.0
        %2399 = vadd.xlane.f32.xlu0 %v2398
        %v2400 = vpop.xlane.xlu0 %2399
        %v2401 = vadd.f32 %v2397, %v2392
        %v2402 = vadd.f32 %v2400, %v2394
        %v2403 = vrcp.pop %v2401
        %v2404 = vrcp.pop %v2402
        %v2405 = vmul.f32 %v2401, %v2403
        %v2406 = vmul.f32 %v2402, %v2404
        %v2407 = vsub.f32 2.0, %v2405
        %v2408 = vsub.f32 2.0, %v2406
        %v2409 = vmul.f32 %v2403, %v2407
        %v2410 = vmul.f32 %v2404, %v2408
        %v2411 = vpack.c.bf16 %v2386, %v2386
        %v2412 = vpack.c.bf16 %v2388, %v2388
        %v2413 = vmul.f32 %v2392, %v1485
        %v2414 = vmul.f32 %v2394, %v1485
        %2415 = vrot.lane.b32.xlu0 %v1326, 104
        %v2416 = vpop.permute.xlu0 %2415
        %2418 = vrot.lane.b32.xlu0 %v2413, 104
        %v2419 = vpop.permute.xlu0 %2418
        %v2422 = vsel %vm1337, %v2411, 0
        %v2425 = vsel %vm1491, %v2416, 0
        %2427 = vmatprep.subr.bf16.mxu0 0
        %2428 = vmatpush1.bf16.msra.mxu0 %v2425
        %2429 = vmatprep.subr.bf16.mxu0 0
        %2430 = vmatpush1.bf16.msra.mxu0 0
        %2431 = vmatprep.subr.bf16.mxu0 0
        %2432 = vmatpush1.bf16.msra.mxu0 0
        %2433 = vmatprep.subr.bf16.mxu0 0
        %2434 = vmatpush1.bf16.msra.mxu0 0
        %2435 = vmatprep.subr.bf16.mxu0 0
        %2436 = vmatpush1.bf16.msra.mxu0 0
        %2437 = vmatprep.subr.bf16.mxu0 0
        %2438 = vmatpush1.bf16.msra.mxu0 0
        %2439 = vmatprep.subr.bf16.mxu0 0
        %2440 = vmatpush1.bf16.msra.mxu0 0
        %2441 = vmatprep.subr.bf16.mxu0 0
        %2442 = vmatpush1.bf16.msra.mxu0 0
        %2443 = vmatprep.subr.bf16.mxu0 0
        %2444 = vmatpush1.bf16.msra.mxu0 0
        %2445 = vmatprep.subr.bf16.mxu0 0
        %2446 = vmatpush1.bf16.msra.mxu0 0
        %2447 = vmatprep.subr.bf16.mxu0 0
        %2448 = vmatpush1.bf16.msra.mxu0 0
        %2449 = vmatprep.subr.bf16.mxu0 0
        %2450 = vmatpush1.bf16.msra.mxu0 0
        %2451 = vmatprep.subr.bf16.mxu0 0
        %2452 = vmatpush1.bf16.msra.mxu0 0
        %2453 = vmatprep.subr.bf16.mxu0 0
        %2454 = vmatpush1.bf16.msra.mxu0 0
        %2455 = vmatprep.subr.bf16.mxu0 0
        %2456 = vmatpush1.bf16.msra.mxu0 0
        %2457 = vmatprep.subr.bf16.mxu0 0
        %2458 = vmatpush1.bf16.msra.mxu0 0
        %2459 = vmatprep.mubr.bf16.mxu0 0
        %2460 = vmatmul.mubr.bf16.gmra.mrb[0].mxu0 %v2422
        %v2461 = vpop.f32.mrb[0].mxu0
        %v2462 = vadd.f32 %v2419, %v2461
        %v2463 = vpop.f32.mrb[0].mxu0
        %v2464 = vpop.f32.mrb[0].mxu0
        %v2465 = vpop.f32.mrb[0].mxu0
        %2466 = vdwg.mxu0
        %2467 = vrot.lane.b32.xlu0 %v1327, 104
        %v2468 = vpop.permute.xlu0 %2467
        %2470 = vrot.lane.b32.xlu0 %v2414, 104
        %v2471 = vpop.permute.xlu0 %2470
        %v2474 = vsel %vm1337, %v2412, 0
        %v2477 = vsel %vm1491, %v2468, 0
        %2479 = vmatprep.subr.bf16.mxu0 0
        %2480 = vmatpush1.bf16.msra.mxu0 %v2477
        %2481 = vmatprep.subr.bf16.mxu0 0
        %2482 = vmatpush1.bf16.msra.mxu0 0
        %2483 = vmatprep.subr.bf16.mxu0 0
        %2484 = vmatpush1.bf16.msra.mxu0 0
        %2485 = vmatprep.subr.bf16.mxu0 0
        %2486 = vmatpush1.bf16.msra.mxu0 0
        %2487 = vmatprep.subr.bf16.mxu0 0
        %2488 = vmatpush1.bf16.msra.mxu0 0
        %2489 = vmatprep.subr.bf16.mxu0 0
        %2490 = vmatpush1.bf16.msra.mxu0 0
        %2491 = vmatprep.subr.bf16.mxu0 0
        %2492 = vmatpush1.bf16.msra.mxu0 0
        %2493 = vmatprep.subr.bf16.mxu0 0
        %2494 = vmatpush1.bf16.msra.mxu0 0
        %2495 = vmatprep.subr.bf16.mxu0 0
        %2496 = vmatpush1.bf16.msra.mxu0 0
        %2497 = vmatprep.subr.bf16.mxu0 0
        %2498 = vmatpush1.bf16.msra.mxu0 0
        %2499 = vmatprep.subr.bf16.mxu0 0
        %2500 = vmatpush1.bf16.msra.mxu0 0
        %2501 = vmatprep.subr.bf16.mxu0 0
        %2502 = vmatpush1.bf16.msra.mxu0 0
        %2503 = vmatprep.subr.bf16.mxu0 0
        %2504 = vmatpush1.bf16.msra.mxu0 0
        %2505 = vmatprep.subr.bf16.mxu0 0
        %2506 = vmatpush1.bf16.msra.mxu0 0
        %2507 = vmatprep.subr.bf16.mxu0 0
        %2508 = vmatpush1.bf16.msra.mxu0 0
        %2509 = vmatprep.subr.bf16.mxu0 0
        %2510 = vmatpush1.bf16.msra.mxu0 0
        %2511 = vmatprep.mubr.bf16.mxu0 0
        %2512 = vmatmul.mubr.bf16.gmra.mrb[0].mxu0 %v2474
        %v2513 = vpop.f32.mrb[0].mxu0
        %v2514 = vadd.f32 %v2471, %v2513
        %v2515 = vpop.f32.mrb[0].mxu0
        %v2516 = vpop.f32.mrb[0].mxu0
        %v2517 = vpop.f32.mrb[0].mxu0
        %2518 = vdwg.mxu0
        %v2519 = vmul.f32 %v2462, %v2409
        %v2520 = vmul.f32 %v2514, %v2410
        %v2521 = vpack.c.bf16 %v2520, %v2519
        %v2523 = vsel %vm1337, %v2521, 0
        %v2526 = vsel %vm1491, %v1335, 0
        %2528 = vmatprep.subr.bf16.mxu0 0
        %2529 = vmatpush1.bf16.msra.mxu0 %v2526
        %2530 = vmatprep.subr.bf16.mxu0 0
        %2531 = vmatpush1.bf16.msra.mxu0 0
        %2532 = vmatprep.subr.bf16.mxu0 0
        %2533 = vmatpush1.bf16.msra.mxu0 0
        %2534 = vmatprep.subr.bf16.mxu0 0
        %2535 = vmatpush1.bf16.msra.mxu0 0
        %2536 = vmatprep.subr.bf16.mxu0 0
        %2537 = vmatpush1.bf16.msra.mxu0 0
        %2538 = vmatprep.subr.bf16.mxu0 0
        %2539 = vmatpush1.bf16.msra.mxu0 0
        %2540 = vmatprep.subr.bf16.mxu0 0
        %2541 = vmatpush1.bf16.msra.mxu0 0
        %2542 = vmatprep.subr.bf16.mxu0 0
        %2543 = vmatpush1.bf16.msra.mxu0 0
        %2544 = vmatprep.subr.bf16.mxu0 0
        %2545 = vmatpush1.bf16.msra.mxu0 0
        %2546 = vmatprep.subr.bf16.mxu0 0
        %2547 = vmatpush1.bf16.msra.mxu0 0
        %2548 = vmatprep.subr.bf16.mxu0 0
        %2549 = vmatpush1.bf16.msra.mxu0 0
        %2550 = vmatprep.subr.bf16.mxu0 0
        %2551 = vmatpush1.bf16.msra.mxu0 0
        %2552 = vmatprep.subr.bf16.mxu0 0
        %2553 = vmatpush1.bf16.msra.mxu0 0
        %2554 = vmatprep.subr.bf16.mxu0 0
        %2555 = vmatpush1.bf16.msra.mxu0 0
        %2556 = vmatprep.subr.bf16.mxu0 0
        %2557 = vmatpush1.bf16.msra.mxu0 0
        %2558 = vmatprep.subr.bf16.mxu0 0
        %2559 = vmatpush1.bf16.msra.mxu0 0
        %2560 = vmatprep.mubr.bf16.mxu0 0
        %2561 = vmatmul.mubr.bf16.gmra.mrb[0].mxu0 %v2523
        %v2562 = vpop.f32.mrb[0].mxu0
        %v2563 = vadd.f32 0.0, %v2562
        %v2564 = vpop.f32.mrb[0].mxu0
        %v2565 = vpop.f32.mrb[0].mxu0
        %v2566 = vadd.f32 0.0, %v2565
        %v2567 = vpop.f32.mrb[0].mxu0
        %2568 = vdwg.mxu0
        %v2569 = vadd.f32 %v2261, %v2563
        %v2570 = vadd.f32 %v2262, %v2566
        %v2571 = vld [vmem:[%s1024] sm:$0x1]
        %v2572 = vld [vmem:[%s1027] sm:$0x1]
        %v2573 = vsel %vm1149, %v2569, 0.0
        %2574 = vadd.xlane.f32.xlu0 %v2573
        %v2575 = vpop.xlane.xlu0 %2574
        %v2576 = vsel %vm1149, %v2570, 0.0
        %2577 = vadd.xlane.f32.xlu0 %v2576
        %v2578 = vpop.xlane.xlu0 %2577
        %v2579 = vrcp.pop 32.0
        %v2580 = vmul.f32 %v2575, %v2579
        %v2581 = vmul.f32 %v2578, %v2579
        %v2582 = vsub.f32 %v2569, %v2580
        %v2583 = vsub.f32 %v2570, %v2581
        %v2584 = vmul.f32 %v2582, %v2582
        %v2585 = vmul.f32 %v2583, %v2583
        %v2586 = vsel %vm1149, %v2584, 0.0
        %2587 = vadd.xlane.f32.xlu0 %v2586
        %v2588 = vpop.xlane.xlu0 %2587
        %v2589 = vsel %vm1149, %v2585, 0.0
        %2590 = vadd.xlane.f32.xlu0 %v2589
        %v2591 = vpop.xlane.xlu0 %2590
        %v2592 = vmul.f32 %v2588, %v2579
        %v2593 = vmul.f32 %v2591, %v2579
        %v2594 = vadd.f32 %v2592, 1e-12
        %v2595 = vadd.f32 %v2593, 1e-12
        %v2596 = vrsqrt.pop %v2594
        %v2597 = vrsqrt.pop %v2595
        %v2598 = vmul.f32 %v2582, %v2596
        %v2599 = vmul.f32 %v2583, %v2597
        %v2601 = vlaneseq
        %v2602 = vshrl.u32 %v2601, 7
        %v2603 = vsub.s32 0, %v2602
        %v2604 = vrot.slane %v2571, %v2603
        %v2606 = vmul.f32 %v2598, %v2604
        %v2607 = vmul.f32 %v2599, %v2604
        %v2609 = vlaneseq
        %v2610 = vshrl.u32 %v2609, 7
        %v2611 = vsub.s32 0, %v2610
        %v2612 = vrot.slane %v2572, %v2611
        %v2614 = vadd.f32 %v2606, %v2612
        %v2615 = vadd.f32 %v2607, %v2612
        %v2616 = vadd.f32 %v1109, %v2614
        %v2617 = vadd.f32 %v1110, %v2615
        %v2618 = vpack.c.bf16 %v2617, %v2616
        %v2619 = vld [vmem:[%s1032] sm:$0xf]
        %v2620 = vld [vmem:[%s1032 + $0x4] sm:$0xf]
        %v2621 = vld [vmem:[%s1032 + $0x8] sm:$0xf]
        %v2622 = vld [vmem:[%s1032 + $0xc] sm:$0xf]
        %v2623 = vld [vmem:[%s1035] sm:$0x1]
        %v2625 = vlaneseq
        %v2626 = vshrl.u32 %v2625, 7
        %v2627 = vsub.s32 0, %v2626
        %v2628 = vrot.slane %v2623, %v2627
        %v2634 = vunpack.c.l.b16 %v2619
        %v2635 = vunpack.c.l.b16 %v2620
        %v2636 = vunpack.c.l.b16 %v2621
        %v2637 = vunpack.c.l.b16 %v2622
        %v2638 = vpack.c.b16 %v2635, %v2634
        %v2639 = vpack.c.b16 %v2637, %v2636
        %v2643 = vsel %vm1149, %v2618, 0
        %2645 = vmatprep.subr.bf16.mxu0 0
        %2646 = vmatpush1.bf16.msra.mxu0 %v2638
        %2647 = vmatprep.subr.bf16.mxu0 0
        %2648 = vmatpush1.bf16.msra.mxu0 %v2639
        %2649 = vmatprep.subr.bf16.mxu0 0
        %2650 = vmatpush1.bf16.msra.mxu0 0
        %2651 = vmatprep.subr.bf16.mxu0 0
        %2652 = vmatpush1.bf16.msra.mxu0 0
        %2653 = vmatprep.subr.bf16.mxu0 0
        %2654 = vmatpush1.bf16.msra.mxu0 0
        %2655 = vmatprep.subr.bf16.mxu0 0
        %2656 = vmatpush1.bf16.msra.mxu0 0
        %2657 = vmatprep.subr.bf16.mxu0 0
        %2658 = vmatpush1.bf16.msra.mxu0 0
        %2659 = vmatprep.subr.bf16.mxu0 0
        %2660 = vmatpush1.bf16.msra.mxu0 0
        %2661 = vmatprep.subr.bf16.mxu0 0
        %2662 = vmatpush1.bf16.msra.mxu0 0
        %2663 = vmatprep.subr.bf16.mxu0 0
        %2664 = vmatpush1.bf16.msra.mxu0 0
        %2665 = vmatprep.subr.bf16.mxu0 0
        %2666 = vmatpush1.bf16.msra.mxu0 0
        %2667 = vmatprep.subr.bf16.mxu0 0
        %2668 = vmatpush1.bf16.msra.mxu0 0
        %2669 = vmatprep.subr.bf16.mxu0 0
        %2670 = vmatpush1.bf16.msra.mxu0 0
        %2671 = vmatprep.subr.bf16.mxu0 0
        %2672 = vmatpush1.bf16.msra.mxu0 0
        %2673 = vmatprep.subr.bf16.mxu0 0
        %2674 = vmatpush1.bf16.msra.mxu0 0
        %2675 = vmatprep.subr.bf16.mxu0 0
        %2676 = vmatpush1.bf16.msra.mxu0 0
        %2677 = vmatprep.mubr.bf16.mxu0 0
        %2678 = vmatmul.mubr.bf16.gmra.mrb[0].mxu0 %v2643
        %v2679 = vpop.f32.mrb[0].mxu0
        %v2680 = vadd.f32 %v2628, %v2679
        %v2681 = vpop.f32.mrb[0].mxu0
        %v2682 = vpop.f32.mrb[0].mxu0
        %v2683 = vadd.f32 %v2628, %v2682
        %v2684 = vpop.f32.mrb[0].mxu0
        %2685 = vdwg.mxu0
        %v2686 = vmul.f32 %v2680, 0.5
        %v2687 = vmul.f32 %v2683, 0.5
        %v2688 = vmul.f32 %v2680, 0.70710677
        %v2689 = vmul.f32 %v2683, 0.70710677
        %vm2690 = vcmp.ge.f32.partialorder %v2688, 0.0
        %vm2691 = vcmp.ge.f32.partialorder %v2689, 0.0
        %v2692 = vsel %vm2690, 1.0, -1.0
        %v2693 = vsel %vm2691, 1.0, -1.0
        %v2694 = vand.u32 2147483647, %v2688
        %v2695 = vand.u32 2147483647, %v2689
        %v2696 = vmul.f32 %v2694, 0.3275911
        %v2697 = vmul.f32 %v2695, 0.3275911
        %v2698 = vadd.f32 %v2696, 1.0
        %v2699 = vadd.f32 %v2697, 1.0
        %v2700 = vrcp.pop %v2698
        %v2701 = vrcp.pop %v2699
        %v2702 = vmul.f32 %v2698, %v2700
        %v2703 = vmul.f32 %v2699, %v2701
        %v2704 = vsub.f32 2.0, %v2702
        %v2705 = vsub.f32 2.0, %v2703
        %v2706 = vmul.f32 %v2700, %v2704
        %v2707 = vmul.f32 %v2701, %v2705
        %v2708 = vmul.f32 %v2706, 1.0614054
        %v2709 = vmul.f32 %v2707, 1.0614054
        %v2710 = vadd.f32 %v2708, -1.4531521
        %v2711 = vadd.f32 %v2709, -1.4531521
        %v2712 = vmul.f32 %v2710, %v2706
        %v2713 = vmul.f32 %v2711, %v2707
        %v2714 = vadd.f32 %v2712, 1.4214138
        %v2715 = vadd.f32 %v2713, 1.4214138
        %v2716 = vmul.f32 %v2714, %v2706
        %v2717 = vmul.f32 %v2715, %v2707
        %v2718 = vadd.f32 %v2716, -0.28449672
        %v2719 = vadd.f32 %v2717, -0.28449672
        %v2720 = vmul.f32 %v2718, %v2706
        %v2721 = vmul.f32 %v2719, %v2707
        %v2722 = vadd.f32 %v2720, 0.2548296
        %v2723 = vadd.f32 %v2721, 0.2548296
        %v2724 = vmul.f32 %v2722, %v2706
        %v2725 = vmul.f32 %v2723, %v2707
        %v2726 = vsub.f32 0.0, %v2694
        %v2727 = vsub.f32 0.0, %v2695
        %v2728 = vmul.f32 %v2726, %v2694
        %v2729 = vmul.f32 %v2727, %v2695
        %v2730 = vmul.f32 %v2728, 1.442695
        %v2731 = vpow.pop %v2730
        %v2732 = vmul.f32 %v2729, 1.442695
        %v2733 = vpow.pop %v2732
        %v2734 = vmul.f32 %v2724, %v2731
        %v2735 = vmul.f32 %v2725, %v2733
        %v2736 = vsub.f32 1.0, %v2734
        %v2737 = vsub.f32 1.0, %v2735
        %v2738 = vmul.f32 %v2692, %v2736
        %v2739 = vmul.f32 %v2693, %v2737
        %v2740 = vadd.f32 %v2738, 1.0
        %v2741 = vadd.f32 %v2739, 1.0
        %v2742 = vmul.f32 %v2686, %v2740
        %v2743 = vmul.f32 %v2687, %v2741
        %v2744 = vpack.c.bf16 %v2743, %v2742
        %v2745 = vld [vmem:[%s1040] sm:$0xf]
        %v2746 = vld [vmem:[%s1040 + $0x4] sm:$0xf]
        %v2747 = vld [vmem:[%s1040 + $0x8] sm:$0xf]
        %v2748 = vld [vmem:[%s1040 + $0xc] sm:$0xf]
        %v2749 = vld [vmem:[%s1040 + $0x10] sm:$0xf]
        %v2750 = vld [vmem:[%s1040 + $0x14] sm:$0xf]
        %v2751 = vld [vmem:[%s1040 + $0x18] sm:$0xf]
        %v2752 = vld [vmem:[%s1040 + $0x1c] sm:$0xf]
        %v2753 = vld [vmem:[%s1040 + $0x20] sm:$0xf]
        %v2754 = vld [vmem:[%s1040 + $0x24] sm:$0xf]
        %v2755 = vld [vmem:[%s1040 + $0x28] sm:$0xf]
        %v2756 = vld [vmem:[%s1040 + $0x2c] sm:$0xf]
        %v2757 = vld [vmem:[%s1040 + $0x30] sm:$0xf]
        %v2758 = vld [vmem:[%s1040 + $0x34] sm:$0xf]
        %v2759 = vld [vmem:[%s1040 + $0x38] sm:$0xf]
        %v2760 = vld [vmem:[%s1040 + $0x3c] sm:$0xf]
        %v2761 = vld [vmem:[%s1043] sm:$0x1]
        %v2763 = vlaneseq
        %v2764 = vshrl.u32 %v2763, 7
        %v2765 = vsub.s32 0, %v2764
        %v2766 = vrot.slane %v2761, %v2765
        %v2784 = vunpack.c.l.b16 %v2745
        %v2785 = vunpack.c.l.b16 %v2746
        %v2786 = vunpack.c.l.b16 %v2747
        %v2787 = vunpack.c.l.b16 %v2748
        %v2788 = vunpack.c.l.b16 %v2749
        %v2789 = vunpack.c.l.b16 %v2750
        %v2790 = vunpack.c.l.b16 %v2751
        %v2791 = vunpack.c.l.b16 %v2752
        %v2792 = vunpack.c.l.b16 %v2753
        %v2793 = vunpack.c.l.b16 %v2754
        %v2794 = vunpack.c.l.b16 %v2755
        %v2795 = vunpack.c.l.b16 %v2756
        %v2796 = vunpack.c.l.b16 %v2757
        %v2797 = vunpack.c.l.b16 %v2758
        %v2798 = vunpack.c.l.b16 %v2759
        %v2799 = vunpack.c.l.b16 %v2760
        %v2800 = vpack.c.b16 %v2785, %v2784
        %v2801 = vpack.c.b16 %v2787, %v2786
        %v2802 = vpack.c.b16 %v2789, %v2788
        %v2803 = vpack.c.b16 %v2791, %v2790
        %v2804 = vpack.c.b16 %v2793, %v2792
        %v2805 = vpack.c.b16 %v2795, %v2794
        %v2806 = vpack.c.b16 %v2797, %v2796
        %v2807 = vpack.c.b16 %v2799, %v2798
        %2816 = vmatprep.subr.bf16.mxu0 0
        %2817 = vmatpush1.bf16.msra.mxu0 %v2800
        %2818 = vmatprep.subr.bf16.mxu0 0
        %2819 = vmatpush1.bf16.msra.mxu0 %v2801
        %2820 = vmatprep.subr.bf16.mxu0 0
        %2821 = vmatpush1.bf16.msra.mxu0 %v2802
        %2822 = vmatprep.subr.bf16.mxu0 0
        %2823 = vmatpush1.bf16.msra.mxu0 %v2803
        %2824 = vmatprep.subr.bf16.mxu0 0
        %2825 = vmatpush1.bf16.msra.mxu0 %v2804
        %2826 = vmatprep.subr.bf16.mxu0 0
        %2827 = vmatpush1.bf16.msra.mxu0 %v2805
        %2828 = vmatprep.subr.bf16.mxu0 0
        %2829 = vmatpush1.bf16.msra.mxu0 %v2806
        %2830 = vmatprep.subr.bf16.mxu0 0
        %2831 = vmatpush1.bf16.msra.mxu0 %v2807
        %2832 = vmatprep.subr.bf16.mxu0 0
        %2833 = vmatpush1.bf16.msra.mxu0 0
        %2834 = vmatprep.subr.bf16.mxu0 0
        %2835 = vmatpush1.bf16.msra.mxu0 0
        %2836 = vmatprep.subr.bf16.mxu0 0
        %2837 = vmatpush1.bf16.msra.mxu0 0
        %2838 = vmatprep.subr.bf16.mxu0 0
        %2839 = vmatpush1.bf16.msra.mxu0 0
        %2840 = vmatprep.subr.bf16.mxu0 0
        %2841 = vmatpush1.bf16.msra.mxu0 0
        %2842 = vmatprep.subr.bf16.mxu0 0
        %2843 = vmatpush1.bf16.msra.mxu0 0
        %2844 = vmatprep.subr.bf16.mxu0 0
        %2845 = vmatpush1.bf16.msra.mxu0 0
        %2846 = vmatprep.subr.bf16.mxu0 0
        %2847 = vmatpush1.bf16.msra.mxu0 0
        %2848 = vmatprep.mubr.bf16.mxu0 0
        %2849 = vmatmul.mubr.bf16.gmra.mrb[0].mxu0 %v2744
        %v2850 = vpop.f32.mrb[0].mxu0
        %v2851 = vadd.f32 %v2766, %v2850
        %v2852 = vpop.f32.mrb[0].mxu0
        %v2853 = vpop.f32.mrb[0].mxu0
        %v2854 = vadd.f32 %v2766, %v2853
        %v2855 = vpop.f32.mrb[0].mxu0
        %2856 = vdwg.mxu0
        %v2857 = vld [vmem:[%s1046] sm:$0x1]
        %v2858 = vld [vmem:[%s1049] sm:$0x1]
        %v2859 = vsel %vm1149, %v2851, 0.0
        %2860 = vadd.xlane.f32.xlu0 %v2859
        %v2861 = vpop.xlane.xlu0 %2860
        %v2862 = vsel %vm1149, %v2854, 0.0
        %2863 = vadd.xlane.f32.xlu0 %v2862
        %v2864 = vpop.xlane.xlu0 %2863
        %v2865 = vmul.f32 %v2861, %v2579
        %v2866 = vmul.f32 %v2864, %v2579
        %v2867 = vsub.f32 %v2851, %v2865
        %v2868 = vsub.f32 %v2854, %v2866
        %v2869 = vmul.f32 %v2867, %v2867
        %v2870 = vmul.f32 %v2868, %v2868
        %v2871 = vsel %vm1149, %v2869, 0.0
        %2872 = vadd.xlane.f32.xlu0 %v2871
        %v2873 = vpop.xlane.xlu0 %2872
        %v2874 = vsel %vm1149, %v2870, 0.0
        %2875 = vadd.xlane.f32.xlu0 %v2874
        %v2876 = vpop.xlane.xlu0 %2875
        %v2877 = vmul.f32 %v2873, %v2579
        %v2878 = vmul.f32 %v2876, %v2579
        %v2879 = vadd.f32 %v2877, 1e-12
        %v2880 = vadd.f32 %v2878, 1e-12
        %v2881 = vrsqrt.pop %v2879
        %v2882 = vrsqrt.pop %v2880
        %v2883 = vmul.f32 %v2867, %v2881
        %v2884 = vmul.f32 %v2868, %v2882
        %v2886 = vlaneseq
        %v2887 = vshrl.u32 %v2886, 7
        %v2888 = vsub.s32 0, %v2887
        %v2889 = vrot.slane %v2857, %v2888
        %v2891 = vmul.f32 %v2883, %v2889
        %v2892 = vmul.f32 %v2884, %v2889
        %v2894 = vlaneseq
        %v2895 = vshrl.u32 %v2894, 7
        %v2896 = vsub.s32 0, %v2895
        %v2897 = vrot.slane %v2858, %v2896
        %v2899 = vadd.f32 %v2891, %v2897
        %v2900 = vadd.f32 %v2892, %v2897
        %v2901 = vadd.f32 %v2616, %v2899
        %v2902 = vadd.f32 %v2617, %v2900
        %2903 = vst.msk [vmem:[#allocation2] sm:$0xff] %vm1149, %v2901
        %2904 = vst.msk [vmem:[#allocation2 + $0x8] sm:$0xff] %vm1149, %v2902
        %p2905 = scmp.eq.s32.totalorder %s42, 1
        // Predicated region
        $region129: #{tpu_custom_call.1} parent=111 // pred_check
          %p2906 = pneg %p2905
        $region130: #{tpu_custom_call.1} parent=111 // pred_check_branch
          %2908 = sbr.rel (%p2906) target = $region132
        $region131: #{tpu_custom_call.1} parent=111 // pred_region
          %2909 = vst.msk [vmem:[#allocation9] sm:$0xff] %vm1149, %v2901
          %2910 = vst.msk [vmem:[#allocation9 + $0x8] sm:$0xff] %vm1149, %v2902
        $region132: #{tpu_custom_call.1} parent=111 // pred_fallthru
          _
        // Predicated region
        $region133: #{tpu_custom_call.1} parent=111 // pred_check
          %p2911 = pneg %p650
        $region134: #{tpu_custom_call.1} parent=111 // pred_check_branch
          %2913 = sbr.rel (%p2911) target = $region136
        $region135: #{tpu_custom_call.1} parent=111 // pred_region
          %s2914 = smul.u32 2, %s41
          %s2916 = ssub.s32 256, 256
          %2917 = vsyncadd [#allocation5], %s2916
          %s2918 = smul.addr %s2914, 128
          %s2919 = scalar_lea.hbm %s23, %s2918
          %s2920 = sshll.u32 [#allocation9], 4
          %s2921 = int_to_ptr.vmem [resolvable:$true] %s2920
          %2926 = dma.vmem_to_hbm [thread:$0]  %s2921, 256, %s2919, [#allocation5], 128, 128, 8
        $region136: #{tpu_custom_call.1} parent=111 // pred_fallthru
          _
        // Predicated region
        $region137: #{tpu_custom_call.1} parent=111 // pred_check
          %p2927 = pneg %p650
        $region138: #{tpu_custom_call.1} parent=111 // pred_check_branch
          %2929 = sbr.rel (%p2927) target = $region140
        $region139: #{tpu_custom_call.1} parent=111 // pred_region
          %2930 = dma.done [#allocation5], 256
        $region140: #{tpu_custom_call.1} parent=111 // pred_fallthru
          _
      $region112: #{tpu_custom_call.1} parent=5 // pred_fallthru
        _
      %p2931 = scmp.le.s32.totalorder 2, %s32
      // Predicated region
      $region141: #{tpu_custom_call.1} parent=5 // pred_check
        %p2932 = pneg %p2931
      $region142: #{tpu_custom_call.1} parent=5 // pred_check_branch
        %2934 = sbr.rel (%p2932) target = $region144
      $region143: #{tpu_custom_call.1} parent=5 // pred_region
        %s2935 = ssub.s32 %s32, 2
      $region144: #{tpu_custom_call.1} parent=5 // pred_fallthru
        _
    $region6: #{tpu_custom_call.1} parent=1 // loop_footer
      %s36 = sadd.s32 1, %s32
    $region7: #{tpu_custom_call.1} parent=1 // loop_footer_branch
      %31 = sbr.rel target = $region3
    $region8: #{tpu_custom_call.1} parent=1 // loop_exit
      _
    %2936 = vsyncpa [#allocation4], 1
    %s2937 = scalar_lea.sflag [#allocation4], 1
    %2938 = vsyncpa %s2937, 1
    %2939 = vsyncpa [#allocation7], 1
    %2940 = vsyncpa [#allocation5], 1
    %s2941 = scalar_lea.sflag [#allocation5], 1
    %2942 = vsyncpa %s2941, 1

</llo_original>
